<compile_context>
chip_gen: v6e
topology: v6e:2x2x1
jax: 0.10.0
libtpu: 0.0.40
codegen_flags: <defaults>
</compile_context>

<pallas_src>
import functools

import jax
import jax.numpy as jnp
import numpy as np
from jax import lax
from jax.experimental import pallas as pl
from jax.experimental.pallas import tpu as pltpu

_AH = 32           # actor hidden width  -> lanes [0, 32)
_CH = 64           # critic hidden width -> lanes [32, 96)
_W = 128           # fused lane width (one full lane tile)
_LN_EPS = 1e-5


# ----------------------------------------------------------------------------
# Pallas kernel: one batch tile per grid step, everything fused.
# ----------------------------------------------------------------------------
def _actor_critic_kernel(x_ref, w1_ref, w2_ref, w3_ref, bias_ref, out_ref, *,
                         action_dim, compute_dtype):
    A = action_dim
    x = x_ref[...]                       # (TB, F) f32
    bias = bias_ref[...]                 # (8, 128) f32 packed parameters
    b1, b2, b3 = bias[0:1], bias[1:2], bias[2:3]
    g1, be1, g2, be2 = bias[3:4], bias[4:5], bias[5:6], bias[6:7]

    TB = x.shape[0]
    lane = lax.broadcasted_iota(jnp.int32, (TB, _W), 1)
    m_actor = lane < _AH                                   # lanes [0, 32)
    m_critic = (lane >= _AH) & (lane < _AH + _CH)          # lanes [32, 96)

    def mm(a, w):
        # Optional bf16 operands (fewer MXU passes); accumulation stays f32.
        return jnp.dot(a.astype(compute_dtype), w.astype(compute_dtype),
                       preferred_element_type=jnp.float32)

    def ln_lrelu(y, g, beta):
        # Masked single-pass LayerNorm over the 64 critic lanes, then LeakyReLU(0.2).
        # gamma/beta are zero outside the critic lanes, so the result is 0 there.
        yc = jnp.where(m_critic, y, 0.0)
        mu = jnp.sum(yc, axis=-1, keepdims=True) * (1.0 / _CH)
        m2 = jnp.sum(yc * yc, axis=-1, keepdims=True) * (1.0 / _CH)
        # Clamp: single-pass variance can go slightly negative (cancellation),
        # which would NaN under rsqrt.
        var = jnp.maximum(m2 - mu * mu, 0.0)
        n = (y - mu) * lax.rsqrt(var + _LN_EPS) * g + beta
        return jnp.where(n >= 0.0, n, 0.2 * n)

    # layer 1: actor fc1 and critic fc1 fused along the lane axis.
    y1 = mm(x, w1_ref[...]) + b1
    a1 = jnp.where(m_actor, jnp.tanh(y1), ln_lrelu(y1, g1, be1))

    # layer 2: block-diagonal fused weight keeps actor/critic lanes independent.
    y2 = mm(a1, w2_ref[...]) + b2
    a2 = jnp.where(m_actor, jnp.tanh(y2), ln_lrelu(y2, g2, be2))

    # layer 3: lanes [0,A) = actor logits, [A,2A) = duplicate logits, lane 2A = value.
    y3 = mm(a2, w3_ref[...]) + b3

    # Softplus with PyTorch's threshold=20 semantics, then +0.001 (Dirichlet alpha).
    sp = jnp.where(y3 > 20.0, y3, jnp.log1p(jnp.exp(jnp.minimum(y3, 20.0))))
    alpha_full = sp + 0.001

    m_alpha = lane < A
    m_action = (lane >= A) & (lane < 2 * A)
    m_value = lane == 2 * A

    alpha = jnp.where(m_alpha, alpha_full, 0.0)
    asum = jnp.sum(alpha, axis=-1, keepdims=True)
    # EUP approximate reciprocal + one Newton step -> ~f32-exact, off the VPU divide path.
    inv = pl.reciprocal(asum, approx=True)
    inv = inv * (2.0 - asum * inv)
    action = jnp.where(m_action, alpha_full, 0.0) * inv
    value = jnp.where(m_value, y3, 0.0)

    # Single lane-dense (TB, 128) store: [alpha | action | value | zeros].
    out_ref[...] = alpha + action + value


# ----------------------------------------------------------------------------
# Tile-size selection (generation-aware, overhead-first).
# ----------------------------------------------------------------------------
def _vmem_capacity_bytes():
    try:
        return int(pltpu.get_tpu_info().vmem_capacity_bytes)
    except Exception:
        return 64 << 20   # assume the smallest (v7x per-TC) if the query fails


def _per_step_vmem_bytes(tile_b, F):
    # Pessimistic: streamed x tile + out tile double-buffered, weights/bias
    # counted double-buffered as well.
    stream = 2 * tile_b * (F + _W) * 4
    weights = 2 * (F * _W + 2 * _W * _W + 8 * _W) * 4
    return stream + weights


def _choose_tile_b(B, F):
    # Budget: <= half of physical VMEM (so a v6e-sized tile never overflows
    # v7x's 64 MiB), and never above 24 MiB so we stay under scoped defaults.
    budget = min(24 << 20, _vmem_capacity_bytes() // 2)
    # Single grid step whenever the whole batch fits: on single-TC v5e/v6e the
    # grid is a serial loop and each extra step costs ~0.35 us of bookkeeping.
    if _per_step_vmem_bytes(B, F) <= budget:
        return B
    # Otherwise large tiles (best measured HBM-roofline fraction at 512-1024).
    for cand in (1024, 512, 256, 128, 64, 32, 16, 8):
        if B % cand == 0 and _per_step_vmem_bytes(cand, F) <= budget:
            return cand
    return 8


# ----------------------------------------------------------------------------
# Wrapper
# ----------------------------------------------------------------------------
def actor_critic_forward(state, packed, action_dim, *, tile_b=None,
                         compute_dtype=jnp.float32, core_parallel=False,
                         return_packed=False):
    """state: (B, F) f32 post-FFC features.

    Returns (alpha, action, value), or the packed (B, 128) block if
    return_packed=True (avoids three narrow HBM re-read slices downstream).
    """
    B, F = state.shape
    A = action_dim
    assert 2 * A + 1 <= _W, "packed output layout needs 2*action_dim+1 <= 128"

    if tile_b is None:
        tile_b = _choose_tile_b(B, F)
    assert B % tile_b == 0, "batch must be divisible by tile_b"
    assert tile_b == B or tile_b % 8 == 0, "tile_b must be a multiple of 8 (sublanes)"

    n_steps = B // tile_b
    if n_steps == 1:
        sem = ("arbitrary",)            # single step: nothing to parallelize
    elif core_parallel:
        sem = (pltpu.CORE_PARALLEL,)    # v7x: shard batch steps across the 2 TCs
    else:
        sem = ("parallel",)

    needed = _per_step_vmem_bytes(tile_b, F)
    # Only raise the scoped VMEM limit when the tile actually needs it.
    vmem_limit = int(needed + (4 << 20)) if needed > (12 << 20) else None

    kernel = functools.partial(_actor_critic_kernel, action_dim=A,
                               compute_dtype=compute_dtype)

    cost = pl.CostEstimate(
        flops=2 * B * (F * _W + 2 * _W * _W),
        transcendentals=5 * B * _W,     # tanh x2, exp, rsqrt x2 per row-lane
        bytes_accessed=4 * (B * F + B * _W + F * _W + 2 * _W * _W + 8 * _W),
    )

    grid_spec = pltpu.PrefetchScalarGridSpec(
        num_scalar_prefetch=0,
        grid=(n_steps,),
        in_specs=[
            pl.BlockSpec((tile_b, F), lambda i: (i, 0)),   # streamed batch tile
            pl.BlockSpec((F, _W), lambda i: (0, 0)),       # fused layer-1 weight (resident)
            pl.BlockSpec((_W, _W), lambda i: (0, 0)),      # fused layer-2 weight
            pl.BlockSpec((_W, _W), lambda i: (0, 0)),      # fused layer-3 weight
            pl.BlockSpec((8, _W), lambda i: (0, 0)),       # packed biases / LN params
        ],
        out_specs=pl.BlockSpec((tile_b, _W), lambda i: (i, 0)),
    )

    out = pl.pallas_call(
        kernel,
        grid_spec=grid_spec,
        out_shape=jax.ShapeDtypeStruct((B, _W), jnp.float32),
        compiler_params=pltpu.CompilerParams(
            dimension_semantics=sem,
            vmem_limit_bytes=vmem_limit,
        ),
        cost_estimate=cost,
    )(state, packed["w1"], packed["w2"], packed["w3"], packed["bias"])

    if return_packed:
        return out
    alpha = out[:, :A]
    action = out[:, A:2 * A]
    value = out[:, 2 * A:2 * A + 1]
    return alpha, action, value


# ----------------------------------------------------------------------------
# Parameter packing: natural (PyTorch-layout) params -> fused / lane-padded.
# ----------------------------------------------------------------------------
def pack_params(p, action_dim):
    A = action_dim
    F = p["aw1"].shape[0]

    w1 = jnp.zeros((F, _W), jnp.float32)
    w1 = w1.at[:, 0:_AH].set(p["aw1"]).at[:, _AH:_AH + _CH].set(p["cw1"])
    b1 = jnp.zeros((_W,), jnp.float32)
    b1 = b1.at[0:_AH].set(p["ab1"][0]).at[_AH:_AH + _CH].set(p["cb1"][0])

    w2 = jnp.zeros((_W, _W), jnp.float32)
    w2 = w2.at[0:_AH, 0:_AH].set(p["aw2"]).at[_AH:_AH + _CH, _AH:_AH + _CH].set(p["cw2"])
    b2 = jnp.zeros((_W,), jnp.float32)
    b2 = b2.at[0:_AH].set(p["ab2"][0]).at[_AH:_AH + _CH].set(p["cb2"][0])

    w3 = jnp.zeros((_W, _W), jnp.float32)
    w3 = w3.at[0:_AH, 0:A].set(p["aw3"]).at[0:_AH, A:2 * A].set(p["aw3"])
    w3 = w3.at[_AH:_AH + _CH, 2 * A:2 * A + 1].set(p["cw3"])
    b3 = jnp.zeros((_W,), jnp.float32)
    b3 = b3.at[0:A].set(p["ab3"][0]).at[A:2 * A].set(p["ab3"][0]).at[2 * A].set(p["cb3"][0, 0])

    def pad_ln(v):
        return jnp.zeros((_W,), jnp.float32).at[_AH:_AH + _CH].set(v[0])

    bias_pack = jnp.stack(
        [b1, b2, b3, pad_ln(p["g1"]), pad_ln(p["be1"]),
         pad_ln(p["g2"]), pad_ln(p["be2"]), jnp.zeros((_W,), jnp.float32)],
        axis=0)                                            # (8, 128)

    return dict(w1=w1, w2=w2, w3=w3, bias=bias_pack)


# ----------------------------------------------------------------------------
# Deterministic parameter init (shapes follow the PyTorch module __init__).
# ----------------------------------------------------------------------------
def init_params(key, feature_dim, action_dim):
    def linear(k, fin, fout):
        kw, kb = jax.random.split(k)
        lim = 1.0 / np.sqrt(fin)
        w = jax.random.uniform(kw, (fin, fout), jnp.float32, -lim, lim)
        b = jax.random.uniform(kb, (1, fout), jnp.float32, -lim, lim)
        return w, b

    ks = jax.random.split(key, 6)
    aw1, ab1 = linear(ks[0], feature_dim, _AH)
    aw2, ab2 = linear(ks[1], _AH, _AH)
    aw3, ab3 = linear(ks[2], _AH, action_dim)
    cw1, cb1 = linear(ks[3], feature_dim, _CH)
    cw2, cb2 = linear(ks[4], _CH, _CH)
    cw3, cb3 = linear(ks[5], _CH, 1)
    return dict(
        aw1=aw1, ab1=ab1, aw2=aw2, ab2=ab2, aw3=aw3, ab3=ab3,
        cw1=cw1, cb1=cb1,
        g1=jnp.ones((1, _CH), jnp.float32), be1=jnp.zeros((1, _CH), jnp.float32),
        cw2=cw2, cb2=cb2,
        g2=jnp.ones((1, _CH), jnp.float32), be2=jnp.zeros((1, _CH), jnp.float32),
        cw3=cw3, cb3=cb3,
    )


# ----------------------------------------------------------------------------
# Pure-JAX reference (PyTorch semantics) for in-script correctness check.
# ----------------------------------------------------------------------------
def reference(state, p):
    h = jnp.tanh(state @ p["aw1"] + p["ab1"])
    h = jnp.tanh(h @ p["aw2"] + p["ab2"])
    z = h @ p["aw3"] + p["ab3"]
    alpha = jax.nn.softplus(z) + 0.001
    action = alpha / jnp.sum(alpha, axis=-1, keepdims=True)

    def ln(v, g, b):
        mu = jnp.mean(v, -1, keepdims=True)
        var = jnp.mean((v - mu) ** 2, -1, keepdims=True)
        return (v - mu) / jnp.sqrt(var + _LN_EPS) * g + b

    def lrelu(v):
        return jnp.where(v >= 0, v, 0.2 * v)

    c = lrelu(ln(state @ p["cw1"] + p["cb1"], p["g1"], p["be1"]))
    c = lrelu(ln(c @ p["cw2"] + p["cb2"], p["g2"], p["be2"]))
    value = c @ p["cw3"] + p["cb3"]
    return alpha, action, value


if __name__ == "__main__":
    # Shapes consistent with the module:
    #   feature = 8, final_conv out_channels = 4 -> feature_dim = 32
    #   action_dim = 5 (continuous action space -> Dirichlet)
    #   batch = 256 -> whole batch fits VMEM -> single grid step (no per-step overhead).
    B, feature, out_channels, action_dim = 256, 8, 4, 5
    feature_dim = out_channels * feature  # 32

    key = jax.random.PRNGKey(0)
    kx, kp = jax.random.split(key)
    # post-FFC flattened features (see TODO(synk) note above)
    state = jax.random.normal(kx, (B, feature_dim), jnp.float32)
    params = init_params(kp, feature_dim, action_dim)
    packed = pack_params(params, action_dim)

    alpha, action, value = jax.block_until_ready(
        actor_critic_forward(state, packed, action_dim)
    )

    ra, rac, rv = reference(state, params)
    # tolerance: single-pass LN variance + rsqrt vs the two-pass f32 reference.
    np.testing.assert_allclose(np.asarray(alpha), np.asarray(ra), rtol=1e-4, atol=1e-5)
    np.testing.assert_allclose(np.asarray(action), np.asarray(rac), rtol=1e-4, atol=1e-5)
    np.testing.assert_allclose(np.asarray(value), np.asarray(rv), rtol=1e-4, atol=1e-5)

    print("KERNEL_OK")
</pallas_src>

<mosaic_0001>
module attributes {stable_mosaic.version = 11 : i64} {
  func.func @_actor_critic_kernel(%arg0: i32, %arg1: memref<256x32xf32, #tpu.memory_space<vmem>>, %arg2: memref<32x128xf32, #tpu.memory_space<vmem>>, %arg3: memref<128x128xf32, #tpu.memory_space<vmem>>, %arg4: memref<128x128xf32, #tpu.memory_space<vmem>>, %arg5: memref<8x128xf32, #tpu.memory_space<vmem>>, %arg6: memref<256x128xf32, #tpu.memory_space<vmem>>) attributes {dimension_semantics = [#tpu.dimension_semantics<arbitrary>], iteration_bounds = array<i64: 1>, scalar_prefetch = 0 : i64, scratch_operands = 0 : i64, tpu.core_type = #tpu.core_type<tc>, window_params = [{transform_indices = @transform_0, window_bounds = array<i64: 256, 32>}, {pipeline_mode = #tpu.pipeline_mode<synchronous>, transform_indices = @transform_1, window_bounds = array<i64: 32, 128>}, {pipeline_mode = #tpu.pipeline_mode<synchronous>, transform_indices = @transform_2, window_bounds = array<i64: 128, 128>}, {pipeline_mode = #tpu.pipeline_mode<synchronous>, transform_indices = @transform_3, window_bounds = array<i64: 128, 128>}, {pipeline_mode = #tpu.pipeline_mode<synchronous>, transform_indices = @transform_4, window_bounds = array<i64: 8, 128>}, {transform_indices = @transform_5, window_bounds = array<i64: 256, 128>}]} {
    %c0 = arith.constant 0 : index
    %c0_0 = arith.constant 0 : index
    %0 = vector.load %arg1[%c0, %c0_0] : memref<256x32xf32, #tpu.memory_space<vmem>>, vector<256x32xf32>
    %c0_1 = arith.constant 0 : index
    %c0_2 = arith.constant 0 : index
    %1 = vector.load %arg5[%c0_1, %c0_2] : memref<8x128xf32, #tpu.memory_space<vmem>>, vector<8x128xf32>
    %2 = vector.extract_strided_slice %1 {offsets = [0, 0], sizes = [1, 128], strides = [1, 1]} : vector<8x128xf32> to vector<1x128xf32>
    %3 = vector.extract_strided_slice %1 {offsets = [1, 0], sizes = [1, 128], strides = [1, 1]} : vector<8x128xf32> to vector<1x128xf32>
    %4 = vector.extract_strided_slice %1 {offsets = [2, 0], sizes = [1, 128], strides = [1, 1]} : vector<8x128xf32> to vector<1x128xf32>
    %5 = vector.extract_strided_slice %1 {offsets = [3, 0], sizes = [1, 128], strides = [1, 1]} : vector<8x128xf32> to vector<1x128xf32>
    %6 = vector.extract_strided_slice %1 {offsets = [4, 0], sizes = [1, 128], strides = [1, 1]} : vector<8x128xf32> to vector<1x128xf32>
    %7 = vector.extract_strided_slice %1 {offsets = [5, 0], sizes = [1, 128], strides = [1, 1]} : vector<8x128xf32> to vector<1x128xf32>
    %8 = vector.extract_strided_slice %1 {offsets = [6, 0], sizes = [1, 128], strides = [1, 1]} : vector<8x128xf32> to vector<1x128xf32>
    %9 = tpu.iota {dimensions = array<i32: 1>} : vector<256x128xi32>
    %c32_i32 = arith.constant 32 : i32
    %10 = vector.broadcast %c32_i32 : i32 to vector<256x128xi32>
    %11 = arith.cmpi slt, %9, %10 : vector<256x128xi32>
    %c32_i32_3 = arith.constant 32 : i32
    %12 = vector.broadcast %c32_i32_3 : i32 to vector<256x128xi32>
    %13 = arith.cmpi sge, %9, %12 : vector<256x128xi32>
    %c96_i32 = arith.constant 96 : i32
    %14 = vector.broadcast %c96_i32 : i32 to vector<256x128xi32>
    %15 = arith.cmpi slt, %9, %14 : vector<256x128xi32>
    %16 = arith.andi %13, %15 : vector<256x128xi1>
    %c0_4 = arith.constant 0 : index
    %c0_5 = arith.constant 0 : index
    %17 = vector.load %arg2[%c0_4, %c0_5] : memref<32x128xf32, #tpu.memory_space<vmem>>, vector<32x128xf32>
    %cst = arith.constant dense<0.000000e+00> : vector<256x128xf32>
    %18 = tpu.matmul %0, %17, %cst {dimension_numbers = #tpu.dot_dimension_numbers<[1], [0], [0], [1], [0, 0, 1, 1], [], []>} : vector<256x32xf32>, vector<32x128xf32>, vector<256x128xf32> -> vector<256x128xf32>
    %19 = vector.broadcast %2 : vector<1x128xf32> to vector<256x128xf32>
    %20 = arith.addf %18, %19 : vector<256x128xf32>
    %21 = math.tanh %20 : vector<256x128xf32>
    %cst_6 = arith.constant 0.000000e+00 : f32
    %22 = vector.broadcast %cst_6 : f32 to vector<256x128xf32>
    %23 = arith.select %16, %20, %22 : vector<256x128xi1>, vector<256x128xf32>
    %cst_7 = arith.constant dense<0.000000e+00> : vector<256xf32>
    %24 = vector.multi_reduction <add>, %23, %cst_7 [1] : vector<256x128xf32> to vector<256xf32>
    %25 = vector.shape_cast %24 : vector<256xf32> to vector<256x1xf32>
    %cst_8 = arith.constant 1.562500e-02 : f32
    %26 = vector.broadcast %cst_8 : f32 to vector<256x1xf32>
    %27 = arith.mulf %25, %26 : vector<256x1xf32>
    %28 = arith.mulf %23, %23 : vector<256x128xf32>
    %cst_9 = arith.constant dense<0.000000e+00> : vector<256xf32>
    %29 = vector.multi_reduction <add>, %28, %cst_9 [1] : vector<256x128xf32> to vector<256xf32>
    %30 = vector.shape_cast %29 : vector<256xf32> to vector<256x1xf32>
    %cst_10 = arith.constant 1.562500e-02 : f32
    %31 = vector.broadcast %cst_10 : f32 to vector<256x1xf32>
    %32 = arith.mulf %30, %31 : vector<256x1xf32>
    %33 = arith.mulf %27, %27 : vector<256x1xf32>
    %34 = arith.subf %32, %33 : vector<256x1xf32>
    %cst_11 = arith.constant 0.000000e+00 : f32
    %35 = vector.broadcast %cst_11 : f32 to vector<256x1xf32>
    %36 = arith.maximumf %34, %35 : vector<256x1xf32>
    %37 = vector.broadcast %27 : vector<256x1xf32> to vector<256x128xf32>
    %38 = arith.subf %20, %37 : vector<256x128xf32>
    %cst_12 = arith.constant 9.99999974E-6 : f32
    %39 = vector.broadcast %cst_12 : f32 to vector<256x1xf32>
    %40 = arith.addf %36, %39 : vector<256x1xf32>
    %41 = math.rsqrt %40 : vector<256x1xf32>
    %42 = vector.broadcast %41 : vector<256x1xf32> to vector<256x128xf32>
    %43 = arith.mulf %38, %42 : vector<256x128xf32>
    %44 = vector.broadcast %5 : vector<1x128xf32> to vector<256x128xf32>
    %45 = arith.mulf %43, %44 : vector<256x128xf32>
    %46 = vector.broadcast %6 : vector<1x128xf32> to vector<256x128xf32>
    %47 = arith.addf %45, %46 : vector<256x128xf32>
    %cst_13 = arith.constant 0.000000e+00 : f32
    %48 = vector.broadcast %cst_13 : f32 to vector<256x128xf32>
    %49 = arith.cmpf oge, %47, %48 : vector<256x128xf32>
    %cst_14 = arith.constant 2.000000e-01 : f32
    %50 = vector.broadcast %cst_14 : f32 to vector<256x128xf32>
    %51 = arith.mulf %50, %47 : vector<256x128xf32>
    %52 = arith.select %49, %47, %51 : vector<256x128xi1>, vector<256x128xf32>
    %53 = arith.select %11, %21, %52 : vector<256x128xi1>, vector<256x128xf32>
    %c0_15 = arith.constant 0 : index
    %c0_16 = arith.constant 0 : index
    %54 = vector.load %arg3[%c0_15, %c0_16] : memref<128x128xf32, #tpu.memory_space<vmem>>, vector<128x128xf32>
    %cst_17 = arith.constant dense<0.000000e+00> : vector<256x128xf32>
    %55 = tpu.matmul %53, %54, %cst_17 {dimension_numbers = #tpu.dot_dimension_numbers<[1], [0], [0], [1], [0, 0, 1, 1], [], []>} : vector<256x128xf32>, vector<128x128xf32>, vector<256x128xf32> -> vector<256x128xf32>
    %56 = vector.broadcast %3 : vector<1x128xf32> to vector<256x128xf32>
    %57 = arith.addf %55, %56 : vector<256x128xf32>
    %58 = math.tanh %57 : vector<256x128xf32>
    %cst_18 = arith.constant 0.000000e+00 : f32
    %59 = vector.broadcast %cst_18 : f32 to vector<256x128xf32>
    %60 = arith.select %16, %57, %59 : vector<256x128xi1>, vector<256x128xf32>
    %cst_19 = arith.constant dense<0.000000e+00> : vector<256xf32>
    %61 = vector.multi_reduction <add>, %60, %cst_19 [1] : vector<256x128xf32> to vector<256xf32>
    %62 = vector.shape_cast %61 : vector<256xf32> to vector<256x1xf32>
    %cst_20 = arith.constant 1.562500e-02 : f32
    %63 = vector.broadcast %cst_20 : f32 to vector<256x1xf32>
    %64 = arith.mulf %62, %63 : vector<256x1xf32>
    %65 = arith.mulf %60, %60 : vector<256x128xf32>
    %cst_21 = arith.constant dense<0.000000e+00> : vector<256xf32>
    %66 = vector.multi_reduction <add>, %65, %cst_21 [1] : vector<256x128xf32> to vector<256xf32>
    %67 = vector.shape_cast %66 : vector<256xf32> to vector<256x1xf32>
    %cst_22 = arith.constant 1.562500e-02 : f32
    %68 = vector.broadcast %cst_22 : f32 to vector<256x1xf32>
    %69 = arith.mulf %67, %68 : vector<256x1xf32>
    %70 = arith.mulf %64, %64 : vector<256x1xf32>
    %71 = arith.subf %69, %70 : vector<256x1xf32>
    %cst_23 = arith.constant 0.000000e+00 : f32
    %72 = vector.broadcast %cst_23 : f32 to vector<256x1xf32>
    %73 = arith.maximumf %71, %72 : vector<256x1xf32>
    %74 = vector.broadcast %64 : vector<256x1xf32> to vector<256x128xf32>
    %75 = arith.subf %57, %74 : vector<256x128xf32>
    %cst_24 = arith.constant 9.99999974E-6 : f32
    %76 = vector.broadcast %cst_24 : f32 to vector<256x1xf32>
    %77 = arith.addf %73, %76 : vector<256x1xf32>
    %78 = math.rsqrt %77 : vector<256x1xf32>
    %79 = vector.broadcast %78 : vector<256x1xf32> to vector<256x128xf32>
    %80 = arith.mulf %75, %79 : vector<256x128xf32>
    %81 = vector.broadcast %7 : vector<1x128xf32> to vector<256x128xf32>
    %82 = arith.mulf %80, %81 : vector<256x128xf32>
    %83 = vector.broadcast %8 : vector<1x128xf32> to vector<256x128xf32>
    %84 = arith.addf %82, %83 : vector<256x128xf32>
    %cst_25 = arith.constant 0.000000e+00 : f32
    %85 = vector.broadcast %cst_25 : f32 to vector<256x128xf32>
    %86 = arith.cmpf oge, %84, %85 : vector<256x128xf32>
    %cst_26 = arith.constant 2.000000e-01 : f32
    %87 = vector.broadcast %cst_26 : f32 to vector<256x128xf32>
    %88 = arith.mulf %87, %84 : vector<256x128xf32>
    %89 = arith.select %86, %84, %88 : vector<256x128xi1>, vector<256x128xf32>
    %90 = arith.select %11, %58, %89 : vector<256x128xi1>, vector<256x128xf32>
    %c0_27 = arith.constant 0 : index
    %c0_28 = arith.constant 0 : index
    %91 = vector.load %arg4[%c0_27, %c0_28] : memref<128x128xf32, #tpu.memory_space<vmem>>, vector<128x128xf32>
    %cst_29 = arith.constant dense<0.000000e+00> : vector<256x128xf32>
    %92 = tpu.matmul %90, %91, %cst_29 {dimension_numbers = #tpu.dot_dimension_numbers<[1], [0], [0], [1], [0, 0, 1, 1], [], []>} : vector<256x128xf32>, vector<128x128xf32>, vector<256x128xf32> -> vector<256x128xf32>
    %93 = vector.broadcast %4 : vector<1x128xf32> to vector<256x128xf32>
    %94 = arith.addf %92, %93 : vector<256x128xf32>
    %cst_30 = arith.constant 2.000000e+01 : f32
    %95 = vector.broadcast %cst_30 : f32 to vector<256x128xf32>
    %96 = arith.cmpf ogt, %94, %95 : vector<256x128xf32>
    %cst_31 = arith.constant 2.000000e+01 : f32
    %97 = vector.broadcast %cst_31 : f32 to vector<256x128xf32>
    %98 = arith.minimumf %94, %97 : vector<256x128xf32>
    %99 = math.exp %98 : vector<256x128xf32>
    %100 = math.log1p %99 : vector<256x128xf32>
    %101 = arith.select %96, %94, %100 : vector<256x128xi1>, vector<256x128xf32>
    %cst_32 = arith.constant 1.000000e-03 : f32
    %102 = vector.broadcast %cst_32 : f32 to vector<256x128xf32>
    %103 = arith.addf %101, %102 : vector<256x128xf32>
    %c5_i32 = arith.constant 5 : i32
    %104 = vector.broadcast %c5_i32 : i32 to vector<256x128xi32>
    %105 = arith.cmpi slt, %9, %104 : vector<256x128xi32>
    %c5_i32_33 = arith.constant 5 : i32
    %106 = vector.broadcast %c5_i32_33 : i32 to vector<256x128xi32>
    %107 = arith.cmpi sge, %9, %106 : vector<256x128xi32>
    %c10_i32 = arith.constant 10 : i32
    %108 = vector.broadcast %c10_i32 : i32 to vector<256x128xi32>
    %109 = arith.cmpi slt, %9, %108 : vector<256x128xi32>
    %110 = arith.andi %107, %109 : vector<256x128xi1>
    %c10_i32_34 = arith.constant 10 : i32
    %111 = vector.broadcast %c10_i32_34 : i32 to vector<256x128xi32>
    %112 = arith.cmpi eq, %9, %111 : vector<256x128xi32>
    %cst_35 = arith.constant 0.000000e+00 : f32
    %113 = vector.broadcast %cst_35 : f32 to vector<256x128xf32>
    %114 = arith.select %105, %103, %113 : vector<256x128xi1>, vector<256x128xf32>
    %cst_36 = arith.constant dense<0.000000e+00> : vector<256xf32>
    %115 = vector.multi_reduction <add>, %114, %cst_36 [1] : vector<256x128xf32> to vector<256xf32>
    %116 = vector.shape_cast %115 : vector<256xf32> to vector<256x1xf32>
    %117 = tpu.reciprocal %116 {approx = true} : vector<256x1xf32> -> vector<256x1xf32>
    %118 = arith.mulf %116, %117 : vector<256x1xf32>
    %cst_37 = arith.constant 2.000000e+00 : f32
    %119 = vector.broadcast %cst_37 : f32 to vector<256x1xf32>
    %120 = arith.subf %119, %118 : vector<256x1xf32>
    %121 = arith.mulf %117, %120 : vector<256x1xf32>
    %cst_38 = arith.constant 0.000000e+00 : f32
    %122 = vector.broadcast %cst_38 : f32 to vector<256x128xf32>
    %123 = arith.select %110, %103, %122 : vector<256x128xi1>, vector<256x128xf32>
    %124 = vector.broadcast %121 : vector<256x1xf32> to vector<256x128xf32>
    %125 = arith.mulf %123, %124 : vector<256x128xf32>
    %cst_39 = arith.constant 0.000000e+00 : f32
    %126 = vector.broadcast %cst_39 : f32 to vector<256x128xf32>
    %127 = arith.select %112, %94, %126 : vector<256x128xi1>, vector<256x128xf32>
    %128 = arith.addf %114, %125 : vector<256x128xf32>
    %129 = arith.addf %128, %127 : vector<256x128xf32>
    %c0_40 = arith.constant 0 : index
    %c0_41 = arith.constant 0 : index
    %130 = vector.load %arg6[%c0_40, %c0_41] : memref<256x128xf32, #tpu.memory_space<vmem>>, vector<256x128xf32>
    tpu.vector_store %arg6[%c0_40, %c0_41], %129 {strides = array<i32>} : memref<256x128xf32, #tpu.memory_space<vmem>>, vector<256x128xf32>,
    return
  }
  func.func @transform_0(%arg0: i32) -> (i32, i32) {
    %c0_i32 = arith.constant 0 : i32
    %c0_i32_0 = arith.constant 0 : i32
    return %arg0, %c0_i32 : i32, i32
  }
  func.func @transform_1(%arg0: i32) -> (i32, i32) {
    %c0_i32 = arith.constant 0 : i32
    %c0_i32_0 = arith.constant 0 : i32
    %c0_i32_1 = arith.constant 0 : i32
    return %c0_i32, %c0_i32_0 : i32, i32
  }
  func.func @transform_2(%arg0: i32) -> (i32, i32) {
    %c0_i32 = arith.constant 0 : i32
    %c0_i32_0 = arith.constant 0 : i32
    %c0_i32_1 = arith.constant 0 : i32
    return %c0_i32, %c0_i32_0 : i32, i32
  }
  func.func @transform_3(%arg0: i32) -> (i32, i32) {
    %c0_i32 = arith.constant 0 : i32
    %c0_i32_0 = arith.constant 0 : i32
    %c0_i32_1 = arith.constant 0 : i32
    return %c0_i32, %c0_i32_0 : i32, i32
  }
  func.func @transform_4(%arg0: i32) -> (i32, i32) {
    %c0_i32 = arith.constant 0 : i32
    %c0_i32_0 = arith.constant 0 : i32
    %c0_i32_1 = arith.constant 0 : i32
    return %c0_i32, %c0_i32_0 : i32, i32
  }
  func.func @transform_5(%arg0: i32) -> (i32, i32) {
    %c0_i32 = arith.constant 0 : i32
    %c0_i32_0 = arith.constant 0 : i32
    return %arg0, %c0_i32 : i32, i32
  }
}

</mosaic_0001>

<llo_original>
// kernel: tpu_custom_call.1
$region0: #{tpu_custom_call.1}
  #allocation0 [shape = 'u32[]', space=smem, size = 0x4, offset = 0x4, fixed_abs, tag = 'smem constant byte address 0x4 - core index']
  #allocation1 [shape = 'u32[144,128]{1,0:T(1,128)}', space=vmem, size = 0x12000, scoped, tag = 'internal scratch']
  %s0 = inlined_call_operand.vmem [shape: f32[256,32], index: 0, kind: input, shape index: {}]
  %s1 = inlined_call_operand.vmem [shape: f32[32,128], index: 1, kind: input, shape index: {}]
  %s2 = inlined_call_operand.vmem [shape: f32[128,128], index: 2, kind: input, shape index: {}]
  %s3 = inlined_call_operand.vmem [shape: f32[128,128], index: 3, kind: input, shape index: {}]
  %s4 = inlined_call_operand.vmem [shape: f32[8,128], index: 4, kind: input, shape index: {}]
  %s5 = inlined_call_operand.hbm [shape: f32[256,128], index: 5, kind: output, shape index: {}]
  %s6 = sld [smem:[#allocation0]]
  $region30: #{tpu_custom_call.1} parent=0
    _
  %s8 = ssub.s32 1, %s6
  %s9 = scalar_select 0, %s8, %s6
  $region1: #{tpu_custom_call.1} parent=0
    #allocation2 [shape = 'u8[131072]{0}', space=vmem, size = 0x20000, scoped, tag = 'output window, operand 0, single buffered']
    #allocation3 [shape = 's32[1]{0}', space=sflag, size = 0x4, scoped, tag = 'scoped memory for tpu_custom_call.1']
    %10 = vsyncpa [#allocation3], 0
    // Predicated region
    $region2: #{tpu_custom_call.1} parent=1 // pred_check
      _
    $region3: #{tpu_custom_call.1} parent=1 // pred_check_branch
      %12 = sbr.rel (0) target = $region5
    $region4: #{tpu_custom_call.1} parent=1 // pred_region
      _
    $region5: #{tpu_custom_call.1} parent=1 // pred_fallthru
      _
    // Predicated region
    $region6: #{tpu_custom_call.1} parent=1 // pred_check
      _
    $region7: #{tpu_custom_call.1} parent=1 // pred_check_branch
      %14 = sbr.rel (0) target = $region9
    $region8: #{tpu_custom_call.1} parent=1 // pred_region
      _
    $region9: #{tpu_custom_call.1} parent=1 // pred_fallthru
      _
    // Predicated region
    $region10: #{tpu_custom_call.1} parent=1 // pred_check
      _
    $region11: #{tpu_custom_call.1} parent=1 // pred_check_branch
      %16 = sbr.rel (0) target = $region13
    $region12: #{tpu_custom_call.1} parent=1 // pred_region
      _
    $region13: #{tpu_custom_call.1} parent=1 // pred_fallthru
      _
    // Predicated region
    $region14: #{tpu_custom_call.1} parent=1 // pred_check
      _
    $region15: #{tpu_custom_call.1} parent=1 // pred_check_branch
      %18 = sbr.rel (0) target = $region17
    $region16: #{tpu_custom_call.1} parent=1 // pred_region
      _
    $region17: #{tpu_custom_call.1} parent=1 // pred_fallthru
      _
    // Predicated region
    $region18: #{tpu_custom_call.1} parent=1 // pred_check
      _
    $region19: #{tpu_custom_call.1} parent=1 // pred_check_branch
      %20 = sbr.rel (0) target = $region21
    $region20: #{tpu_custom_call.1} parent=1 // pred_region
      _
    $region21: #{tpu_custom_call.1} parent=1 // pred_fallthru
      _
    %v21 = vld [vmem:[%s0] sm:$0xff]
    %v22 = vld [vmem:[%s0 + $0x8] sm:$0xff]
    %v23 = vld [vmem:[%s0 + $0x10] sm:$0xff]
    %v24 = vld [vmem:[%s0 + $0x18] sm:$0xff]
    %v25 = vld [vmem:[%s0 + $0x20] sm:$0xff]
    %v26 = vld [vmem:[%s0 + $0x28] sm:$0xff]
    %v27 = vld [vmem:[%s0 + $0x30] sm:$0xff]
    %v28 = vld [vmem:[%s0 + $0x38] sm:$0xff]
    %v29 = vld [vmem:[%s0 + $0x40] sm:$0xff]
    %v30 = vld [vmem:[%s0 + $0x48] sm:$0xff]
    %v31 = vld [vmem:[%s0 + $0x50] sm:$0xff]
    %v32 = vld [vmem:[%s0 + $0x58] sm:$0xff]
    %v33 = vld [vmem:[%s0 + $0x60] sm:$0xff]
    %v34 = vld [vmem:[%s0 + $0x68] sm:$0xff]
    %v35 = vld [vmem:[%s0 + $0x70] sm:$0xff]
    %v36 = vld [vmem:[%s0 + $0x78] sm:$0xff]
    %v37 = vld [vmem:[%s0 + $0x80] sm:$0xff]
    %v38 = vld [vmem:[%s0 + $0x88] sm:$0xff]
    %v39 = vld [vmem:[%s0 + $0x90] sm:$0xff]
    %v40 = vld [vmem:[%s0 + $0x98] sm:$0xff]
    %v41 = vld [vmem:[%s0 + $0xa0] sm:$0xff]
    %v42 = vld [vmem:[%s0 + $0xa8] sm:$0xff]
    %v43 = vld [vmem:[%s0 + $0xb0] sm:$0xff]
    %v44 = vld [vmem:[%s0 + $0xb8] sm:$0xff]
    %v45 = vld [vmem:[%s0 + $0xc0] sm:$0xff]
    %v46 = vld [vmem:[%s0 + $0xc8] sm:$0xff]
    %v47 = vld [vmem:[%s0 + $0xd0] sm:$0xff]
    %v48 = vld [vmem:[%s0 + $0xd8] sm:$0xff]
    %v49 = vld [vmem:[%s0 + $0xe0] sm:$0xff]
    %v50 = vld [vmem:[%s0 + $0xe8] sm:$0xff]
    %v51 = vld [vmem:[%s0 + $0xf0] sm:$0xff]
    %v52 = vld [vmem:[%s0 + $0xf8] sm:$0xff]
    %v53 = vld [vmem:[%s4] sm:$0xff]
    %v54 = vlaneseq
    %v55 = vand.u32 %v54, 127
    %vm56 = vcmp.lt.s32.totalorder %v55, 32
    %vm57 = vcmp.ge.s32.totalorder %v55, 32
    %vm58 = vcmp.lt.s32.totalorder %v55, 96
    %vm59 = vmand %vm57, %vm58
    %v60 = vld [vmem:[%s1] sm:$0xff]
    %v61 = vld [vmem:[%s1 + $0x8] sm:$0xff]
    %v62 = vld [vmem:[%s1 + $0x10] sm:$0xff]
    %v63 = vld [vmem:[%s1 + $0x18] sm:$0xff]
    %v64 = vlaneseq
    %v65 = vshrl.u32 %v64, 7
    %v66 = vsub.s32 0, %v65
    %v67 = vrot.slane %v53, %v66
    %vm68 = vcmask 261120
    %v70 = vsel %vm68, %v21, 0
    %v73 = vsel %vm68, %v22, 0
    %v76 = vsel %vm68, %v23, 0
    %v79 = vsel %vm68, %v24, 0
    %v82 = vsel %vm68, %v25, 0
    %v85 = vsel %vm68, %v26, 0
    %v88 = vsel %vm68, %v27, 0
    %v91 = vsel %vm68, %v28, 0
    %v94 = vsel %vm68, %v29, 0
    %v97 = vsel %vm68, %v30, 0
    %v100 = vsel %vm68, %v31, 0
    %v103 = vsel %vm68, %v32, 0
    %v106 = vsel %vm68, %v33, 0
    %v109 = vsel %vm68, %v34, 0
    %v112 = vsel %vm68, %v35, 0
    %v115 = vsel %vm68, %v36, 0
    %v118 = vsel %vm68, %v37, 0
    %v121 = vsel %vm68, %v38, 0
    %v124 = vsel %vm68, %v39, 0
    %v127 = vsel %vm68, %v40, 0
    %v130 = vsel %vm68, %v41, 0
    %v133 = vsel %vm68, %v42, 0
    %v136 = vsel %vm68, %v43, 0
    %v139 = vsel %vm68, %v44, 0
    %v142 = vsel %vm68, %v45, 0
    %v145 = vsel %vm68, %v46, 0
    %v148 = vsel %vm68, %v47, 0
    %v151 = vsel %vm68, %v48, 0
    %v154 = vsel %vm68, %v49, 0
    %v157 = vsel %vm68, %v50, 0
    %v160 = vsel %vm68, %v51, 0
    %v163 = vsel %vm68, %v52, 0
    %165 = vmatprep.subr.mxu0 0.0
    %166 = vmatpush1.msra.mxu0 0.0
    %167 = vmatprep.subr.mxu0 0.0
    %168 = vmatpush1.msra.mxu0 0.0
    %169 = vmatprep.subr.mxu0 0.0
    %170 = vmatpush1.msra.mxu0 0.0
    %171 = vmatprep.subr.mxu0 0.0
    %172 = vmatpush1.msra.mxu0 0.0
    %173 = vmatprep.subr.mxu0 0.0
    %174 = vmatpush1.msra.mxu0 0.0
    %175 = vmatprep.subr.mxu0 0.0
    %176 = vmatpush1.msra.mxu0 0.0
    %177 = vmatprep.subr.mxu0 0.0
    %178 = vmatpush1.msra.mxu0 0.0
    %179 = vmatprep.subr.mxu0 0.0
    %180 = vmatpush1.msra.mxu0 0.0
    %181 = vmatprep.subr.mxu0 0.0
    %182 = vmatpush1.msra.mxu0 0.0
    %183 = vmatprep.subr.mxu0 0.0
    %184 = vmatpush1.msra.mxu0 0.0
    %185 = vmatprep.subr.mxu0 0.0
    %186 = vmatpush1.msra.mxu0 0.0
    %187 = vmatprep.subr.mxu0 0.0
    %188 = vmatpush1.msra.mxu0 0.0
    %189 = vmatprep.subr.mxu0 0.0
    %190 = vmatpush1.msra.mxu0 %v63
    %191 = vmatprep.subr.mxu0 0.0
    %192 = vmatpush1.msra.mxu0 %v62
    %193 = vmatprep.subr.mxu0 0.0
    %194 = vmatpush1.msra.mxu0 %v61
    %195 = vmatprep.subr.mxu0 0.0
    %196 = vmatpush1.msra.mxu0 %v60
    %197 = vmatprep.subr.mxu0 0.0
    %198 = vmatpush2.msra.mxu0 0.0
    %199 = vmatprep.subr.mxu0 0.0
    %200 = vmatpush2.msra.mxu0 0.0
    %201 = vmatprep.subr.mxu0 0.0
    %202 = vmatpush2.msra.mxu0 0.0
    %203 = vmatprep.subr.mxu0 0.0
    %204 = vmatpush2.msra.mxu0 0.0
    %205 = vmatprep.subr.mxu0 0.0
    %206 = vmatpush2.msra.mxu0 0.0
    %207 = vmatprep.subr.mxu0 0.0
    %208 = vmatpush2.msra.mxu0 0.0
    %209 = vmatprep.subr.mxu0 0.0
    %210 = vmatpush2.msra.mxu0 0.0
    %211 = vmatprep.subr.mxu0 0.0
    %212 = vmatpush2.msra.mxu0 0.0
    %213 = vmatprep.subr.mxu0 0.0
    %214 = vmatpush2.msra.mxu0 0.0
    %215 = vmatprep.subr.mxu0 0.0
    %216 = vmatpush2.msra.mxu0 0.0
    %217 = vmatprep.subr.mxu0 0.0
    %218 = vmatpush2.msra.mxu0 0.0
    %219 = vmatprep.subr.mxu0 0.0
    %220 = vmatpush2.msra.mxu0 0.0
    %221 = vmatprep.subr.mxu0 0.0
    %222 = vmatpush2.msra.mxu0 0.0
    %223 = vmatprep.subr.mxu0 0.0
    %224 = vmatpush2.msra.mxu0 0.0
    %225 = vmatprep.subr.mxu0 0.0
    %226 = vmatpush2.msra.mxu0 0.0
    %227 = vmatprep.subr.mxu0 0.0
    %228 = vmatpush2.msra.mxu0 0.0
    %229 = vmatprep.mubr.f32.mxu0 0.0
    %230 = vmatmul.mubr.f32.gmra.mxu0 %v70
    %v231 = vpop.f32.mrf.mxu0
    %v232 = vadd.f32 %v67, %v231
    %v233 = vpop.f32.mrf.mxu0
    %234 = vmatprep.mubr.f32.mxu0 0.0
    %235 = vmatmul.mubr.f32.gmra.mxu0 %v73
    %v236 = vpop.f32.mrf.mxu0
    %v237 = vadd.f32 %v67, %v236
    %v238 = vpop.f32.mrf.mxu0
    %239 = vmatprep.mubr.f32.mxu0 0.0
    %240 = vmatmul.mubr.f32.gmra.mxu0 %v76
    %v241 = vpop.f32.mrf.mxu0
    %v242 = vadd.f32 %v67, %v241
    %v243 = vpop.f32.mrf.mxu0
    %244 = vmatprep.mubr.f32.mxu0 0.0
    %245 = vmatmul.mubr.f32.gmra.mxu0 %v79
    %v246 = vpop.f32.mrf.mxu0
    %v247 = vadd.f32 %v67, %v246
    %v248 = vpop.f32.mrf.mxu0
    %249 = vmatprep.mubr.f32.mxu0 0.0
    %250 = vmatmul.mubr.f32.gmra.mxu0 %v82
    %v251 = vpop.f32.mrf.mxu0
    %v252 = vadd.f32 %v67, %v251
    %v253 = vpop.f32.mrf.mxu0
    %254 = vmatprep.mubr.f32.mxu0 0.0
    %255 = vmatmul.mubr.f32.gmra.mxu0 %v85
    %v256 = vpop.f32.mrf.mxu0
    %v257 = vadd.f32 %v67, %v256
    %v258 = vpop.f32.mrf.mxu0
    %259 = vmatprep.mubr.f32.mxu0 0.0
    %260 = vmatmul.mubr.f32.gmra.mxu0 %v88
    %v261 = vpop.f32.mrf.mxu0
    %v262 = vadd.f32 %v67, %v261
    %v263 = vpop.f32.mrf.mxu0
    %264 = vmatprep.mubr.f32.mxu0 0.0
    %265 = vmatmul.mubr.f32.gmra.mxu0 %v91
    %v266 = vpop.f32.mrf.mxu0
    %v267 = vadd.f32 %v67, %v266
    %v268 = vpop.f32.mrf.mxu0
    %269 = vmatprep.mubr.f32.mxu0 0.0
    %270 = vmatmul.mubr.f32.gmra.mxu0 %v94
    %v271 = vpop.f32.mrf.mxu0
    %v272 = vadd.f32 %v67, %v271
    %v273 = vpop.f32.mrf.mxu0
    %274 = vmatprep.mubr.f32.mxu0 0.0
    %275 = vmatmul.mubr.f32.gmra.mxu0 %v97
    %v276 = vpop.f32.mrf.mxu0
    %v277 = vadd.f32 %v67, %v276
    %v278 = vpop.f32.mrf.mxu0
    %279 = vmatprep.mubr.f32.mxu0 0.0
    %280 = vmatmul.mubr.f32.gmra.mxu0 %v100
    %v281 = vpop.f32.mrf.mxu0
    %v282 = vadd.f32 %v67, %v281
    %v283 = vpop.f32.mrf.mxu0
    %284 = vmatprep.mubr.f32.mxu0 0.0
    %285 = vmatmul.mubr.f32.gmra.mxu0 %v103
    %v286 = vpop.f32.mrf.mxu0
    %v287 = vadd.f32 %v67, %v286
    %v288 = vpop.f32.mrf.mxu0
    %289 = vmatprep.mubr.f32.mxu0 0.0
    %290 = vmatmul.mubr.f32.gmra.mxu0 %v106
    %v291 = vpop.f32.mrf.mxu0
    %v292 = vadd.f32 %v67, %v291
    %v293 = vpop.f32.mrf.mxu0
    %294 = vmatprep.mubr.f32.mxu0 0.0
    %295 = vmatmul.mubr.f32.gmra.mxu0 %v109
    %v296 = vpop.f32.mrf.mxu0
    %v297 = vadd.f32 %v67, %v296
    %v298 = vpop.f32.mrf.mxu0
    %299 = vmatprep.mubr.f32.mxu0 0.0
    %300 = vmatmul.mubr.f32.gmra.mxu0 %v112
    %v301 = vpop.f32.mrf.mxu0
    %v302 = vadd.f32 %v67, %v301
    %v303 = vpop.f32.mrf.mxu0
    %304 = vmatprep.mubr.f32.mxu0 0.0
    %305 = vmatmul.mubr.f32.gmra.mxu0 %v115
    %v306 = vpop.f32.mrf.mxu0
    %v307 = vadd.f32 %v67, %v306
    %v308 = vpop.f32.mrf.mxu0
    %309 = vmatprep.mubr.f32.mxu0 0.0
    %310 = vmatmul.mubr.f32.gmra.mxu0 %v118
    %v311 = vpop.f32.mrf.mxu0
    %v312 = vadd.f32 %v67, %v311
    %v313 = vpop.f32.mrf.mxu0
    %314 = vmatprep.mubr.f32.mxu0 0.0
    %315 = vmatmul.mubr.f32.gmra.mxu0 %v121
    %v316 = vpop.f32.mrf.mxu0
    %v317 = vadd.f32 %v67, %v316
    %v318 = vpop.f32.mrf.mxu0
    %319 = vmatprep.mubr.f32.mxu0 0.0
    %320 = vmatmul.mubr.f32.gmra.mxu0 %v124
    %v321 = vpop.f32.mrf.mxu0
    %v322 = vadd.f32 %v67, %v321
    %v323 = vpop.f32.mrf.mxu0
    %324 = vmatprep.mubr.f32.mxu0 0.0
    %325 = vmatmul.mubr.f32.gmra.mxu0 %v127
    %v326 = vpop.f32.mrf.mxu0
    %v327 = vadd.f32 %v67, %v326
    %v328 = vpop.f32.mrf.mxu0
    %329 = vmatprep.mubr.f32.mxu0 0.0
    %330 = vmatmul.mubr.f32.gmra.mxu0 %v130
    %v331 = vpop.f32.mrf.mxu0
    %v332 = vadd.f32 %v67, %v331
    %v333 = vpop.f32.mrf.mxu0
    %334 = vmatprep.mubr.f32.mxu0 0.0
    %335 = vmatmul.mubr.f32.gmra.mxu0 %v133
    %v336 = vpop.f32.mrf.mxu0
    %v337 = vadd.f32 %v67, %v336
    %v338 = vpop.f32.mrf.mxu0
    %339 = vmatprep.mubr.f32.mxu0 0.0
    %340 = vmatmul.mubr.f32.gmra.mxu0 %v136
    %v341 = vpop.f32.mrf.mxu0
    %v342 = vadd.f32 %v67, %v341
    %v343 = vpop.f32.mrf.mxu0
    %344 = vmatprep.mubr.f32.mxu0 0.0
    %345 = vmatmul.mubr.f32.gmra.mxu0 %v139
    %v346 = vpop.f32.mrf.mxu0
    %v347 = vadd.f32 %v67, %v346
    %v348 = vpop.f32.mrf.mxu0
    %349 = vmatprep.mubr.f32.mxu0 0.0
    %350 = vmatmul.mubr.f32.gmra.mxu0 %v142
    %v351 = vpop.f32.mrf.mxu0
    %v352 = vadd.f32 %v67, %v351
    %v353 = vpop.f32.mrf.mxu0
    %354 = vmatprep.mubr.f32.mxu0 0.0
    %355 = vmatmul.mubr.f32.gmra.mxu0 %v145
    %v356 = vpop.f32.mrf.mxu0
    %v357 = vadd.f32 %v67, %v356
    %v358 = vpop.f32.mrf.mxu0
    %359 = vmatprep.mubr.f32.mxu0 0.0
    %360 = vmatmul.mubr.f32.gmra.mxu0 %v148
    %v361 = vpop.f32.mrf.mxu0
    %v362 = vadd.f32 %v67, %v361
    %v363 = vpop.f32.mrf.mxu0
    %364 = vmatprep.mubr.f32.mxu0 0.0
    %365 = vmatmul.mubr.f32.gmra.mxu0 %v151
    %v366 = vpop.f32.mrf.mxu0
    %v367 = vadd.f32 %v67, %v366
    %v368 = vpop.f32.mrf.mxu0
    %369 = vmatprep.mubr.f32.mxu0 0.0
    %370 = vmatmul.mubr.f32.gmra.mxu0 %v154
    %v371 = vpop.f32.mrf.mxu0
    %v372 = vadd.f32 %v67, %v371
    %v373 = vpop.f32.mrf.mxu0
    %374 = vmatprep.mubr.f32.mxu0 0.0
    %375 = vmatmul.mubr.f32.gmra.mxu0 %v157
    %v376 = vpop.f32.mrf.mxu0
    %v377 = vadd.f32 %v67, %v376
    %v378 = vpop.f32.mrf.mxu0
    %379 = vmatprep.mubr.f32.mxu0 0.0
    %380 = vmatmul.mubr.f32.gmra.mxu0 %v160
    %v381 = vpop.f32.mrf.mxu0
    %v382 = vadd.f32 %v67, %v381
    %v383 = vpop.f32.mrf.mxu0
    %384 = vmatprep.mubr.f32.mxu0 0.0
    %385 = vmatmul.mubr.f32.gmra.mxu0 %v163
    %v386 = vpop.f32.mrf.mxu0
    %v387 = vadd.f32 %v67, %v386
    %v388 = vpop.f32.mrf.mxu0
    %389 = vdwg.mxu0
    %v390 = vtanh.pop %v232
    %v391 = vtanh.pop %v237
    %v392 = vtanh.pop %v242
    %v393 = vtanh.pop %v247
    %v394 = vtanh.pop %v252
    %v395 = vtanh.pop %v257
    %v396 = vtanh.pop %v262
    %v397 = vtanh.pop %v267
    %v398 = vtanh.pop %v272
    %v399 = vtanh.pop %v277
    %v400 = vtanh.pop %v282
    %v401 = vtanh.pop %v287
    %v402 = vtanh.pop %v292
    %v403 = vtanh.pop %v297
    %v404 = vtanh.pop %v302
    %v405 = vtanh.pop %v307
    %v406 = vtanh.pop %v312
    %v407 = vtanh.pop %v317
    %v408 = vtanh.pop %v322
    %v409 = vtanh.pop %v327
    %v410 = vtanh.pop %v332
    %v411 = vtanh.pop %v337
    %v412 = vtanh.pop %v342
    %v413 = vtanh.pop %v347
    %v414 = vtanh.pop %v352
    %v415 = vtanh.pop %v357
    %v416 = vtanh.pop %v362
    %v417 = vtanh.pop %v367
    %v418 = vtanh.pop %v372
    %v419 = vtanh.pop %v377
    %v420 = vtanh.pop %v382
    %v421 = vtanh.pop %v387
    %v422 = vsel %vm59, %v232, 0.0
    %v423 = vsel %vm59, %v237, 0.0
    %v424 = vsel %vm59, %v242, 0.0
    %v425 = vsel %vm59, %v247, 0.0
    %v426 = vsel %vm59, %v252, 0.0
    %v427 = vsel %vm59, %v257, 0.0
    %v428 = vsel %vm59, %v262, 0.0
    %v429 = vsel %vm59, %v267, 0.0
    %v430 = vsel %vm59, %v272, 0.0
    %v431 = vsel %vm59, %v277, 0.0
    %v432 = vsel %vm59, %v282, 0.0
    %v433 = vsel %vm59, %v287, 0.0
    %v434 = vsel %vm59, %v292, 0.0
    %v435 = vsel %vm59, %v297, 0.0
    %v436 = vsel %vm59, %v302, 0.0
    %v437 = vsel %vm59, %v307, 0.0
    %v438 = vsel %vm59, %v312, 0.0
    %v439 = vsel %vm59, %v317, 0.0
    %v440 = vsel %vm59, %v322, 0.0
    %v441 = vsel %vm59, %v327, 0.0
    %v442 = vsel %vm59, %v332, 0.0
    %v443 = vsel %vm59, %v337, 0.0
    %v444 = vsel %vm59, %v342, 0.0
    %v445 = vsel %vm59, %v347, 0.0
    %v446 = vsel %vm59, %v352, 0.0
    %v447 = vsel %vm59, %v357, 0.0
    %v448 = vsel %vm59, %v362, 0.0
    %v449 = vsel %vm59, %v367, 0.0
    %v450 = vsel %vm59, %v372, 0.0
    %v451 = vsel %vm59, %v377, 0.0
    %v452 = vsel %vm59, %v382, 0.0
    %v453 = vsel %vm59, %v387, 0.0
    %454 = vadd.xlane.f32.xlu0 %v422
    %v455 = vpop.xlane.xlu0 %454
    %456 = vadd.xlane.f32.xlu0 %v423
    %v457 = vpop.xlane.xlu0 %456
    %458 = vadd.xlane.f32.xlu0 %v424
    %v459 = vpop.xlane.xlu0 %458
    %460 = vadd.xlane.f32.xlu0 %v425
    %v461 = vpop.xlane.xlu0 %460
    %462 = vadd.xlane.f32.xlu0 %v426
    %v463 = vpop.xlane.xlu0 %462
    %464 = vadd.xlane.f32.xlu0 %v427
    %v465 = vpop.xlane.xlu0 %464
    %466 = vadd.xlane.f32.xlu0 %v428
    %v467 = vpop.xlane.xlu0 %466
    %468 = vadd.xlane.f32.xlu0 %v429
    %v469 = vpop.xlane.xlu0 %468
    %470 = vadd.xlane.f32.xlu0 %v430
    %v471 = vpop.xlane.xlu0 %470
    %472 = vadd.xlane.f32.xlu0 %v431
    %v473 = vpop.xlane.xlu0 %472
    %474 = vadd.xlane.f32.xlu0 %v432
    %v475 = vpop.xlane.xlu0 %474
    %476 = vadd.xlane.f32.xlu0 %v433
    %v477 = vpop.xlane.xlu0 %476
    %478 = vadd.xlane.f32.xlu0 %v434
    %v479 = vpop.xlane.xlu0 %478
    %480 = vadd.xlane.f32.xlu0 %v435
    %v481 = vpop.xlane.xlu0 %480
    %482 = vadd.xlane.f32.xlu0 %v436
    %v483 = vpop.xlane.xlu0 %482
    %484 = vadd.xlane.f32.xlu0 %v437
    %v485 = vpop.xlane.xlu0 %484
    %486 = vadd.xlane.f32.xlu0 %v438
    %v487 = vpop.xlane.xlu0 %486
    %488 = vadd.xlane.f32.xlu0 %v439
    %v489 = vpop.xlane.xlu0 %488
    %490 = vadd.xlane.f32.xlu0 %v440
    %v491 = vpop.xlane.xlu0 %490
    %492 = vadd.xlane.f32.xlu0 %v441
    %v493 = vpop.xlane.xlu0 %492
    %494 = vadd.xlane.f32.xlu0 %v442
    %v495 = vpop.xlane.xlu0 %494
    %496 = vadd.xlane.f32.xlu0 %v443
    %v497 = vpop.xlane.xlu0 %496
    %498 = vadd.xlane.f32.xlu0 %v444
    %v499 = vpop.xlane.xlu0 %498
    %500 = vadd.xlane.f32.xlu0 %v445
    %v501 = vpop.xlane.xlu0 %500
    %502 = vadd.xlane.f32.xlu0 %v446
    %v503 = vpop.xlane.xlu0 %502
    %504 = vadd.xlane.f32.xlu0 %v447
    %v505 = vpop.xlane.xlu0 %504
    %506 = vadd.xlane.f32.xlu0 %v448
    %v507 = vpop.xlane.xlu0 %506
    %508 = vadd.xlane.f32.xlu0 %v449
    %v509 = vpop.xlane.xlu0 %508
    %510 = vadd.xlane.f32.xlu0 %v450
    %v511 = vpop.xlane.xlu0 %510
    %512 = vadd.xlane.f32.xlu0 %v451
    %v513 = vpop.xlane.xlu0 %512
    %514 = vadd.xlane.f32.xlu0 %v452
    %v515 = vpop.xlane.xlu0 %514
    %516 = vadd.xlane.f32.xlu0 %v453
    %v517 = vpop.xlane.xlu0 %516
    %v518 = vmul.f32 %v455, 0.015625
    %v519 = vmul.f32 %v457, 0.015625
    %v520 = vmul.f32 %v459, 0.015625
    %v521 = vmul.f32 %v461, 0.015625
    %v522 = vmul.f32 %v463, 0.015625
    %v523 = vmul.f32 %v465, 0.015625
    %v524 = vmul.f32 %v467, 0.015625
    %v525 = vmul.f32 %v469, 0.015625
    %v526 = vmul.f32 %v471, 0.015625
    %v527 = vmul.f32 %v473, 0.015625
    %v528 = vmul.f32 %v475, 0.015625
    %v529 = vmul.f32 %v477, 0.015625
    %v530 = vmul.f32 %v479, 0.015625
    %v531 = vmul.f32 %v481, 0.015625
    %v532 = vmul.f32 %v483, 0.015625
    %v533 = vmul.f32 %v485, 0.015625
    %v534 = vmul.f32 %v487, 0.015625
    %v535 = vmul.f32 %v489, 0.015625
    %v536 = vmul.f32 %v491, 0.015625
    %v537 = vmul.f32 %v493, 0.015625
    %v538 = vmul.f32 %v495, 0.015625
    %v539 = vmul.f32 %v497, 0.015625
    %v540 = vmul.f32 %v499, 0.015625
    %v541 = vmul.f32 %v501, 0.015625
    %v542 = vmul.f32 %v503, 0.015625
    %v543 = vmul.f32 %v505, 0.015625
    %v544 = vmul.f32 %v507, 0.015625
    %v545 = vmul.f32 %v509, 0.015625
    %v546 = vmul.f32 %v511, 0.015625
    %v547 = vmul.f32 %v513, 0.015625
    %v548 = vmul.f32 %v515, 0.015625
    %v549 = vmul.f32 %v517, 0.015625
    %v550 = vmul.f32 %v422, %v422
    %v551 = vmul.f32 %v423, %v423
    %v552 = vmul.f32 %v424, %v424
    %v553 = vmul.f32 %v425, %v425
    %v554 = vmul.f32 %v426, %v426
    %v555 = vmul.f32 %v427, %v427
    %v556 = vmul.f32 %v428, %v428
    %v557 = vmul.f32 %v429, %v429
    %v558 = vmul.f32 %v430, %v430
    %v559 = vmul.f32 %v431, %v431
    %v560 = vmul.f32 %v432, %v432
    %v561 = vmul.f32 %v433, %v433
    %v562 = vmul.f32 %v434, %v434
    %v563 = vmul.f32 %v435, %v435
    %v564 = vmul.f32 %v436, %v436
    %v565 = vmul.f32 %v437, %v437
    %v566 = vmul.f32 %v438, %v438
    %v567 = vmul.f32 %v439, %v439
    %v568 = vmul.f32 %v440, %v440
    %v569 = vmul.f32 %v441, %v441
    %v570 = vmul.f32 %v442, %v442
    %v571 = vmul.f32 %v443, %v443
    %v572 = vmul.f32 %v444, %v444
    %v573 = vmul.f32 %v445, %v445
    %v574 = vmul.f32 %v446, %v446
    %v575 = vmul.f32 %v447, %v447
    %v576 = vmul.f32 %v448, %v448
    %v577 = vmul.f32 %v449, %v449
    %v578 = vmul.f32 %v450, %v450
    %v579 = vmul.f32 %v451, %v451
    %v580 = vmul.f32 %v452, %v452
    %v581 = vmul.f32 %v453, %v453
    %582 = vadd.xlane.f32.xlu0 %v550
    %v583 = vpop.xlane.xlu0 %582
    %584 = vadd.xlane.f32.xlu0 %v551
    %v585 = vpop.xlane.xlu0 %584
    %586 = vadd.xlane.f32.xlu0 %v552
    %v587 = vpop.xlane.xlu0 %586
    %588 = vadd.xlane.f32.xlu0 %v553
    %v589 = vpop.xlane.xlu0 %588
    %590 = vadd.xlane.f32.xlu0 %v554
    %v591 = vpop.xlane.xlu0 %590
    %592 = vadd.xlane.f32.xlu0 %v555
    %v593 = vpop.xlane.xlu0 %592
    %594 = vadd.xlane.f32.xlu0 %v556
    %v595 = vpop.xlane.xlu0 %594
    %596 = vadd.xlane.f32.xlu0 %v557
    %v597 = vpop.xlane.xlu0 %596
    %598 = vadd.xlane.f32.xlu0 %v558
    %v599 = vpop.xlane.xlu0 %598
    %600 = vadd.xlane.f32.xlu0 %v559
    %v601 = vpop.xlane.xlu0 %600
    %602 = vadd.xlane.f32.xlu0 %v560
    %v603 = vpop.xlane.xlu0 %602
    %604 = vadd.xlane.f32.xlu0 %v561
    %v605 = vpop.xlane.xlu0 %604
    %606 = vadd.xlane.f32.xlu0 %v562
    %v607 = vpop.xlane.xlu0 %606
    %608 = vadd.xlane.f32.xlu0 %v563
    %v609 = vpop.xlane.xlu0 %608
    %610 = vadd.xlane.f32.xlu0 %v564
    %v611 = vpop.xlane.xlu0 %610
    %612 = vadd.xlane.f32.xlu0 %v565
    %v613 = vpop.xlane.xlu0 %612
    %614 = vadd.xlane.f32.xlu0 %v566
    %v615 = vpop.xlane.xlu0 %614
    %616 = vadd.xlane.f32.xlu0 %v567
    %v617 = vpop.xlane.xlu0 %616
    %618 = vadd.xlane.f32.xlu0 %v568
    %v619 = vpop.xlane.xlu0 %618
    %620 = vadd.xlane.f32.xlu0 %v569
    %v621 = vpop.xlane.xlu0 %620
    %622 = vadd.xlane.f32.xlu0 %v570
    %v623 = vpop.xlane.xlu0 %622
    %624 = vadd.xlane.f32.xlu0 %v571
    %v625 = vpop.xlane.xlu0 %624
    %626 = vadd.xlane.f32.xlu0 %v572
    %v627 = vpop.xlane.xlu0 %626
    %628 = vadd.xlane.f32.xlu0 %v573
    %v629 = vpop.xlane.xlu0 %628
    %630 = vadd.xlane.f32.xlu0 %v574
    %v631 = vpop.xlane.xlu0 %630
    %632 = vadd.xlane.f32.xlu0 %v575
    %v633 = vpop.xlane.xlu0 %632
    %634 = vadd.xlane.f32.xlu0 %v576
    %v635 = vpop.xlane.xlu0 %634
    %636 = vadd.xlane.f32.xlu0 %v577
    %v637 = vpop.xlane.xlu0 %636
    %638 = vadd.xlane.f32.xlu0 %v578
    %v639 = vpop.xlane.xlu0 %638
    %640 = vadd.xlane.f32.xlu0 %v579
    %v641 = vpop.xlane.xlu0 %640
    %642 = vadd.xlane.f32.xlu0 %v580
    %v643 = vpop.xlane.xlu0 %642
    %644 = vadd.xlane.f32.xlu0 %v581
    %v645 = vpop.xlane.xlu0 %644
    %v646 = vmul.f32 %v583, 0.015625
    %v647 = vmul.f32 %v585, 0.015625
    %v648 = vmul.f32 %v587, 0.015625
    %v649 = vmul.f32 %v589, 0.015625
    %v650 = vmul.f32 %v591, 0.015625
    %v651 = vmul.f32 %v593, 0.015625
    %v652 = vmul.f32 %v595, 0.015625
    %v653 = vmul.f32 %v597, 0.015625
    %v654 = vmul.f32 %v599, 0.015625
    %v655 = vmul.f32 %v601, 0.015625
    %v656 = vmul.f32 %v603, 0.015625
    %v657 = vmul.f32 %v605, 0.015625
    %v658 = vmul.f32 %v607, 0.015625
    %v659 = vmul.f32 %v609, 0.015625
    %v660 = vmul.f32 %v611, 0.015625
    %v661 = vmul.f32 %v613, 0.015625
    %v662 = vmul.f32 %v615, 0.015625
    %v663 = vmul.f32 %v617, 0.015625
    %v664 = vmul.f32 %v619, 0.015625
    %v665 = vmul.f32 %v621, 0.015625
    %v666 = vmul.f32 %v623, 0.015625
    %v667 = vmul.f32 %v625, 0.015625
    %v668 = vmul.f32 %v627, 0.015625
    %v669 = vmul.f32 %v629, 0.015625
    %v670 = vmul.f32 %v631, 0.015625
    %v671 = vmul.f32 %v633, 0.015625
    %v672 = vmul.f32 %v635, 0.015625
    %v673 = vmul.f32 %v637, 0.015625
    %v674 = vmul.f32 %v639, 0.015625
    %v675 = vmul.f32 %v641, 0.015625
    %v676 = vmul.f32 %v643, 0.015625
    %v677 = vmul.f32 %v645, 0.015625
    %v678 = vmul.f32 %v518, %v518
    %v679 = vmul.f32 %v519, %v519
    %v680 = vmul.f32 %v520, %v520
    %v681 = vmul.f32 %v521, %v521
    %v682 = vmul.f32 %v522, %v522
    %v683 = vmul.f32 %v523, %v523
    %v684 = vmul.f32 %v524, %v524
    %v685 = vmul.f32 %v525, %v525
    %v686 = vmul.f32 %v526, %v526
    %v687 = vmul.f32 %v527, %v527
    %v688 = vmul.f32 %v528, %v528
    %v689 = vmul.f32 %v529, %v529
    %v690 = vmul.f32 %v530, %v530
    %v691 = vmul.f32 %v531, %v531
    %v692 = vmul.f32 %v532, %v532
    %v693 = vmul.f32 %v533, %v533
    %v694 = vmul.f32 %v534, %v534
    %v695 = vmul.f32 %v535, %v535
    %v696 = vmul.f32 %v536, %v536
    %v697 = vmul.f32 %v537, %v537
    %v698 = vmul.f32 %v538, %v538
    %v699 = vmul.f32 %v539, %v539
    %v700 = vmul.f32 %v540, %v540
    %v701 = vmul.f32 %v541, %v541
    %v702 = vmul.f32 %v542, %v542
    %v703 = vmul.f32 %v543, %v543
    %v704 = vmul.f32 %v544, %v544
    %v705 = vmul.f32 %v545, %v545
    %v706 = vmul.f32 %v546, %v546
    %v707 = vmul.f32 %v547, %v547
    %v708 = vmul.f32 %v548, %v548
    %v709 = vmul.f32 %v549, %v549
    %v710 = vsub.f32 %v646, %v678
    %v711 = vsub.f32 %v647, %v679
    %v712 = vsub.f32 %v648, %v680
    %v713 = vsub.f32 %v649, %v681
    %v714 = vsub.f32 %v650, %v682
    %v715 = vsub.f32 %v651, %v683
    %v716 = vsub.f32 %v652, %v684
    %v717 = vsub.f32 %v653, %v685
    %v718 = vsub.f32 %v654, %v686
    %v719 = vsub.f32 %v655, %v687
    %v720 = vsub.f32 %v656, %v688
    %v721 = vsub.f32 %v657, %v689
    %v722 = vsub.f32 %v658, %v690
    %v723 = vsub.f32 %v659, %v691
    %v724 = vsub.f32 %v660, %v692
    %v725 = vsub.f32 %v661, %v693
    %v726 = vsub.f32 %v662, %v694
    %v727 = vsub.f32 %v663, %v695
    %v728 = vsub.f32 %v664, %v696
    %v729 = vsub.f32 %v665, %v697
    %v730 = vsub.f32 %v666, %v698
    %v731 = vsub.f32 %v667, %v699
    %v732 = vsub.f32 %v668, %v700
    %v733 = vsub.f32 %v669, %v701
    %v734 = vsub.f32 %v670, %v702
    %v735 = vsub.f32 %v671, %v703
    %v736 = vsub.f32 %v672, %v704
    %v737 = vsub.f32 %v673, %v705
    %v738 = vsub.f32 %v674, %v706
    %v739 = vsub.f32 %v675, %v707
    %v740 = vsub.f32 %v676, %v708
    %v741 = vsub.f32 %v677, %v709
    %v742 = vmax.f32 %v710, 0.0
    %v743 = vmax.f32 %v711, 0.0
    %v744 = vmax.f32 %v712, 0.0
    %v745 = vmax.f32 %v713, 0.0
    %v746 = vmax.f32 %v714, 0.0
    %v747 = vmax.f32 %v715, 0.0
    %v748 = vmax.f32 %v716, 0.0
    %v749 = vmax.f32 %v717, 0.0
    %v750 = vmax.f32 %v718, 0.0
    %v751 = vmax.f32 %v719, 0.0
    %v752 = vmax.f32 %v720, 0.0
    %v753 = vmax.f32 %v721, 0.0
    %v754 = vmax.f32 %v722, 0.0
    %v755 = vmax.f32 %v723, 0.0
    %v756 = vmax.f32 %v724, 0.0
    %v757 = vmax.f32 %v725, 0.0
    %v758 = vmax.f32 %v726, 0.0
    %v759 = vmax.f32 %v727, 0.0
    %v760 = vmax.f32 %v728, 0.0
    %v761 = vmax.f32 %v729, 0.0
    %v762 = vmax.f32 %v730, 0.0
    %v763 = vmax.f32 %v731, 0.0
    %v764 = vmax.f32 %v732, 0.0
    %v765 = vmax.f32 %v733, 0.0
    %v766 = vmax.f32 %v734, 0.0
    %v767 = vmax.f32 %v735, 0.0
    %v768 = vmax.f32 %v736, 0.0
    %v769 = vmax.f32 %v737, 0.0
    %v770 = vmax.f32 %v738, 0.0
    %v771 = vmax.f32 %v739, 0.0
    %v772 = vmax.f32 %v740, 0.0
    %v773 = vmax.f32 %v741, 0.0
    %v774 = vsub.f32 %v232, %v518
    %v775 = vsub.f32 %v237, %v519
    %v776 = vsub.f32 %v242, %v520
    %v777 = vsub.f32 %v247, %v521
    %v778 = vsub.f32 %v252, %v522
    %v779 = vsub.f32 %v257, %v523
    %v780 = vsub.f32 %v262, %v524
    %v781 = vsub.f32 %v267, %v525
    %v782 = vsub.f32 %v272, %v526
    %v783 = vsub.f32 %v277, %v527
    %v784 = vsub.f32 %v282, %v528
    %v785 = vsub.f32 %v287, %v529
    %v786 = vsub.f32 %v292, %v530
    %v787 = vsub.f32 %v297, %v531
    %v788 = vsub.f32 %v302, %v532
    %v789 = vsub.f32 %v307, %v533
    %v790 = vsub.f32 %v312, %v534
    %v791 = vsub.f32 %v317, %v535
    %v792 = vsub.f32 %v322, %v536
    %v793 = vsub.f32 %v327, %v537
    %v794 = vsub.f32 %v332, %v538
    %v795 = vsub.f32 %v337, %v539
    %v796 = vsub.f32 %v342, %v540
    %v797 = vsub.f32 %v347, %v541
    %v798 = vsub.f32 %v352, %v542
    %v799 = vsub.f32 %v357, %v543
    %v800 = vsub.f32 %v362, %v544
    %v801 = vsub.f32 %v367, %v545
    %v802 = vsub.f32 %v372, %v546
    %v803 = vsub.f32 %v377, %v547
    %v804 = vsub.f32 %v382, %v548
    %v805 = vsub.f32 %v387, %v549
    %v806 = vadd.f32 %v742, 1e-05
    %v807 = vadd.f32 %v743, 1e-05
    %v808 = vadd.f32 %v744, 1e-05
    %v809 = vadd.f32 %v745, 1e-05
    %v810 = vadd.f32 %v746, 1e-05
    %v811 = vadd.f32 %v747, 1e-05
    %v812 = vadd.f32 %v748, 1e-05
    %v813 = vadd.f32 %v749, 1e-05
    %v814 = vadd.f32 %v750, 1e-05
    %v815 = vadd.f32 %v751, 1e-05
    %v816 = vadd.f32 %v752, 1e-05
    %v817 = vadd.f32 %v753, 1e-05
    %v818 = vadd.f32 %v754, 1e-05
    %v819 = vadd.f32 %v755, 1e-05
    %v820 = vadd.f32 %v756, 1e-05
    %v821 = vadd.f32 %v757, 1e-05
    %v822 = vadd.f32 %v758, 1e-05
    %v823 = vadd.f32 %v759, 1e-05
    %v824 = vadd.f32 %v760, 1e-05
    %v825 = vadd.f32 %v761, 1e-05
    %v826 = vadd.f32 %v762, 1e-05
    %v827 = vadd.f32 %v763, 1e-05
    %v828 = vadd.f32 %v764, 1e-05
    %v829 = vadd.f32 %v765, 1e-05
    %v830 = vadd.f32 %v766, 1e-05
    %v831 = vadd.f32 %v767, 1e-05
    %v832 = vadd.f32 %v768, 1e-05
    %v833 = vadd.f32 %v769, 1e-05
    %v834 = vadd.f32 %v770, 1e-05
    %v835 = vadd.f32 %v771, 1e-05
    %v836 = vadd.f32 %v772, 1e-05
    %v837 = vadd.f32 %v773, 1e-05
    %v838 = vrsqrt.pop %v806
    %v839 = vrsqrt.pop %v807
    %v840 = vrsqrt.pop %v808
    %v841 = vrsqrt.pop %v809
    %v842 = vrsqrt.pop %v810
    %v843 = vrsqrt.pop %v811
    %v844 = vrsqrt.pop %v812
    %v845 = vrsqrt.pop %v813
    %v846 = vrsqrt.pop %v814
    %v847 = vrsqrt.pop %v815
    %v848 = vrsqrt.pop %v816
    %v849 = vrsqrt.pop %v817
    %v850 = vrsqrt.pop %v818
    %v851 = vrsqrt.pop %v819
    %v852 = vrsqrt.pop %v820
    %v853 = vrsqrt.pop %v821
    %v854 = vrsqrt.pop %v822
    %v855 = vrsqrt.pop %v823
    %v856 = vrsqrt.pop %v824
    %v857 = vrsqrt.pop %v825
    %v858 = vrsqrt.pop %v826
    %v859 = vrsqrt.pop %v827
    %v860 = vrsqrt.pop %v828
    %v861 = vrsqrt.pop %v829
    %v862 = vrsqrt.pop %v830
    %v863 = vrsqrt.pop %v831
    %v864 = vrsqrt.pop %v832
    %v865 = vrsqrt.pop %v833
    %v866 = vrsqrt.pop %v834
    %v867 = vrsqrt.pop %v835
    %v868 = vrsqrt.pop %v836
    %v869 = vrsqrt.pop %v837
    %v870 = vmul.f32 %v774, %v838
    %v871 = vmul.f32 %v775, %v839
    %v872 = vmul.f32 %v776, %v840
    %v873 = vmul.f32 %v777, %v841
    %v874 = vmul.f32 %v778, %v842
    %v875 = vmul.f32 %v779, %v843
    %v876 = vmul.f32 %v780, %v844
    %v877 = vmul.f32 %v781, %v845
    %v878 = vmul.f32 %v782, %v846
    %v879 = vmul.f32 %v783, %v847
    %v880 = vmul.f32 %v784, %v848
    %v881 = vmul.f32 %v785, %v849
    %v882 = vmul.f32 %v786, %v850
    %v883 = vmul.f32 %v787, %v851
    %v884 = vmul.f32 %v788, %v852
    %v885 = vmul.f32 %v789, %v853
    %v886 = vmul.f32 %v790, %v854
    %v887 = vmul.f32 %v791, %v855
    %v888 = vmul.f32 %v792, %v856
    %v889 = vmul.f32 %v793, %v857
    %v890 = vmul.f32 %v794, %v858
    %v891 = vmul.f32 %v795, %v859
    %v892 = vmul.f32 %v796, %v860
    %v893 = vmul.f32 %v797, %v861
    %v894 = vmul.f32 %v798, %v862
    %v895 = vmul.f32 %v799, %v863
    %v896 = vmul.f32 %v800, %v864
    %v897 = vmul.f32 %v801, %v865
    %v898 = vmul.f32 %v802, %v866
    %v899 = vmul.f32 %v803, %v867
    %v900 = vmul.f32 %v804, %v868
    %v901 = vmul.f32 %v805, %v869
    %v902 = vlaneseq
    %v903 = vshrl.u32 %v902, 7
    %v904 = vsub.s32 3, %v903
    %v905 = vrot.slane %v53, %v904
    %v906 = vmul.f32 %v870, %v905
    %v907 = vmul.f32 %v871, %v905
    %v908 = vmul.f32 %v872, %v905
    %v909 = vmul.f32 %v873, %v905
    %v910 = vmul.f32 %v874, %v905
    %v911 = vmul.f32 %v875, %v905
    %v912 = vmul.f32 %v876, %v905
    %v913 = vmul.f32 %v877, %v905
    %v914 = vmul.f32 %v878, %v905
    %v915 = vmul.f32 %v879, %v905
    %v916 = vmul.f32 %v880, %v905
    %v917 = vmul.f32 %v881, %v905
    %v918 = vmul.f32 %v882, %v905
    %v919 = vmul.f32 %v883, %v905
    %v920 = vmul.f32 %v884, %v905
    %v921 = vmul.f32 %v885, %v905
    %v922 = vmul.f32 %v886, %v905
    %v923 = vmul.f32 %v887, %v905
    %v924 = vmul.f32 %v888, %v905
    %v925 = vmul.f32 %v889, %v905
    %v926 = vmul.f32 %v890, %v905
    %v927 = vmul.f32 %v891, %v905
    %v928 = vmul.f32 %v892, %v905
    %v929 = vmul.f32 %v893, %v905
    %v930 = vmul.f32 %v894, %v905
    %v931 = vmul.f32 %v895, %v905
    %v932 = vmul.f32 %v896, %v905
    %v933 = vmul.f32 %v897, %v905
    %v934 = vmul.f32 %v898, %v905
    %v935 = vmul.f32 %v899, %v905
    %v936 = vmul.f32 %v900, %v905
    %v937 = vmul.f32 %v901, %v905
    %v938 = vlaneseq
    %v939 = vshrl.u32 %v938, 7
    %v940 = vsub.s32 4, %v939
    %v941 = vrot.slane %v53, %v940
    %v942 = vadd.f32 %v906, %v941
    %v943 = vadd.f32 %v907, %v941
    %v944 = vadd.f32 %v908, %v941
    %v945 = vadd.f32 %v909, %v941
    %v946 = vadd.f32 %v910, %v941
    %v947 = vadd.f32 %v911, %v941
    %v948 = vadd.f32 %v912, %v941
    %v949 = vadd.f32 %v913, %v941
    %v950 = vadd.f32 %v914, %v941
    %v951 = vadd.f32 %v915, %v941
    %v952 = vadd.f32 %v916, %v941
    %v953 = vadd.f32 %v917, %v941
    %v954 = vadd.f32 %v918, %v941
    %v955 = vadd.f32 %v919, %v941
    %v956 = vadd.f32 %v920, %v941
    %v957 = vadd.f32 %v921, %v941
    %v958 = vadd.f32 %v922, %v941
    %v959 = vadd.f32 %v923, %v941
    %v960 = vadd.f32 %v924, %v941
    %v961 = vadd.f32 %v925, %v941
    %v962 = vadd.f32 %v926, %v941
    %v963 = vadd.f32 %v927, %v941
    %v964 = vadd.f32 %v928, %v941
    %v965 = vadd.f32 %v929, %v941
    %v966 = vadd.f32 %v930, %v941
    %v967 = vadd.f32 %v931, %v941
    %v968 = vadd.f32 %v932, %v941
    %v969 = vadd.f32 %v933, %v941
    %v970 = vadd.f32 %v934, %v941
    %v971 = vadd.f32 %v935, %v941
    %v972 = vadd.f32 %v936, %v941
    %v973 = vadd.f32 %v937, %v941
    %vm974 = vcmp.ge.f32.partialorder %v942, 0.0
    %vm975 = vcmp.ge.f32.partialorder %v943, 0.0
    %vm976 = vcmp.ge.f32.partialorder %v944, 0.0
    %vm977 = vcmp.ge.f32.partialorder %v945, 0.0
    %vm978 = vcmp.ge.f32.partialorder %v946, 0.0
    %vm979 = vcmp.ge.f32.partialorder %v947, 0.0
    %vm980 = vcmp.ge.f32.partialorder %v948, 0.0
    %vm981 = vcmp.ge.f32.partialorder %v949, 0.0
    %vm982 = vcmp.ge.f32.partialorder %v950, 0.0
    %vm983 = vcmp.ge.f32.partialorder %v951, 0.0
    %vm984 = vcmp.ge.f32.partialorder %v952, 0.0
    %vm985 = vcmp.ge.f32.partialorder %v953, 0.0
    %vm986 = vcmp.ge.f32.partialorder %v954, 0.0
    %vm987 = vcmp.ge.f32.partialorder %v955, 0.0
    %vm988 = vcmp.ge.f32.partialorder %v956, 0.0
    %vm989 = vcmp.ge.f32.partialorder %v957, 0.0
    %vm990 = vcmp.ge.f32.partialorder %v958, 0.0
    %vm991 = vcmp.ge.f32.partialorder %v959, 0.0
    %vm992 = vcmp.ge.f32.partialorder %v960, 0.0
    %vm993 = vcmp.ge.f32.partialorder %v961, 0.0
    %vm994 = vcmp.ge.f32.partialorder %v962, 0.0
    %vm995 = vcmp.ge.f32.partialorder %v963, 0.0
    %vm996 = vcmp.ge.f32.partialorder %v964, 0.0
    %vm997 = vcmp.ge.f32.partialorder %v965, 0.0
    %vm998 = vcmp.ge.f32.partialorder %v966, 0.0
    %vm999 = vcmp.ge.f32.partialorder %v967, 0.0
    %vm1000 = vcmp.ge.f32.partialorder %v968, 0.0
    %vm1001 = vcmp.ge.f32.partialorder %v969, 0.0
    %vm1002 = vcmp.ge.f32.partialorder %v970, 0.0
    %vm1003 = vcmp.ge.f32.partialorder %v971, 0.0
    %vm1004 = vcmp.ge.f32.partialorder %v972, 0.0
    %vm1005 = vcmp.ge.f32.partialorder %v973, 0.0
    %v1006 = vmul.f32 %v942, 0.2
    %v1007 = vmul.f32 %v943, 0.2
    %v1008 = vmul.f32 %v944, 0.2
    %v1009 = vmul.f32 %v945, 0.2
    %v1010 = vmul.f32 %v946, 0.2
    %v1011 = vmul.f32 %v947, 0.2
    %v1012 = vmul.f32 %v948, 0.2
    %v1013 = vmul.f32 %v949, 0.2
    %v1014 = vmul.f32 %v950, 0.2
    %v1015 = vmul.f32 %v951, 0.2
    %v1016 = vmul.f32 %v952, 0.2
    %v1017 = vmul.f32 %v953, 0.2
    %v1018 = vmul.f32 %v954, 0.2
    %v1019 = vmul.f32 %v955, 0.2
    %v1020 = vmul.f32 %v956, 0.2
    %v1021 = vmul.f32 %v957, 0.2
    %v1022 = vmul.f32 %v958, 0.2
    %v1023 = vmul.f32 %v959, 0.2
    %v1024 = vmul.f32 %v960, 0.2
    %v1025 = vmul.f32 %v961, 0.2
    %v1026 = vmul.f32 %v962, 0.2
    %v1027 = vmul.f32 %v963, 0.2
    %v1028 = vmul.f32 %v964, 0.2
    %v1029 = vmul.f32 %v965, 0.2
    %v1030 = vmul.f32 %v966, 0.2
    %v1031 = vmul.f32 %v967, 0.2
    %v1032 = vmul.f32 %v968, 0.2
    %v1033 = vmul.f32 %v969, 0.2
    %v1034 = vmul.f32 %v970, 0.2
    %v1035 = vmul.f32 %v971, 0.2
    %v1036 = vmul.f32 %v972, 0.2
    %v1037 = vmul.f32 %v973, 0.2
    %v1038 = vsel %vm974, %v942, %v1006
    %v1039 = vsel %vm975, %v943, %v1007
    %v1040 = vsel %vm976, %v944, %v1008
    %v1041 = vsel %vm977, %v945, %v1009
    %v1042 = vsel %vm978, %v946, %v1010
    %v1043 = vsel %vm979, %v947, %v1011
    %v1044 = vsel %vm980, %v948, %v1012
    %v1045 = vsel %vm981, %v949, %v1013
    %v1046 = vsel %vm982, %v950, %v1014
    %v1047 = vsel %vm983, %v951, %v1015
    %v1048 = vsel %vm984, %v952, %v1016
    %v1049 = vsel %vm985, %v953, %v1017
    %v1050 = vsel %vm986, %v954, %v1018
    %v1051 = vsel %vm987, %v955, %v1019
    %v1052 = vsel %vm988, %v956, %v1020
    %v1053 = vsel %vm989, %v957, %v1021
    %v1054 = vsel %vm990, %v958, %v1022
    %v1055 = vsel %vm991, %v959, %v1023
    %v1056 = vsel %vm992, %v960, %v1024
    %v1057 = vsel %vm993, %v961, %v1025
    %v1058 = vsel %vm994, %v962, %v1026
    %v1059 = vsel %vm995, %v963, %v1027
    %v1060 = vsel %vm996, %v964, %v1028
    %v1061 = vsel %vm997, %v965, %v1029
    %v1062 = vsel %vm998, %v966, %v1030
    %v1063 = vsel %vm999, %v967, %v1031
    %v1064 = vsel %vm1000, %v968, %v1032
    %v1065 = vsel %vm1001, %v969, %v1033
    %v1066 = vsel %vm1002, %v970, %v1034
    %v1067 = vsel %vm1003, %v971, %v1035
    %v1068 = vsel %vm1004, %v972, %v1036
    %v1069 = vsel %vm1005, %v973, %v1037
    %v1070 = vsel %vm56, %v390, %v1038
    %v1071 = vsel %vm56, %v391, %v1039
    %v1072 = vsel %vm56, %v392, %v1040
    %v1073 = vsel %vm56, %v393, %v1041
    %v1074 = vsel %vm56, %v394, %v1042
    %v1075 = vsel %vm56, %v395, %v1043
    %v1076 = vsel %vm56, %v396, %v1044
    %v1077 = vsel %vm56, %v397, %v1045
    %v1078 = vsel %vm56, %v398, %v1046
    %v1079 = vsel %vm56, %v399, %v1047
    %v1080 = vsel %vm56, %v400, %v1048
    %v1081 = vsel %vm56, %v401, %v1049
    %v1082 = vsel %vm56, %v402, %v1050
    %v1083 = vsel %vm56, %v403, %v1051
    %v1084 = vsel %vm56, %v404, %v1052
    %v1085 = vsel %vm56, %v405, %v1053
    %v1086 = vsel %vm56, %v406, %v1054
    %v1087 = vsel %vm56, %v407, %v1055
    %v1088 = vsel %vm56, %v408, %v1056
    %v1089 = vsel %vm56, %v409, %v1057
    %v1090 = vsel %vm56, %v410, %v1058
    %v1091 = vsel %vm56, %v411, %v1059
    %v1092 = vsel %vm56, %v412, %v1060
    %v1093 = vsel %vm56, %v413, %v1061
    %v1094 = vsel %vm56, %v414, %v1062
    %v1095 = vsel %vm56, %v415, %v1063
    %v1096 = vsel %vm56, %v416, %v1064
    %v1097 = vsel %vm56, %v417, %v1065
    %v1098 = vsel %vm56, %v418, %v1066
    %v1099 = vsel %vm56, %v419, %v1067
    %v1100 = vsel %vm56, %v420, %v1068
    %v1101 = vsel %vm56, %v421, %v1069
    %v1102 = vld [vmem:[%s2] sm:$0xff]
    %v1103 = vld [vmem:[%s2 + $0x8] sm:$0xff]
    %v1104 = vld [vmem:[%s2 + $0x10] sm:$0xff]
    %v1105 = vld [vmem:[%s2 + $0x18] sm:$0xff]
    %v1106 = vld [vmem:[%s2 + $0x20] sm:$0xff]
    %v1107 = vld [vmem:[%s2 + $0x28] sm:$0xff]
    %v1108 = vld [vmem:[%s2 + $0x30] sm:$0xff]
    %v1109 = vld [vmem:[%s2 + $0x38] sm:$0xff]
    %v1110 = vld [vmem:[%s2 + $0x40] sm:$0xff]
    %v1111 = vld [vmem:[%s2 + $0x48] sm:$0xff]
    %v1112 = vld [vmem:[%s2 + $0x50] sm:$0xff]
    %v1113 = vld [vmem:[%s2 + $0x58] sm:$0xff]
    %v1114 = vld [vmem:[%s2 + $0x60] sm:$0xff]
    %v1115 = vld [vmem:[%s2 + $0x68] sm:$0xff]
    %v1116 = vld [vmem:[%s2 + $0x70] sm:$0xff]
    %v1117 = vld [vmem:[%s2 + $0x78] sm:$0xff]
    %v1118 = vlaneseq
    %v1119 = vshrl.u32 %v1118, 7
    %v1120 = vsub.s32 1, %v1119
    %v1121 = vrot.slane %v53, %v1120
    %1122 = vmatprep.subr.mxu0 0.0
    %1123 = vmatpush1.msra.mxu0 %v1117
    %1124 = vmatprep.subr.mxu0 0.0
    %1125 = vmatpush1.msra.mxu0 %v1116
    %1126 = vmatprep.subr.mxu0 0.0
    %1127 = vmatpush1.msra.mxu0 %v1115
    %1128 = vmatprep.subr.mxu0 0.0
    %1129 = vmatpush1.msra.mxu0 %v1114
    %1130 = vmatprep.subr.mxu0 0.0
    %1131 = vmatpush1.msra.mxu0 %v1113
    %1132 = vmatprep.subr.mxu0 0.0
    %1133 = vmatpush1.msra.mxu0 %v1112
    %1134 = vmatprep.subr.mxu0 0.0
    %1135 = vmatpush1.msra.mxu0 %v1111
    %1136 = vmatprep.subr.mxu0 0.0
    %1137 = vmatpush1.msra.mxu0 %v1110
    %1138 = vmatprep.subr.mxu0 0.0
    %1139 = vmatpush1.msra.mxu0 %v1109
    %1140 = vmatprep.subr.mxu0 0.0
    %1141 = vmatpush1.msra.mxu0 %v1108
    %1142 = vmatprep.subr.mxu0 0.0
    %1143 = vmatpush1.msra.mxu0 %v1107
    %1144 = vmatprep.subr.mxu0 0.0
    %1145 = vmatpush1.msra.mxu0 %v1106
    %1146 = vmatprep.subr.mxu0 0.0
    %1147 = vmatpush1.msra.mxu0 %v1105
    %1148 = vmatprep.subr.mxu0 0.0
    %1149 = vmatpush1.msra.mxu0 %v1104
    %1150 = vmatprep.subr.mxu0 0.0
    %1151 = vmatpush1.msra.mxu0 %v1103
    %1152 = vmatprep.subr.mxu0 0.0
    %1153 = vmatpush1.msra.mxu0 %v1102
    %1154 = vmatprep.subr.mxu0 0.0
    %1155 = vmatpush2.msra.mxu0 0.0
    %1156 = vmatprep.subr.mxu0 0.0
    %1157 = vmatpush2.msra.mxu0 0.0
    %1158 = vmatprep.subr.mxu0 0.0
    %1159 = vmatpush2.msra.mxu0 0.0
    %1160 = vmatprep.subr.mxu0 0.0
    %1161 = vmatpush2.msra.mxu0 0.0
    %1162 = vmatprep.subr.mxu0 0.0
    %1163 = vmatpush2.msra.mxu0 0.0
    %1164 = vmatprep.subr.mxu0 0.0
    %1165 = vmatpush2.msra.mxu0 0.0
    %1166 = vmatprep.subr.mxu0 0.0
    %1167 = vmatpush2.msra.mxu0 0.0
    %1168 = vmatprep.subr.mxu0 0.0
    %1169 = vmatpush2.msra.mxu0 0.0
    %1170 = vmatprep.subr.mxu0 0.0
    %1171 = vmatpush2.msra.mxu0 0.0
    %1172 = vmatprep.subr.mxu0 0.0
    %1173 = vmatpush2.msra.mxu0 0.0
    %1174 = vmatprep.subr.mxu0 0.0
    %1175 = vmatpush2.msra.mxu0 0.0
    %1176 = vmatprep.subr.mxu0 0.0
    %1177 = vmatpush2.msra.mxu0 0.0
    %1178 = vmatprep.subr.mxu0 0.0
    %1179 = vmatpush2.msra.mxu0 0.0
    %1180 = vmatprep.subr.mxu0 0.0
    %1181 = vmatpush2.msra.mxu0 0.0
    %1182 = vmatprep.subr.mxu0 0.0
    %1183 = vmatpush2.msra.mxu0 0.0
    %1184 = vmatprep.subr.mxu0 0.0
    %1185 = vmatpush2.msra.mxu0 0.0
    %1186 = vmatprep.mubr.f32.mxu0 0.0
    %1187 = vmatmul.mubr.f32.gmra.mxu0 %v1070
    %v1188 = vpop.f32.mrf.mxu0
    %v1189 = vadd.f32 %v1121, %v1188
    %v1190 = vpop.f32.mrf.mxu0
    %1191 = vmatprep.mubr.f32.mxu0 0.0
    %1192 = vmatmul.mubr.f32.gmra.mxu0 %v1071
    %v1193 = vpop.f32.mrf.mxu0
    %v1194 = vadd.f32 %v1121, %v1193
    %v1195 = vpop.f32.mrf.mxu0
    %1196 = vmatprep.mubr.f32.mxu0 0.0
    %1197 = vmatmul.mubr.f32.gmra.mxu0 %v1072
    %v1198 = vpop.f32.mrf.mxu0
    %v1199 = vadd.f32 %v1121, %v1198
    %v1200 = vpop.f32.mrf.mxu0
    %1201 = vmatprep.mubr.f32.mxu0 0.0
    %1202 = vmatmul.mubr.f32.gmra.mxu0 %v1073
    %v1203 = vpop.f32.mrf.mxu0
    %v1204 = vadd.f32 %v1121, %v1203
    %v1205 = vpop.f32.mrf.mxu0
    %1206 = vmatprep.mubr.f32.mxu0 0.0
    %1207 = vmatmul.mubr.f32.gmra.mxu0 %v1074
    %v1208 = vpop.f32.mrf.mxu0
    %v1209 = vadd.f32 %v1121, %v1208
    %v1210 = vpop.f32.mrf.mxu0
    %1211 = vmatprep.mubr.f32.mxu0 0.0
    %1212 = vmatmul.mubr.f32.gmra.mxu0 %v1075
    %v1213 = vpop.f32.mrf.mxu0
    %v1214 = vadd.f32 %v1121, %v1213
    %v1215 = vpop.f32.mrf.mxu0
    %1216 = vmatprep.mubr.f32.mxu0 0.0
    %1217 = vmatmul.mubr.f32.gmra.mxu0 %v1076
    %v1218 = vpop.f32.mrf.mxu0
    %v1219 = vadd.f32 %v1121, %v1218
    %v1220 = vpop.f32.mrf.mxu0
    %1221 = vmatprep.mubr.f32.mxu0 0.0
    %1222 = vmatmul.mubr.f32.gmra.mxu0 %v1077
    %v1223 = vpop.f32.mrf.mxu0
    %v1224 = vadd.f32 %v1121, %v1223
    %v1225 = vpop.f32.mrf.mxu0
    %1226 = vmatprep.mubr.f32.mxu0 0.0
    %1227 = vmatmul.mubr.f32.gmra.mxu0 %v1078
    %v1228 = vpop.f32.mrf.mxu0
    %v1229 = vadd.f32 %v1121, %v1228
    %v1230 = vpop.f32.mrf.mxu0
    %1231 = vmatprep.mubr.f32.mxu0 0.0
    %1232 = vmatmul.mubr.f32.gmra.mxu0 %v1079
    %v1233 = vpop.f32.mrf.mxu0
    %v1234 = vadd.f32 %v1121, %v1233
    %v1235 = vpop.f32.mrf.mxu0
    %1236 = vmatprep.mubr.f32.mxu0 0.0
    %1237 = vmatmul.mubr.f32.gmra.mxu0 %v1080
    %v1238 = vpop.f32.mrf.mxu0
    %v1239 = vadd.f32 %v1121, %v1238
    %v1240 = vpop.f32.mrf.mxu0
    %1241 = vmatprep.mubr.f32.mxu0 0.0
    %1242 = vmatmul.mubr.f32.gmra.mxu0 %v1081
    %v1243 = vpop.f32.mrf.mxu0
    %v1244 = vadd.f32 %v1121, %v1243
    %v1245 = vpop.f32.mrf.mxu0
    %1246 = vmatprep.mubr.f32.mxu0 0.0
    %1247 = vmatmul.mubr.f32.gmra.mxu0 %v1082
    %v1248 = vpop.f32.mrf.mxu0
    %v1249 = vadd.f32 %v1121, %v1248
    %v1250 = vpop.f32.mrf.mxu0
    %1251 = vmatprep.mubr.f32.mxu0 0.0
    %1252 = vmatmul.mubr.f32.gmra.mxu0 %v1083
    %v1253 = vpop.f32.mrf.mxu0
    %v1254 = vadd.f32 %v1121, %v1253
    %v1255 = vpop.f32.mrf.mxu0
    %1256 = vmatprep.mubr.f32.mxu0 0.0
    %1257 = vmatmul.mubr.f32.gmra.mxu0 %v1084
    %v1258 = vpop.f32.mrf.mxu0
    %v1259 = vadd.f32 %v1121, %v1258
    %v1260 = vpop.f32.mrf.mxu0
    %1261 = vmatprep.mubr.f32.mxu0 0.0
    %1262 = vmatmul.mubr.f32.gmra.mxu0 %v1085
    %v1263 = vpop.f32.mrf.mxu0
    %v1264 = vadd.f32 %v1121, %v1263
    %v1265 = vpop.f32.mrf.mxu0
    %1266 = vmatprep.mubr.f32.mxu0 0.0
    %1267 = vmatmul.mubr.f32.gmra.mxu0 %v1086
    %v1268 = vpop.f32.mrf.mxu0
    %v1269 = vadd.f32 %v1121, %v1268
    %v1270 = vpop.f32.mrf.mxu0
    %1271 = vmatprep.mubr.f32.mxu0 0.0
    %1272 = vmatmul.mubr.f32.gmra.mxu0 %v1087
    %v1273 = vpop.f32.mrf.mxu0
    %v1274 = vadd.f32 %v1121, %v1273
    %v1275 = vpop.f32.mrf.mxu0
    %1276 = vmatprep.mubr.f32.mxu0 0.0
    %1277 = vmatmul.mubr.f32.gmra.mxu0 %v1088
    %v1278 = vpop.f32.mrf.mxu0
    %v1279 = vadd.f32 %v1121, %v1278
    %v1280 = vpop.f32.mrf.mxu0
    %1281 = vmatprep.mubr.f32.mxu0 0.0
    %1282 = vmatmul.mubr.f32.gmra.mxu0 %v1089
    %v1283 = vpop.f32.mrf.mxu0
    %v1284 = vadd.f32 %v1121, %v1283
    %v1285 = vpop.f32.mrf.mxu0
    %1286 = vmatprep.mubr.f32.mxu0 0.0
    %1287 = vmatmul.mubr.f32.gmra.mxu0 %v1090
    %v1288 = vpop.f32.mrf.mxu0
    %v1289 = vadd.f32 %v1121, %v1288
    %v1290 = vpop.f32.mrf.mxu0
    %1291 = vmatprep.mubr.f32.mxu0 0.0
    %1292 = vmatmul.mubr.f32.gmra.mxu0 %v1091
    %v1293 = vpop.f32.mrf.mxu0
    %v1294 = vadd.f32 %v1121, %v1293
    %v1295 = vpop.f32.mrf.mxu0
    %1296 = vmatprep.mubr.f32.mxu0 0.0
    %1297 = vmatmul.mubr.f32.gmra.mxu0 %v1092
    %v1298 = vpop.f32.mrf.mxu0
    %v1299 = vadd.f32 %v1121, %v1298
    %v1300 = vpop.f32.mrf.mxu0
    %1301 = vmatprep.mubr.f32.mxu0 0.0
    %1302 = vmatmul.mubr.f32.gmra.mxu0 %v1093
    %v1303 = vpop.f32.mrf.mxu0
    %v1304 = vadd.f32 %v1121, %v1303
    %v1305 = vpop.f32.mrf.mxu0
    %1306 = vmatprep.mubr.f32.mxu0 0.0
    %1307 = vmatmul.mubr.f32.gmra.mxu0 %v1094
    %v1308 = vpop.f32.mrf.mxu0
    %v1309 = vadd.f32 %v1121, %v1308
    %v1310 = vpop.f32.mrf.mxu0
    %1311 = vmatprep.mubr.f32.mxu0 0.0
    %1312 = vmatmul.mubr.f32.gmra.mxu0 %v1095
    %v1313 = vpop.f32.mrf.mxu0
    %v1314 = vadd.f32 %v1121, %v1313
    %v1315 = vpop.f32.mrf.mxu0
    %1316 = vmatprep.mubr.f32.mxu0 0.0
    %1317 = vmatmul.mubr.f32.gmra.mxu0 %v1096
    %v1318 = vpop.f32.mrf.mxu0
    %v1319 = vadd.f32 %v1121, %v1318
    %v1320 = vpop.f32.mrf.mxu0
    %1321 = vmatprep.mubr.f32.mxu0 0.0
    %1322 = vmatmul.mubr.f32.gmra.mxu0 %v1097
    %v1323 = vpop.f32.mrf.mxu0
    %v1324 = vadd.f32 %v1121, %v1323
    %v1325 = vpop.f32.mrf.mxu0
    %1326 = vmatprep.mubr.f32.mxu0 0.0
    %1327 = vmatmul.mubr.f32.gmra.mxu0 %v1098
    %v1328 = vpop.f32.mrf.mxu0
    %v1329 = vadd.f32 %v1121, %v1328
    %v1330 = vpop.f32.mrf.mxu0
    %1331 = vmatprep.mubr.f32.mxu0 0.0
    %1332 = vmatmul.mubr.f32.gmra.mxu0 %v1099
    %v1333 = vpop.f32.mrf.mxu0
    %v1334 = vadd.f32 %v1121, %v1333
    %v1335 = vpop.f32.mrf.mxu0
    %1336 = vmatprep.mubr.f32.mxu0 0.0
    %1337 = vmatmul.mubr.f32.gmra.mxu0 %v1100
    %v1338 = vpop.f32.mrf.mxu0
    %v1339 = vadd.f32 %v1121, %v1338
    %v1340 = vpop.f32.mrf.mxu0
    %1341 = vmatprep.mubr.f32.mxu0 0.0
    %1342 = vmatmul.mubr.f32.gmra.mxu0 %v1101
    %v1343 = vpop.f32.mrf.mxu0
    %v1344 = vadd.f32 %v1121, %v1343
    %v1345 = vpop.f32.mrf.mxu0
    %1346 = vdwg.mxu0
    %v1347 = vtanh.pop %v1189
    %v1348 = vtanh.pop %v1194
    %v1349 = vtanh.pop %v1199
    %v1350 = vtanh.pop %v1204
    %v1351 = vtanh.pop %v1209
    %v1352 = vtanh.pop %v1214
    %v1353 = vtanh.pop %v1219
    %v1354 = vtanh.pop %v1224
    %v1355 = vtanh.pop %v1229
    %v1356 = vtanh.pop %v1234
    %v1357 = vtanh.pop %v1239
    %v1358 = vtanh.pop %v1244
    %v1359 = vtanh.pop %v1249
    %v1360 = vtanh.pop %v1254
    %v1361 = vtanh.pop %v1259
    %v1362 = vtanh.pop %v1264
    %v1363 = vtanh.pop %v1269
    %v1364 = vtanh.pop %v1274
    %v1365 = vtanh.pop %v1279
    %v1366 = vtanh.pop %v1284
    %v1367 = vtanh.pop %v1289
    %v1368 = vtanh.pop %v1294
    %v1369 = vtanh.pop %v1299
    %v1370 = vtanh.pop %v1304
    %v1371 = vtanh.pop %v1309
    %v1372 = vtanh.pop %v1314
    %v1373 = vtanh.pop %v1319
    %v1374 = vtanh.pop %v1324
    %v1375 = vtanh.pop %v1329
    %v1376 = vtanh.pop %v1334
    %v1377 = vtanh.pop %v1339
    %v1378 = vtanh.pop %v1344
    %v1379 = vsel %vm59, %v1189, 0.0
    %v1380 = vsel %vm59, %v1194, 0.0
    %v1381 = vsel %vm59, %v1199, 0.0
    %v1382 = vsel %vm59, %v1204, 0.0
    %v1383 = vsel %vm59, %v1209, 0.0
    %v1384 = vsel %vm59, %v1214, 0.0
    %v1385 = vsel %vm59, %v1219, 0.0
    %v1386 = vsel %vm59, %v1224, 0.0
    %v1387 = vsel %vm59, %v1229, 0.0
    %v1388 = vsel %vm59, %v1234, 0.0
    %v1389 = vsel %vm59, %v1239, 0.0
    %v1390 = vsel %vm59, %v1244, 0.0
    %v1391 = vsel %vm59, %v1249, 0.0
    %v1392 = vsel %vm59, %v1254, 0.0
    %v1393 = vsel %vm59, %v1259, 0.0
    %v1394 = vsel %vm59, %v1264, 0.0
    %v1395 = vsel %vm59, %v1269, 0.0
    %v1396 = vsel %vm59, %v1274, 0.0
    %v1397 = vsel %vm59, %v1279, 0.0
    %v1398 = vsel %vm59, %v1284, 0.0
    %v1399 = vsel %vm59, %v1289, 0.0
    %v1400 = vsel %vm59, %v1294, 0.0
    %v1401 = vsel %vm59, %v1299, 0.0
    %v1402 = vsel %vm59, %v1304, 0.0
    %v1403 = vsel %vm59, %v1309, 0.0
    %v1404 = vsel %vm59, %v1314, 0.0
    %v1405 = vsel %vm59, %v1319, 0.0
    %v1406 = vsel %vm59, %v1324, 0.0
    %v1407 = vsel %vm59, %v1329, 0.0
    %v1408 = vsel %vm59, %v1334, 0.0
    %v1409 = vsel %vm59, %v1339, 0.0
    %v1410 = vsel %vm59, %v1344, 0.0
    %1411 = vadd.xlane.f32.xlu0 %v1379
    %v1412 = vpop.xlane.xlu0 %1411
    %1413 = vadd.xlane.f32.xlu0 %v1380
    %v1414 = vpop.xlane.xlu0 %1413
    %1415 = vadd.xlane.f32.xlu0 %v1381
    %v1416 = vpop.xlane.xlu0 %1415
    %1417 = vadd.xlane.f32.xlu0 %v1382
    %v1418 = vpop.xlane.xlu0 %1417
    %1419 = vadd.xlane.f32.xlu0 %v1383
    %v1420 = vpop.xlane.xlu0 %1419
    %1421 = vadd.xlane.f32.xlu0 %v1384
    %v1422 = vpop.xlane.xlu0 %1421
    %1423 = vadd.xlane.f32.xlu0 %v1385
    %v1424 = vpop.xlane.xlu0 %1423
    %1425 = vadd.xlane.f32.xlu0 %v1386
    %v1426 = vpop.xlane.xlu0 %1425
    %1427 = vadd.xlane.f32.xlu0 %v1387
    %v1428 = vpop.xlane.xlu0 %1427
    %1429 = vadd.xlane.f32.xlu0 %v1388
    %v1430 = vpop.xlane.xlu0 %1429
    %1431 = vadd.xlane.f32.xlu0 %v1389
    %v1432 = vpop.xlane.xlu0 %1431
    %1433 = vadd.xlane.f32.xlu0 %v1390
    %v1434 = vpop.xlane.xlu0 %1433
    %1435 = vadd.xlane.f32.xlu0 %v1391
    %v1436 = vpop.xlane.xlu0 %1435
    %1437 = vadd.xlane.f32.xlu0 %v1392
    %v1438 = vpop.xlane.xlu0 %1437
    %1439 = vadd.xlane.f32.xlu0 %v1393
    %v1440 = vpop.xlane.xlu0 %1439
    %1441 = vadd.xlane.f32.xlu0 %v1394
    %v1442 = vpop.xlane.xlu0 %1441
    %1443 = vadd.xlane.f32.xlu0 %v1395
    %v1444 = vpop.xlane.xlu0 %1443
    %1445 = vadd.xlane.f32.xlu0 %v1396
    %v1446 = vpop.xlane.xlu0 %1445
    %1447 = vadd.xlane.f32.xlu0 %v1397
    %v1448 = vpop.xlane.xlu0 %1447
    %1449 = vadd.xlane.f32.xlu0 %v1398
    %v1450 = vpop.xlane.xlu0 %1449
    %1451 = vadd.xlane.f32.xlu0 %v1399
    %v1452 = vpop.xlane.xlu0 %1451
    %1453 = vadd.xlane.f32.xlu0 %v1400
    %v1454 = vpop.xlane.xlu0 %1453
    %1455 = vadd.xlane.f32.xlu0 %v1401
    %v1456 = vpop.xlane.xlu0 %1455
    %1457 = vadd.xlane.f32.xlu0 %v1402
    %v1458 = vpop.xlane.xlu0 %1457
    %1459 = vadd.xlane.f32.xlu0 %v1403
    %v1460 = vpop.xlane.xlu0 %1459
    %1461 = vadd.xlane.f32.xlu0 %v1404
    %v1462 = vpop.xlane.xlu0 %1461
    %1463 = vadd.xlane.f32.xlu0 %v1405
    %v1464 = vpop.xlane.xlu0 %1463
    %1465 = vadd.xlane.f32.xlu0 %v1406
    %v1466 = vpop.xlane.xlu0 %1465
    %1467 = vadd.xlane.f32.xlu0 %v1407
    %v1468 = vpop.xlane.xlu0 %1467
    %1469 = vadd.xlane.f32.xlu0 %v1408
    %v1470 = vpop.xlane.xlu0 %1469
    %1471 = vadd.xlane.f32.xlu0 %v1409
    %v1472 = vpop.xlane.xlu0 %1471
    %1473 = vadd.xlane.f32.xlu0 %v1410
    %v1474 = vpop.xlane.xlu0 %1473
    %v1475 = vmul.f32 %v1412, 0.015625
    %v1476 = vmul.f32 %v1414, 0.015625
    %v1477 = vmul.f32 %v1416, 0.015625
    %v1478 = vmul.f32 %v1418, 0.015625
    %v1479 = vmul.f32 %v1420, 0.015625
    %v1480 = vmul.f32 %v1422, 0.015625
    %v1481 = vmul.f32 %v1424, 0.015625
    %v1482 = vmul.f32 %v1426, 0.015625
    %v1483 = vmul.f32 %v1428, 0.015625
    %v1484 = vmul.f32 %v1430, 0.015625
    %v1485 = vmul.f32 %v1432, 0.015625
    %v1486 = vmul.f32 %v1434, 0.015625
    %v1487 = vmul.f32 %v1436, 0.015625
    %v1488 = vmul.f32 %v1438, 0.015625
    %v1489 = vmul.f32 %v1440, 0.015625
    %v1490 = vmul.f32 %v1442, 0.015625
    %v1491 = vmul.f32 %v1444, 0.015625
    %v1492 = vmul.f32 %v1446, 0.015625
    %v1493 = vmul.f32 %v1448, 0.015625
    %v1494 = vmul.f32 %v1450, 0.015625
    %v1495 = vmul.f32 %v1452, 0.015625
    %v1496 = vmul.f32 %v1454, 0.015625
    %v1497 = vmul.f32 %v1456, 0.015625
    %v1498 = vmul.f32 %v1458, 0.015625
    %v1499 = vmul.f32 %v1460, 0.015625
    %v1500 = vmul.f32 %v1462, 0.015625
    %v1501 = vmul.f32 %v1464, 0.015625
    %v1502 = vmul.f32 %v1466, 0.015625
    %v1503 = vmul.f32 %v1468, 0.015625
    %v1504 = vmul.f32 %v1470, 0.015625
    %v1505 = vmul.f32 %v1472, 0.015625
    %v1506 = vmul.f32 %v1474, 0.015625
    %v1507 = vmul.f32 %v1379, %v1379
    %v1508 = vmul.f32 %v1380, %v1380
    %v1509 = vmul.f32 %v1381, %v1381
    %v1510 = vmul.f32 %v1382, %v1382
    %v1511 = vmul.f32 %v1383, %v1383
    %v1512 = vmul.f32 %v1384, %v1384
    %v1513 = vmul.f32 %v1385, %v1385
    %v1514 = vmul.f32 %v1386, %v1386
    %v1515 = vmul.f32 %v1387, %v1387
    %v1516 = vmul.f32 %v1388, %v1388
    %v1517 = vmul.f32 %v1389, %v1389
    %v1518 = vmul.f32 %v1390, %v1390
    %v1519 = vmul.f32 %v1391, %v1391
    %v1520 = vmul.f32 %v1392, %v1392
    %v1521 = vmul.f32 %v1393, %v1393
    %v1522 = vmul.f32 %v1394, %v1394
    %v1523 = vmul.f32 %v1395, %v1395
    %v1524 = vmul.f32 %v1396, %v1396
    %v1525 = vmul.f32 %v1397, %v1397
    %v1526 = vmul.f32 %v1398, %v1398
    %v1527 = vmul.f32 %v1399, %v1399
    %v1528 = vmul.f32 %v1400, %v1400
    %v1529 = vmul.f32 %v1401, %v1401
    %v1530 = vmul.f32 %v1402, %v1402
    %v1531 = vmul.f32 %v1403, %v1403
    %v1532 = vmul.f32 %v1404, %v1404
    %v1533 = vmul.f32 %v1405, %v1405
    %v1534 = vmul.f32 %v1406, %v1406
    %v1535 = vmul.f32 %v1407, %v1407
    %v1536 = vmul.f32 %v1408, %v1408
    %v1537 = vmul.f32 %v1409, %v1409
    %v1538 = vmul.f32 %v1410, %v1410
    %1539 = vadd.xlane.f32.xlu0 %v1507
    %v1540 = vpop.xlane.xlu0 %1539
    %1541 = vadd.xlane.f32.xlu0 %v1508
    %v1542 = vpop.xlane.xlu0 %1541
    %1543 = vadd.xlane.f32.xlu0 %v1509
    %v1544 = vpop.xlane.xlu0 %1543
    %1545 = vadd.xlane.f32.xlu0 %v1510
    %v1546 = vpop.xlane.xlu0 %1545
    %1547 = vadd.xlane.f32.xlu0 %v1511
    %v1548 = vpop.xlane.xlu0 %1547
    %1549 = vadd.xlane.f32.xlu0 %v1512
    %v1550 = vpop.xlane.xlu0 %1549
    %1551 = vadd.xlane.f32.xlu0 %v1513
    %v1552 = vpop.xlane.xlu0 %1551
    %1553 = vadd.xlane.f32.xlu0 %v1514
    %v1554 = vpop.xlane.xlu0 %1553
    %1555 = vadd.xlane.f32.xlu0 %v1515
    %v1556 = vpop.xlane.xlu0 %1555
    %1557 = vadd.xlane.f32.xlu0 %v1516
    %v1558 = vpop.xlane.xlu0 %1557
    %1559 = vadd.xlane.f32.xlu0 %v1517
    %v1560 = vpop.xlane.xlu0 %1559
    %1561 = vadd.xlane.f32.xlu0 %v1518
    %v1562 = vpop.xlane.xlu0 %1561
    %1563 = vadd.xlane.f32.xlu0 %v1519
    %v1564 = vpop.xlane.xlu0 %1563
    %1565 = vadd.xlane.f32.xlu0 %v1520
    %v1566 = vpop.xlane.xlu0 %1565
    %1567 = vadd.xlane.f32.xlu0 %v1521
    %v1568 = vpop.xlane.xlu0 %1567
    %1569 = vadd.xlane.f32.xlu0 %v1522
    %v1570 = vpop.xlane.xlu0 %1569
    %1571 = vadd.xlane.f32.xlu0 %v1523
    %v1572 = vpop.xlane.xlu0 %1571
    %1573 = vadd.xlane.f32.xlu0 %v1524
    %v1574 = vpop.xlane.xlu0 %1573
    %1575 = vadd.xlane.f32.xlu0 %v1525
    %v1576 = vpop.xlane.xlu0 %1575
    %1577 = vadd.xlane.f32.xlu0 %v1526
    %v1578 = vpop.xlane.xlu0 %1577
    %1579 = vadd.xlane.f32.xlu0 %v1527
    %v1580 = vpop.xlane.xlu0 %1579
    %1581 = vadd.xlane.f32.xlu0 %v1528
    %v1582 = vpop.xlane.xlu0 %1581
    %1583 = vadd.xlane.f32.xlu0 %v1529
    %v1584 = vpop.xlane.xlu0 %1583
    %1585 = vadd.xlane.f32.xlu0 %v1530
    %v1586 = vpop.xlane.xlu0 %1585
    %1587 = vadd.xlane.f32.xlu0 %v1531
    %v1588 = vpop.xlane.xlu0 %1587
    %1589 = vadd.xlane.f32.xlu0 %v1532
    %v1590 = vpop.xlane.xlu0 %1589
    %1591 = vadd.xlane.f32.xlu0 %v1533
    %v1592 = vpop.xlane.xlu0 %1591
    %1593 = vadd.xlane.f32.xlu0 %v1534
    %v1594 = vpop.xlane.xlu0 %1593
    %1595 = vadd.xlane.f32.xlu0 %v1535
    %v1596 = vpop.xlane.xlu0 %1595
    %1597 = vadd.xlane.f32.xlu0 %v1536
    %v1598 = vpop.xlane.xlu0 %1597
    %1599 = vadd.xlane.f32.xlu0 %v1537
    %v1600 = vpop.xlane.xlu0 %1599
    %1601 = vadd.xlane.f32.xlu0 %v1538
    %v1602 = vpop.xlane.xlu0 %1601
    %v1603 = vmul.f32 %v1540, 0.015625
    %v1604 = vmul.f32 %v1542, 0.015625
    %v1605 = vmul.f32 %v1544, 0.015625
    %v1606 = vmul.f32 %v1546, 0.015625
    %v1607 = vmul.f32 %v1548, 0.015625
    %v1608 = vmul.f32 %v1550, 0.015625
    %v1609 = vmul.f32 %v1552, 0.015625
    %v1610 = vmul.f32 %v1554, 0.015625
    %v1611 = vmul.f32 %v1556, 0.015625
    %v1612 = vmul.f32 %v1558, 0.015625
    %v1613 = vmul.f32 %v1560, 0.015625
    %v1614 = vmul.f32 %v1562, 0.015625
    %v1615 = vmul.f32 %v1564, 0.015625
    %v1616 = vmul.f32 %v1566, 0.015625
    %v1617 = vmul.f32 %v1568, 0.015625
    %v1618 = vmul.f32 %v1570, 0.015625
    %v1619 = vmul.f32 %v1572, 0.015625
    %v1620 = vmul.f32 %v1574, 0.015625
    %v1621 = vmul.f32 %v1576, 0.015625
    %v1622 = vmul.f32 %v1578, 0.015625
    %v1623 = vmul.f32 %v1580, 0.015625
    %v1624 = vmul.f32 %v1582, 0.015625
    %v1625 = vmul.f32 %v1584, 0.015625
    %v1626 = vmul.f32 %v1586, 0.015625
    %v1627 = vmul.f32 %v1588, 0.015625
    %v1628 = vmul.f32 %v1590, 0.015625
    %v1629 = vmul.f32 %v1592, 0.015625
    %v1630 = vmul.f32 %v1594, 0.015625
    %v1631 = vmul.f32 %v1596, 0.015625
    %v1632 = vmul.f32 %v1598, 0.015625
    %v1633 = vmul.f32 %v1600, 0.015625
    %v1634 = vmul.f32 %v1602, 0.015625
    %v1635 = vmul.f32 %v1475, %v1475
    %v1636 = vmul.f32 %v1476, %v1476
    %v1637 = vmul.f32 %v1477, %v1477
    %v1638 = vmul.f32 %v1478, %v1478
    %v1639 = vmul.f32 %v1479, %v1479
    %v1640 = vmul.f32 %v1480, %v1480
    %v1641 = vmul.f32 %v1481, %v1481
    %v1642 = vmul.f32 %v1482, %v1482
    %v1643 = vmul.f32 %v1483, %v1483
    %v1644 = vmul.f32 %v1484, %v1484
    %v1645 = vmul.f32 %v1485, %v1485
    %v1646 = vmul.f32 %v1486, %v1486
    %v1647 = vmul.f32 %v1487, %v1487
    %v1648 = vmul.f32 %v1488, %v1488
    %v1649 = vmul.f32 %v1489, %v1489
    %v1650 = vmul.f32 %v1490, %v1490
    %v1651 = vmul.f32 %v1491, %v1491
    %v1652 = vmul.f32 %v1492, %v1492
    %v1653 = vmul.f32 %v1493, %v1493
    %v1654 = vmul.f32 %v1494, %v1494
    %v1655 = vmul.f32 %v1495, %v1495
    %v1656 = vmul.f32 %v1496, %v1496
    %v1657 = vmul.f32 %v1497, %v1497
    %v1658 = vmul.f32 %v1498, %v1498
    %v1659 = vmul.f32 %v1499, %v1499
    %v1660 = vmul.f32 %v1500, %v1500
    %v1661 = vmul.f32 %v1501, %v1501
    %v1662 = vmul.f32 %v1502, %v1502
    %v1663 = vmul.f32 %v1503, %v1503
    %v1664 = vmul.f32 %v1504, %v1504
    %v1665 = vmul.f32 %v1505, %v1505
    %v1666 = vmul.f32 %v1506, %v1506
    %v1667 = vsub.f32 %v1603, %v1635
    %v1668 = vsub.f32 %v1604, %v1636
    %v1669 = vsub.f32 %v1605, %v1637
    %v1670 = vsub.f32 %v1606, %v1638
    %v1671 = vsub.f32 %v1607, %v1639
    %v1672 = vsub.f32 %v1608, %v1640
    %v1673 = vsub.f32 %v1609, %v1641
    %v1674 = vsub.f32 %v1610, %v1642
    %v1675 = vsub.f32 %v1611, %v1643
    %v1676 = vsub.f32 %v1612, %v1644
    %v1677 = vsub.f32 %v1613, %v1645
    %v1678 = vsub.f32 %v1614, %v1646
    %v1679 = vsub.f32 %v1615, %v1647
    %v1680 = vsub.f32 %v1616, %v1648
    %v1681 = vsub.f32 %v1617, %v1649
    %v1682 = vsub.f32 %v1618, %v1650
    %v1683 = vsub.f32 %v1619, %v1651
    %v1684 = vsub.f32 %v1620, %v1652
    %v1685 = vsub.f32 %v1621, %v1653
    %v1686 = vsub.f32 %v1622, %v1654
    %v1687 = vsub.f32 %v1623, %v1655
    %v1688 = vsub.f32 %v1624, %v1656
    %v1689 = vsub.f32 %v1625, %v1657
    %v1690 = vsub.f32 %v1626, %v1658
    %v1691 = vsub.f32 %v1627, %v1659
    %v1692 = vsub.f32 %v1628, %v1660
    %v1693 = vsub.f32 %v1629, %v1661
    %v1694 = vsub.f32 %v1630, %v1662
    %v1695 = vsub.f32 %v1631, %v1663
    %v1696 = vsub.f32 %v1632, %v1664
    %v1697 = vsub.f32 %v1633, %v1665
    %v1698 = vsub.f32 %v1634, %v1666
    %v1699 = vmax.f32 %v1667, 0.0
    %v1700 = vmax.f32 %v1668, 0.0
    %v1701 = vmax.f32 %v1669, 0.0
    %v1702 = vmax.f32 %v1670, 0.0
    %v1703 = vmax.f32 %v1671, 0.0
    %v1704 = vmax.f32 %v1672, 0.0
    %v1705 = vmax.f32 %v1673, 0.0
    %v1706 = vmax.f32 %v1674, 0.0
    %v1707 = vmax.f32 %v1675, 0.0
    %v1708 = vmax.f32 %v1676, 0.0
    %v1709 = vmax.f32 %v1677, 0.0
    %v1710 = vmax.f32 %v1678, 0.0
    %v1711 = vmax.f32 %v1679, 0.0
    %v1712 = vmax.f32 %v1680, 0.0
    %v1713 = vmax.f32 %v1681, 0.0
    %v1714 = vmax.f32 %v1682, 0.0
    %v1715 = vmax.f32 %v1683, 0.0
    %v1716 = vmax.f32 %v1684, 0.0
    %v1717 = vmax.f32 %v1685, 0.0
    %v1718 = vmax.f32 %v1686, 0.0
    %v1719 = vmax.f32 %v1687, 0.0
    %v1720 = vmax.f32 %v1688, 0.0
    %v1721 = vmax.f32 %v1689, 0.0
    %v1722 = vmax.f32 %v1690, 0.0
    %v1723 = vmax.f32 %v1691, 0.0
    %v1724 = vmax.f32 %v1692, 0.0
    %v1725 = vmax.f32 %v1693, 0.0
    %v1726 = vmax.f32 %v1694, 0.0
    %v1727 = vmax.f32 %v1695, 0.0
    %v1728 = vmax.f32 %v1696, 0.0
    %v1729 = vmax.f32 %v1697, 0.0
    %v1730 = vmax.f32 %v1698, 0.0
    %v1731 = vsub.f32 %v1189, %v1475
    %v1732 = vsub.f32 %v1194, %v1476
    %v1733 = vsub.f32 %v1199, %v1477
    %v1734 = vsub.f32 %v1204, %v1478
    %v1735 = vsub.f32 %v1209, %v1479
    %v1736 = vsub.f32 %v1214, %v1480
    %v1737 = vsub.f32 %v1219, %v1481
    %v1738 = vsub.f32 %v1224, %v1482
    %v1739 = vsub.f32 %v1229, %v1483
    %v1740 = vsub.f32 %v1234, %v1484
    %v1741 = vsub.f32 %v1239, %v1485
    %v1742 = vsub.f32 %v1244, %v1486
    %v1743 = vsub.f32 %v1249, %v1487
    %v1744 = vsub.f32 %v1254, %v1488
    %v1745 = vsub.f32 %v1259, %v1489
    %v1746 = vsub.f32 %v1264, %v1490
    %v1747 = vsub.f32 %v1269, %v1491
    %v1748 = vsub.f32 %v1274, %v1492
    %v1749 = vsub.f32 %v1279, %v1493
    %v1750 = vsub.f32 %v1284, %v1494
    %v1751 = vsub.f32 %v1289, %v1495
    %v1752 = vsub.f32 %v1294, %v1496
    %v1753 = vsub.f32 %v1299, %v1497
    %v1754 = vsub.f32 %v1304, %v1498
    %v1755 = vsub.f32 %v1309, %v1499
    %v1756 = vsub.f32 %v1314, %v1500
    %v1757 = vsub.f32 %v1319, %v1501
    %v1758 = vsub.f32 %v1324, %v1502
    %v1759 = vsub.f32 %v1329, %v1503
    %v1760 = vsub.f32 %v1334, %v1504
    %v1761 = vsub.f32 %v1339, %v1505
    %v1762 = vsub.f32 %v1344, %v1506
    %v1763 = vadd.f32 %v1699, 1e-05
    %v1764 = vadd.f32 %v1700, 1e-05
    %v1765 = vadd.f32 %v1701, 1e-05
    %v1766 = vadd.f32 %v1702, 1e-05
    %v1767 = vadd.f32 %v1703, 1e-05
    %v1768 = vadd.f32 %v1704, 1e-05
    %v1769 = vadd.f32 %v1705, 1e-05
    %v1770 = vadd.f32 %v1706, 1e-05
    %v1771 = vadd.f32 %v1707, 1e-05
    %v1772 = vadd.f32 %v1708, 1e-05
    %v1773 = vadd.f32 %v1709, 1e-05
    %v1774 = vadd.f32 %v1710, 1e-05
    %v1775 = vadd.f32 %v1711, 1e-05
    %v1776 = vadd.f32 %v1712, 1e-05
    %v1777 = vadd.f32 %v1713, 1e-05
    %v1778 = vadd.f32 %v1714, 1e-05
    %v1779 = vadd.f32 %v1715, 1e-05
    %v1780 = vadd.f32 %v1716, 1e-05
    %v1781 = vadd.f32 %v1717, 1e-05
    %v1782 = vadd.f32 %v1718, 1e-05
    %v1783 = vadd.f32 %v1719, 1e-05
    %v1784 = vadd.f32 %v1720, 1e-05
    %v1785 = vadd.f32 %v1721, 1e-05
    %v1786 = vadd.f32 %v1722, 1e-05
    %v1787 = vadd.f32 %v1723, 1e-05
    %v1788 = vadd.f32 %v1724, 1e-05
    %v1789 = vadd.f32 %v1725, 1e-05
    %v1790 = vadd.f32 %v1726, 1e-05
    %v1791 = vadd.f32 %v1727, 1e-05
    %v1792 = vadd.f32 %v1728, 1e-05
    %v1793 = vadd.f32 %v1729, 1e-05
    %v1794 = vadd.f32 %v1730, 1e-05
    %v1795 = vrsqrt.pop %v1763
    %v1796 = vrsqrt.pop %v1764
    %v1797 = vrsqrt.pop %v1765
    %v1798 = vrsqrt.pop %v1766
    %v1799 = vrsqrt.pop %v1767
    %v1800 = vrsqrt.pop %v1768
    %v1801 = vrsqrt.pop %v1769
    %v1802 = vrsqrt.pop %v1770
    %v1803 = vrsqrt.pop %v1771
    %v1804 = vrsqrt.pop %v1772
    %v1805 = vrsqrt.pop %v1773
    %v1806 = vrsqrt.pop %v1774
    %v1807 = vrsqrt.pop %v1775
    %v1808 = vrsqrt.pop %v1776
    %v1809 = vrsqrt.pop %v1777
    %v1810 = vrsqrt.pop %v1778
    %v1811 = vrsqrt.pop %v1779
    %v1812 = vrsqrt.pop %v1780
    %v1813 = vrsqrt.pop %v1781
    %v1814 = vrsqrt.pop %v1782
    %v1815 = vrsqrt.pop %v1783
    %v1816 = vrsqrt.pop %v1784
    %v1817 = vrsqrt.pop %v1785
    %v1818 = vrsqrt.pop %v1786
    %v1819 = vrsqrt.pop %v1787
    %v1820 = vrsqrt.pop %v1788
    %v1821 = vrsqrt.pop %v1789
    %v1822 = vrsqrt.pop %v1790
    %v1823 = vrsqrt.pop %v1791
    %v1824 = vrsqrt.pop %v1792
    %v1825 = vrsqrt.pop %v1793
    %v1826 = vrsqrt.pop %v1794
    %v1827 = vmul.f32 %v1731, %v1795
    %v1828 = vmul.f32 %v1732, %v1796
    %v1829 = vmul.f32 %v1733, %v1797
    %v1830 = vmul.f32 %v1734, %v1798
    %v1831 = vmul.f32 %v1735, %v1799
    %v1832 = vmul.f32 %v1736, %v1800
    %v1833 = vmul.f32 %v1737, %v1801
    %v1834 = vmul.f32 %v1738, %v1802
    %v1835 = vmul.f32 %v1739, %v1803
    %v1836 = vmul.f32 %v1740, %v1804
    %v1837 = vmul.f32 %v1741, %v1805
    %v1838 = vmul.f32 %v1742, %v1806
    %v1839 = vmul.f32 %v1743, %v1807
    %v1840 = vmul.f32 %v1744, %v1808
    %v1841 = vmul.f32 %v1745, %v1809
    %v1842 = vmul.f32 %v1746, %v1810
    %v1843 = vmul.f32 %v1747, %v1811
    %v1844 = vmul.f32 %v1748, %v1812
    %v1845 = vmul.f32 %v1749, %v1813
    %v1846 = vmul.f32 %v1750, %v1814
    %v1847 = vmul.f32 %v1751, %v1815
    %v1848 = vmul.f32 %v1752, %v1816
    %v1849 = vmul.f32 %v1753, %v1817
    %v1850 = vmul.f32 %v1754, %v1818
    %v1851 = vmul.f32 %v1755, %v1819
    %v1852 = vmul.f32 %v1756, %v1820
    %v1853 = vmul.f32 %v1757, %v1821
    %v1854 = vmul.f32 %v1758, %v1822
    %v1855 = vmul.f32 %v1759, %v1823
    %v1856 = vmul.f32 %v1760, %v1824
    %v1857 = vmul.f32 %v1761, %v1825
    %v1858 = vmul.f32 %v1762, %v1826
    %v1859 = vlaneseq
    %v1860 = vshrl.u32 %v1859, 7
    %v1861 = vsub.s32 5, %v1860
    %v1862 = vrot.slane %v53, %v1861
    %v1863 = vmul.f32 %v1827, %v1862
    %v1864 = vmul.f32 %v1828, %v1862
    %v1865 = vmul.f32 %v1829, %v1862
    %v1866 = vmul.f32 %v1830, %v1862
    %v1867 = vmul.f32 %v1831, %v1862
    %v1868 = vmul.f32 %v1832, %v1862
    %v1869 = vmul.f32 %v1833, %v1862
    %v1870 = vmul.f32 %v1834, %v1862
    %v1871 = vmul.f32 %v1835, %v1862
    %v1872 = vmul.f32 %v1836, %v1862
    %v1873 = vmul.f32 %v1837, %v1862
    %v1874 = vmul.f32 %v1838, %v1862
    %v1875 = vmul.f32 %v1839, %v1862
    %v1876 = vmul.f32 %v1840, %v1862
    %v1877 = vmul.f32 %v1841, %v1862
    %v1878 = vmul.f32 %v1842, %v1862
    %v1879 = vmul.f32 %v1843, %v1862
    %v1880 = vmul.f32 %v1844, %v1862
    %v1881 = vmul.f32 %v1845, %v1862
    %v1882 = vmul.f32 %v1846, %v1862
    %v1883 = vmul.f32 %v1847, %v1862
    %v1884 = vmul.f32 %v1848, %v1862
    %v1885 = vmul.f32 %v1849, %v1862
    %v1886 = vmul.f32 %v1850, %v1862
    %v1887 = vmul.f32 %v1851, %v1862
    %v1888 = vmul.f32 %v1852, %v1862
    %v1889 = vmul.f32 %v1853, %v1862
    %v1890 = vmul.f32 %v1854, %v1862
    %v1891 = vmul.f32 %v1855, %v1862
    %v1892 = vmul.f32 %v1856, %v1862
    %v1893 = vmul.f32 %v1857, %v1862
    %v1894 = vmul.f32 %v1858, %v1862
    %v1895 = vlaneseq
    %v1896 = vshrl.u32 %v1895, 7
    %v1897 = vsub.s32 6, %v1896
    %v1898 = vrot.slane %v53, %v1897
    %v1899 = vadd.f32 %v1863, %v1898
    %v1900 = vadd.f32 %v1864, %v1898
    %v1901 = vadd.f32 %v1865, %v1898
    %v1902 = vadd.f32 %v1866, %v1898
    %v1903 = vadd.f32 %v1867, %v1898
    %v1904 = vadd.f32 %v1868, %v1898
    %v1905 = vadd.f32 %v1869, %v1898
    %v1906 = vadd.f32 %v1870, %v1898
    %v1907 = vadd.f32 %v1871, %v1898
    %v1908 = vadd.f32 %v1872, %v1898
    %v1909 = vadd.f32 %v1873, %v1898
    %v1910 = vadd.f32 %v1874, %v1898
    %v1911 = vadd.f32 %v1875, %v1898
    %v1912 = vadd.f32 %v1876, %v1898
    %v1913 = vadd.f32 %v1877, %v1898
    %v1914 = vadd.f32 %v1878, %v1898
    %v1915 = vadd.f32 %v1879, %v1898
    %v1916 = vadd.f32 %v1880, %v1898
    %v1917 = vadd.f32 %v1881, %v1898
    %v1918 = vadd.f32 %v1882, %v1898
    %v1919 = vadd.f32 %v1883, %v1898
    %v1920 = vadd.f32 %v1884, %v1898
    %v1921 = vadd.f32 %v1885, %v1898
    %v1922 = vadd.f32 %v1886, %v1898
    %v1923 = vadd.f32 %v1887, %v1898
    %v1924 = vadd.f32 %v1888, %v1898
    %v1925 = vadd.f32 %v1889, %v1898
    %v1926 = vadd.f32 %v1890, %v1898
    %v1927 = vadd.f32 %v1891, %v1898
    %v1928 = vadd.f32 %v1892, %v1898
    %v1929 = vadd.f32 %v1893, %v1898
    %v1930 = vadd.f32 %v1894, %v1898
    %vm1931 = vcmp.ge.f32.partialorder %v1899, 0.0
    %vm1932 = vcmp.ge.f32.partialorder %v1900, 0.0
    %vm1933 = vcmp.ge.f32.partialorder %v1901, 0.0
    %vm1934 = vcmp.ge.f32.partialorder %v1902, 0.0
    %vm1935 = vcmp.ge.f32.partialorder %v1903, 0.0
    %vm1936 = vcmp.ge.f32.partialorder %v1904, 0.0
    %vm1937 = vcmp.ge.f32.partialorder %v1905, 0.0
    %vm1938 = vcmp.ge.f32.partialorder %v1906, 0.0
    %vm1939 = vcmp.ge.f32.partialorder %v1907, 0.0
    %vm1940 = vcmp.ge.f32.partialorder %v1908, 0.0
    %vm1941 = vcmp.ge.f32.partialorder %v1909, 0.0
    %vm1942 = vcmp.ge.f32.partialorder %v1910, 0.0
    %vm1943 = vcmp.ge.f32.partialorder %v1911, 0.0
    %vm1944 = vcmp.ge.f32.partialorder %v1912, 0.0
    %vm1945 = vcmp.ge.f32.partialorder %v1913, 0.0
    %vm1946 = vcmp.ge.f32.partialorder %v1914, 0.0
    %vm1947 = vcmp.ge.f32.partialorder %v1915, 0.0
    %vm1948 = vcmp.ge.f32.partialorder %v1916, 0.0
    %vm1949 = vcmp.ge.f32.partialorder %v1917, 0.0
    %vm1950 = vcmp.ge.f32.partialorder %v1918, 0.0
    %vm1951 = vcmp.ge.f32.partialorder %v1919, 0.0
    %vm1952 = vcmp.ge.f32.partialorder %v1920, 0.0
    %vm1953 = vcmp.ge.f32.partialorder %v1921, 0.0
    %vm1954 = vcmp.ge.f32.partialorder %v1922, 0.0
    %vm1955 = vcmp.ge.f32.partialorder %v1923, 0.0
    %vm1956 = vcmp.ge.f32.partialorder %v1924, 0.0
    %vm1957 = vcmp.ge.f32.partialorder %v1925, 0.0
    %vm1958 = vcmp.ge.f32.partialorder %v1926, 0.0
    %vm1959 = vcmp.ge.f32.partialorder %v1927, 0.0
    %vm1960 = vcmp.ge.f32.partialorder %v1928, 0.0
    %vm1961 = vcmp.ge.f32.partialorder %v1929, 0.0
    %vm1962 = vcmp.ge.f32.partialorder %v1930, 0.0
    %v1963 = vmul.f32 %v1899, 0.2
    %v1964 = vmul.f32 %v1900, 0.2
    %v1965 = vmul.f32 %v1901, 0.2
    %v1966 = vmul.f32 %v1902, 0.2
    %v1967 = vmul.f32 %v1903, 0.2
    %v1968 = vmul.f32 %v1904, 0.2
    %v1969 = vmul.f32 %v1905, 0.2
    %v1970 = vmul.f32 %v1906, 0.2
    %v1971 = vmul.f32 %v1907, 0.2
    %v1972 = vmul.f32 %v1908, 0.2
    %v1973 = vmul.f32 %v1909, 0.2
    %v1974 = vmul.f32 %v1910, 0.2
    %v1975 = vmul.f32 %v1911, 0.2
    %v1976 = vmul.f32 %v1912, 0.2
    %v1977 = vmul.f32 %v1913, 0.2
    %v1978 = vmul.f32 %v1914, 0.2
    %v1979 = vmul.f32 %v1915, 0.2
    %v1980 = vmul.f32 %v1916, 0.2
    %v1981 = vmul.f32 %v1917, 0.2
    %v1982 = vmul.f32 %v1918, 0.2
    %v1983 = vmul.f32 %v1919, 0.2
    %v1984 = vmul.f32 %v1920, 0.2
    %v1985 = vmul.f32 %v1921, 0.2
    %v1986 = vmul.f32 %v1922, 0.2
    %v1987 = vmul.f32 %v1923, 0.2
    %v1988 = vmul.f32 %v1924, 0.2
    %v1989 = vmul.f32 %v1925, 0.2
    %v1990 = vmul.f32 %v1926, 0.2
    %v1991 = vmul.f32 %v1927, 0.2
    %v1992 = vmul.f32 %v1928, 0.2
    %v1993 = vmul.f32 %v1929, 0.2
    %v1994 = vmul.f32 %v1930, 0.2
    %v1995 = vsel %vm1931, %v1899, %v1963
    %v1996 = vsel %vm1932, %v1900, %v1964
    %v1997 = vsel %vm1933, %v1901, %v1965
    %v1998 = vsel %vm1934, %v1902, %v1966
    %v1999 = vsel %vm1935, %v1903, %v1967
    %v2000 = vsel %vm1936, %v1904, %v1968
    %v2001 = vsel %vm1937, %v1905, %v1969
    %v2002 = vsel %vm1938, %v1906, %v1970
    %v2003 = vsel %vm1939, %v1907, %v1971
    %v2004 = vsel %vm1940, %v1908, %v1972
    %v2005 = vsel %vm1941, %v1909, %v1973
    %v2006 = vsel %vm1942, %v1910, %v1974
    %v2007 = vsel %vm1943, %v1911, %v1975
    %v2008 = vsel %vm1944, %v1912, %v1976
    %v2009 = vsel %vm1945, %v1913, %v1977
    %v2010 = vsel %vm1946, %v1914, %v1978
    %v2011 = vsel %vm1947, %v1915, %v1979
    %v2012 = vsel %vm1948, %v1916, %v1980
    %v2013 = vsel %vm1949, %v1917, %v1981
    %v2014 = vsel %vm1950, %v1918, %v1982
    %v2015 = vsel %vm1951, %v1919, %v1983
    %v2016 = vsel %vm1952, %v1920, %v1984
    %v2017 = vsel %vm1953, %v1921, %v1985
    %v2018 = vsel %vm1954, %v1922, %v1986
    %v2019 = vsel %vm1955, %v1923, %v1987
    %v2020 = vsel %vm1956, %v1924, %v1988
    %v2021 = vsel %vm1957, %v1925, %v1989
    %v2022 = vsel %vm1958, %v1926, %v1990
    %v2023 = vsel %vm1959, %v1927, %v1991
    %v2024 = vsel %vm1960, %v1928, %v1992
    %v2025 = vsel %vm1961, %v1929, %v1993
    %v2026 = vsel %vm1962, %v1930, %v1994
    %v2027 = vsel %vm56, %v1347, %v1995
    %v2028 = vsel %vm56, %v1348, %v1996
    %v2029 = vsel %vm56, %v1349, %v1997
    %v2030 = vsel %vm56, %v1350, %v1998
    %v2031 = vsel %vm56, %v1351, %v1999
    %v2032 = vsel %vm56, %v1352, %v2000
    %v2033 = vsel %vm56, %v1353, %v2001
    %v2034 = vsel %vm56, %v1354, %v2002
    %v2035 = vsel %vm56, %v1355, %v2003
    %v2036 = vsel %vm56, %v1356, %v2004
    %v2037 = vsel %vm56, %v1357, %v2005
    %v2038 = vsel %vm56, %v1358, %v2006
    %v2039 = vsel %vm56, %v1359, %v2007
    %v2040 = vsel %vm56, %v1360, %v2008
    %v2041 = vsel %vm56, %v1361, %v2009
    %v2042 = vsel %vm56, %v1362, %v2010
    %v2043 = vsel %vm56, %v1363, %v2011
    %v2044 = vsel %vm56, %v1364, %v2012
    %v2045 = vsel %vm56, %v1365, %v2013
    %v2046 = vsel %vm56, %v1366, %v2014
    %v2047 = vsel %vm56, %v1367, %v2015
    %v2048 = vsel %vm56, %v1368, %v2016
    %v2049 = vsel %vm56, %v1369, %v2017
    %v2050 = vsel %vm56, %v1370, %v2018
    %v2051 = vsel %vm56, %v1371, %v2019
    %v2052 = vsel %vm56, %v1372, %v2020
    %v2053 = vsel %vm56, %v1373, %v2021
    %v2054 = vsel %vm56, %v1374, %v2022
    %v2055 = vsel %vm56, %v1375, %v2023
    %v2056 = vsel %vm56, %v1376, %v2024
    %v2057 = vsel %vm56, %v1377, %v2025
    %v2058 = vsel %vm56, %v1378, %v2026
    %v2059 = vld [vmem:[%s3] sm:$0xff]
    %v2060 = vld [vmem:[%s3 + $0x8] sm:$0xff]
    %v2061 = vld [vmem:[%s3 + $0x10] sm:$0xff]
    %v2062 = vld [vmem:[%s3 + $0x18] sm:$0xff]
    %v2063 = vld [vmem:[%s3 + $0x20] sm:$0xff]
    %v2064 = vld [vmem:[%s3 + $0x28] sm:$0xff]
    %v2065 = vld [vmem:[%s3 + $0x30] sm:$0xff]
    %v2066 = vld [vmem:[%s3 + $0x38] sm:$0xff]
    %v2067 = vld [vmem:[%s3 + $0x40] sm:$0xff]
    %v2068 = vld [vmem:[%s3 + $0x48] sm:$0xff]
    %v2069 = vld [vmem:[%s3 + $0x50] sm:$0xff]
    %v2070 = vld [vmem:[%s3 + $0x58] sm:$0xff]
    %v2071 = vld [vmem:[%s3 + $0x60] sm:$0xff]
    %v2072 = vld [vmem:[%s3 + $0x68] sm:$0xff]
    %v2073 = vld [vmem:[%s3 + $0x70] sm:$0xff]
    %v2074 = vld [vmem:[%s3 + $0x78] sm:$0xff]
    %v2075 = vlaneseq
    %v2076 = vshrl.u32 %v2075, 7
    %v2077 = vsub.s32 2, %v2076
    %v2078 = vrot.slane %v53, %v2077
    %2079 = vmatprep.subr.mxu0 0.0
    %2080 = vmatpush1.msra.mxu0 %v2074
    %2081 = vmatprep.subr.mxu0 0.0
    %2082 = vmatpush1.msra.mxu0 %v2073
    %2083 = vmatprep.subr.mxu0 0.0
    %2084 = vmatpush1.msra.mxu0 %v2072
    %2085 = vmatprep.subr.mxu0 0.0
    %2086 = vmatpush1.msra.mxu0 %v2071
    %2087 = vmatprep.subr.mxu0 0.0
    %2088 = vmatpush1.msra.mxu0 %v2070
    %2089 = vmatprep.subr.mxu0 0.0
    %2090 = vmatpush1.msra.mxu0 %v2069
    %2091 = vmatprep.subr.mxu0 0.0
    %2092 = vmatpush1.msra.mxu0 %v2068
    %2093 = vmatprep.subr.mxu0 0.0
    %2094 = vmatpush1.msra.mxu0 %v2067
    %2095 = vmatprep.subr.mxu0 0.0
    %2096 = vmatpush1.msra.mxu0 %v2066
    %2097 = vmatprep.subr.mxu0 0.0
    %2098 = vmatpush1.msra.mxu0 %v2065
    %2099 = vmatprep.subr.mxu0 0.0
    %2100 = vmatpush1.msra.mxu0 %v2064
    %2101 = vmatprep.subr.mxu0 0.0
    %2102 = vmatpush1.msra.mxu0 %v2063
    %2103 = vmatprep.subr.mxu0 0.0
    %2104 = vmatpush1.msra.mxu0 %v2062
    %2105 = vmatprep.subr.mxu0 0.0
    %2106 = vmatpush1.msra.mxu0 %v2061
    %2107 = vmatprep.subr.mxu0 0.0
    %2108 = vmatpush1.msra.mxu0 %v2060
    %2109 = vmatprep.subr.mxu0 0.0
    %2110 = vmatpush1.msra.mxu0 %v2059
    %2111 = vmatprep.subr.mxu0 0.0
    %2112 = vmatpush2.msra.mxu0 0.0
    %2113 = vmatprep.subr.mxu0 0.0
    %2114 = vmatpush2.msra.mxu0 0.0
    %2115 = vmatprep.subr.mxu0 0.0
    %2116 = vmatpush2.msra.mxu0 0.0
    %2117 = vmatprep.subr.mxu0 0.0
    %2118 = vmatpush2.msra.mxu0 0.0
    %2119 = vmatprep.subr.mxu0 0.0
    %2120 = vmatpush2.msra.mxu0 0.0
    %2121 = vmatprep.subr.mxu0 0.0
    %2122 = vmatpush2.msra.mxu0 0.0
    %2123 = vmatprep.subr.mxu0 0.0
    %2124 = vmatpush2.msra.mxu0 0.0
    %2125 = vmatprep.subr.mxu0 0.0
    %2126 = vmatpush2.msra.mxu0 0.0
    %2127 = vmatprep.subr.mxu0 0.0
    %2128 = vmatpush2.msra.mxu0 0.0
    %2129 = vmatprep.subr.mxu0 0.0
    %2130 = vmatpush2.msra.mxu0 0.0
    %2131 = vmatprep.subr.mxu0 0.0
    %2132 = vmatpush2.msra.mxu0 0.0
    %2133 = vmatprep.subr.mxu0 0.0
    %2134 = vmatpush2.msra.mxu0 0.0
    %2135 = vmatprep.subr.mxu0 0.0
    %2136 = vmatpush2.msra.mxu0 0.0
    %2137 = vmatprep.subr.mxu0 0.0
    %2138 = vmatpush2.msra.mxu0 0.0
    %2139 = vmatprep.subr.mxu0 0.0
    %2140 = vmatpush2.msra.mxu0 0.0
    %2141 = vmatprep.subr.mxu0 0.0
    %2142 = vmatpush2.msra.mxu0 0.0
    %2143 = vmatprep.mubr.f32.mxu0 0.0
    %2144 = vmatmul.mubr.f32.gmra.mxu0 %v2027
    %v2145 = vpop.f32.mrf.mxu0
    %v2146 = vadd.f32 %v2078, %v2145
    %v2147 = vpop.f32.mrf.mxu0
    %2148 = vmatprep.mubr.f32.mxu0 0.0
    %2149 = vmatmul.mubr.f32.gmra.mxu0 %v2028
    %v2150 = vpop.f32.mrf.mxu0
    %v2151 = vadd.f32 %v2078, %v2150
    %v2152 = vpop.f32.mrf.mxu0
    %2153 = vmatprep.mubr.f32.mxu0 0.0
    %2154 = vmatmul.mubr.f32.gmra.mxu0 %v2029
    %v2155 = vpop.f32.mrf.mxu0
    %v2156 = vadd.f32 %v2078, %v2155
    %v2157 = vpop.f32.mrf.mxu0
    %2158 = vmatprep.mubr.f32.mxu0 0.0
    %2159 = vmatmul.mubr.f32.gmra.mxu0 %v2030
    %v2160 = vpop.f32.mrf.mxu0
    %v2161 = vadd.f32 %v2078, %v2160
    %v2162 = vpop.f32.mrf.mxu0
    %2163 = vmatprep.mubr.f32.mxu0 0.0
    %2164 = vmatmul.mubr.f32.gmra.mxu0 %v2031
    %v2165 = vpop.f32.mrf.mxu0
    %v2166 = vadd.f32 %v2078, %v2165
    %v2167 = vpop.f32.mrf.mxu0
    %2168 = vmatprep.mubr.f32.mxu0 0.0
    %2169 = vmatmul.mubr.f32.gmra.mxu0 %v2032
    %v2170 = vpop.f32.mrf.mxu0
    %v2171 = vadd.f32 %v2078, %v2170
    %v2172 = vpop.f32.mrf.mxu0
    %2173 = vmatprep.mubr.f32.mxu0 0.0
    %2174 = vmatmul.mubr.f32.gmra.mxu0 %v2033
    %v2175 = vpop.f32.mrf.mxu0
    %v2176 = vadd.f32 %v2078, %v2175
    %v2177 = vpop.f32.mrf.mxu0
    %2178 = vmatprep.mubr.f32.mxu0 0.0
    %2179 = vmatmul.mubr.f32.gmra.mxu0 %v2034
    %v2180 = vpop.f32.mrf.mxu0
    %v2181 = vadd.f32 %v2078, %v2180
    %v2182 = vpop.f32.mrf.mxu0
    %2183 = vmatprep.mubr.f32.mxu0 0.0
    %2184 = vmatmul.mubr.f32.gmra.mxu0 %v2035
    %v2185 = vpop.f32.mrf.mxu0
    %v2186 = vadd.f32 %v2078, %v2185
    %v2187 = vpop.f32.mrf.mxu0
    %2188 = vmatprep.mubr.f32.mxu0 0.0
    %2189 = vmatmul.mubr.f32.gmra.mxu0 %v2036
    %v2190 = vpop.f32.mrf.mxu0
    %v2191 = vadd.f32 %v2078, %v2190
    %v2192 = vpop.f32.mrf.mxu0
    %2193 = vmatprep.mubr.f32.mxu0 0.0
    %2194 = vmatmul.mubr.f32.gmra.mxu0 %v2037
    %v2195 = vpop.f32.mrf.mxu0
    %v2196 = vadd.f32 %v2078, %v2195
    %v2197 = vpop.f32.mrf.mxu0
    %2198 = vmatprep.mubr.f32.mxu0 0.0
    %2199 = vmatmul.mubr.f32.gmra.mxu0 %v2038
    %v2200 = vpop.f32.mrf.mxu0
    %v2201 = vadd.f32 %v2078, %v2200
    %v2202 = vpop.f32.mrf.mxu0
    %2203 = vmatprep.mubr.f32.mxu0 0.0
    %2204 = vmatmul.mubr.f32.gmra.mxu0 %v2039
    %v2205 = vpop.f32.mrf.mxu0
    %v2206 = vadd.f32 %v2078, %v2205
    %v2207 = vpop.f32.mrf.mxu0
    %2208 = vmatprep.mubr.f32.mxu0 0.0
    %2209 = vmatmul.mubr.f32.gmra.mxu0 %v2040
    %v2210 = vpop.f32.mrf.mxu0
    %v2211 = vadd.f32 %v2078, %v2210
    %v2212 = vpop.f32.mrf.mxu0
    %2213 = vmatprep.mubr.f32.mxu0 0.0
    %2214 = vmatmul.mubr.f32.gmra.mxu0 %v2041
    %v2215 = vpop.f32.mrf.mxu0
    %v2216 = vadd.f32 %v2078, %v2215
    %v2217 = vpop.f32.mrf.mxu0
    %2218 = vmatprep.mubr.f32.mxu0 0.0
    %2219 = vmatmul.mubr.f32.gmra.mxu0 %v2042
    %v2220 = vpop.f32.mrf.mxu0
    %v2221 = vadd.f32 %v2078, %v2220
    %v2222 = vpop.f32.mrf.mxu0
    %2223 = vmatprep.mubr.f32.mxu0 0.0
    %2224 = vmatmul.mubr.f32.gmra.mxu0 %v2043
    %v2225 = vpop.f32.mrf.mxu0
    %v2226 = vadd.f32 %v2078, %v2225
    %v2227 = vpop.f32.mrf.mxu0
    %2228 = vmatprep.mubr.f32.mxu0 0.0
    %2229 = vmatmul.mubr.f32.gmra.mxu0 %v2044
    %v2230 = vpop.f32.mrf.mxu0
    %v2231 = vadd.f32 %v2078, %v2230
    %v2232 = vpop.f32.mrf.mxu0
    %2233 = vmatprep.mubr.f32.mxu0 0.0
    %2234 = vmatmul.mubr.f32.gmra.mxu0 %v2045
    %v2235 = vpop.f32.mrf.mxu0
    %v2236 = vadd.f32 %v2078, %v2235
    %v2237 = vpop.f32.mrf.mxu0
    %2238 = vmatprep.mubr.f32.mxu0 0.0
    %2239 = vmatmul.mubr.f32.gmra.mxu0 %v2046
    %v2240 = vpop.f32.mrf.mxu0
    %v2241 = vadd.f32 %v2078, %v2240
    %v2242 = vpop.f32.mrf.mxu0
    %2243 = vmatprep.mubr.f32.mxu0 0.0
    %2244 = vmatmul.mubr.f32.gmra.mxu0 %v2047
    %v2245 = vpop.f32.mrf.mxu0
    %v2246 = vadd.f32 %v2078, %v2245
    %v2247 = vpop.f32.mrf.mxu0
    %2248 = vmatprep.mubr.f32.mxu0 0.0
    %2249 = vmatmul.mubr.f32.gmra.mxu0 %v2048
    %v2250 = vpop.f32.mrf.mxu0
    %v2251 = vadd.f32 %v2078, %v2250
    %v2252 = vpop.f32.mrf.mxu0
    %2253 = vmatprep.mubr.f32.mxu0 0.0
    %2254 = vmatmul.mubr.f32.gmra.mxu0 %v2049
    %v2255 = vpop.f32.mrf.mxu0
    %v2256 = vadd.f32 %v2078, %v2255
    %v2257 = vpop.f32.mrf.mxu0
    %2258 = vmatprep.mubr.f32.mxu0 0.0
    %2259 = vmatmul.mubr.f32.gmra.mxu0 %v2050
    %v2260 = vpop.f32.mrf.mxu0
    %v2261 = vadd.f32 %v2078, %v2260
    %v2262 = vpop.f32.mrf.mxu0
    %2263 = vmatprep.mubr.f32.mxu0 0.0
    %2264 = vmatmul.mubr.f32.gmra.mxu0 %v2051
    %v2265 = vpop.f32.mrf.mxu0
    %v2266 = vadd.f32 %v2078, %v2265
    %v2267 = vpop.f32.mrf.mxu0
    %2268 = vmatprep.mubr.f32.mxu0 0.0
    %2269 = vmatmul.mubr.f32.gmra.mxu0 %v2052
    %v2270 = vpop.f32.mrf.mxu0
    %v2271 = vadd.f32 %v2078, %v2270
    %v2272 = vpop.f32.mrf.mxu0
    %2273 = vmatprep.mubr.f32.mxu0 0.0
    %2274 = vmatmul.mubr.f32.gmra.mxu0 %v2053
    %v2275 = vpop.f32.mrf.mxu0
    %v2276 = vadd.f32 %v2078, %v2275
    %v2277 = vpop.f32.mrf.mxu0
    %2278 = vmatprep.mubr.f32.mxu0 0.0
    %2279 = vmatmul.mubr.f32.gmra.mxu0 %v2054
    %v2280 = vpop.f32.mrf.mxu0
    %v2281 = vadd.f32 %v2078, %v2280
    %v2282 = vpop.f32.mrf.mxu0
    %2283 = vmatprep.mubr.f32.mxu0 0.0
    %2284 = vmatmul.mubr.f32.gmra.mxu0 %v2055
    %v2285 = vpop.f32.mrf.mxu0
    %v2286 = vadd.f32 %v2078, %v2285
    %v2287 = vpop.f32.mrf.mxu0
    %2288 = vmatprep.mubr.f32.mxu0 0.0
    %2289 = vmatmul.mubr.f32.gmra.mxu0 %v2056
    %v2290 = vpop.f32.mrf.mxu0
    %v2291 = vadd.f32 %v2078, %v2290
    %v2292 = vpop.f32.mrf.mxu0
    %2293 = vmatprep.mubr.f32.mxu0 0.0
    %2294 = vmatmul.mubr.f32.gmra.mxu0 %v2057
    %v2295 = vpop.f32.mrf.mxu0
    %v2296 = vadd.f32 %v2078, %v2295
    %v2297 = vpop.f32.mrf.mxu0
    %2298 = vmatprep.mubr.f32.mxu0 0.0
    %2299 = vmatmul.mubr.f32.gmra.mxu0 %v2058
    %v2300 = vpop.f32.mrf.mxu0
    %v2301 = vadd.f32 %v2078, %v2300
    %v2302 = vpop.f32.mrf.mxu0
    %2303 = vdwg.mxu0
    %vm2304 = vcmp.gt.f32.partialorder %v2146, 20.0
    %vm2305 = vcmp.gt.f32.partialorder %v2151, 20.0
    %vm2306 = vcmp.gt.f32.partialorder %v2156, 20.0
    %vm2307 = vcmp.gt.f32.partialorder %v2161, 20.0
    %vm2308 = vcmp.gt.f32.partialorder %v2166, 20.0
    %vm2309 = vcmp.gt.f32.partialorder %v2171, 20.0
    %vm2310 = vcmp.gt.f32.partialorder %v2176, 20.0
    %vm2311 = vcmp.gt.f32.partialorder %v2181, 20.0
    %vm2312 = vcmp.gt.f32.partialorder %v2186, 20.0
    %vm2313 = vcmp.gt.f32.partialorder %v2191, 20.0
    %vm2314 = vcmp.gt.f32.partialorder %v2196, 20.0
    %vm2315 = vcmp.gt.f32.partialorder %v2201, 20.0
    %vm2316 = vcmp.gt.f32.partialorder %v2206, 20.0
    %vm2317 = vcmp.gt.f32.partialorder %v2211, 20.0
    %vm2318 = vcmp.gt.f32.partialorder %v2216, 20.0
    %vm2319 = vcmp.gt.f32.partialorder %v2221, 20.0
    %vm2320 = vcmp.gt.f32.partialorder %v2226, 20.0
    %vm2321 = vcmp.gt.f32.partialorder %v2231, 20.0
    %vm2322 = vcmp.gt.f32.partialorder %v2236, 20.0
    %vm2323 = vcmp.gt.f32.partialorder %v2241, 20.0
    %vm2324 = vcmp.gt.f32.partialorder %v2246, 20.0
    %vm2325 = vcmp.gt.f32.partialorder %v2251, 20.0
    %vm2326 = vcmp.gt.f32.partialorder %v2256, 20.0
    %vm2327 = vcmp.gt.f32.partialorder %v2261, 20.0
    %vm2328 = vcmp.gt.f32.partialorder %v2266, 20.0
    %vm2329 = vcmp.gt.f32.partialorder %v2271, 20.0
    %vm2330 = vcmp.gt.f32.partialorder %v2276, 20.0
    %vm2331 = vcmp.gt.f32.partialorder %v2281, 20.0
    %vm2332 = vcmp.gt.f32.partialorder %v2286, 20.0
    %vm2333 = vcmp.gt.f32.partialorder %v2291, 20.0
    %vm2334 = vcmp.gt.f32.partialorder %v2296, 20.0
    %vm2335 = vcmp.gt.f32.partialorder %v2301, 20.0
    %v2336 = vmin.f32 %v2146, 20.0
    %v2337 = vmin.f32 %v2151, 20.0
    %v2338 = vmin.f32 %v2156, 20.0
    %v2339 = vmin.f32 %v2161, 20.0
    %v2340 = vmin.f32 %v2166, 20.0
    %v2341 = vmin.f32 %v2171, 20.0
    %v2342 = vmin.f32 %v2176, 20.0
    %v2343 = vmin.f32 %v2181, 20.0
    %v2344 = vmin.f32 %v2186, 20.0
    %v2345 = vmin.f32 %v2191, 20.0
    %v2346 = vmin.f32 %v2196, 20.0
    %v2347 = vmin.f32 %v2201, 20.0
    %v2348 = vmin.f32 %v2206, 20.0
    %v2349 = vmin.f32 %v2211, 20.0
    %v2350 = vmin.f32 %v2216, 20.0
    %v2351 = vmin.f32 %v2221, 20.0
    %v2352 = vmin.f32 %v2226, 20.0
    %v2353 = vmin.f32 %v2231, 20.0
    %v2354 = vmin.f32 %v2236, 20.0
    %v2355 = vmin.f32 %v2241, 20.0
    %v2356 = vmin.f32 %v2246, 20.0
    %v2357 = vmin.f32 %v2251, 20.0
    %v2358 = vmin.f32 %v2256, 20.0
    %v2359 = vmin.f32 %v2261, 20.0
    %v2360 = vmin.f32 %v2266, 20.0
    %v2361 = vmin.f32 %v2271, 20.0
    %v2362 = vmin.f32 %v2276, 20.0
    %v2363 = vmin.f32 %v2281, 20.0
    %v2364 = vmin.f32 %v2286, 20.0
    %v2365 = vmin.f32 %v2291, 20.0
    %v2366 = vmin.f32 %v2296, 20.0
    %v2367 = vmin.f32 %v2301, 20.0
    %v2368 = vmul.f32 %v2336, 1.442695
    %v2369 = vpow.pop %v2368
    %v2370 = vmul.f32 %v2337, 1.442695
    %v2371 = vpow.pop %v2370
    %v2372 = vmul.f32 %v2338, 1.442695
    %v2373 = vpow.pop %v2372
    %v2374 = vmul.f32 %v2339, 1.442695
    %v2375 = vpow.pop %v2374
    %v2376 = vmul.f32 %v2340, 1.442695
    %v2377 = vpow.pop %v2376
    %v2378 = vmul.f32 %v2341, 1.442695
    %v2379 = vpow.pop %v2378
    %v2380 = vmul.f32 %v2342, 1.442695
    %v2381 = vpow.pop %v2380
    %v2382 = vmul.f32 %v2343, 1.442695
    %v2383 = vpow.pop %v2382
    %v2384 = vmul.f32 %v2344, 1.442695
    %v2385 = vpow.pop %v2384
    %v2386 = vmul.f32 %v2345, 1.442695
    %v2387 = vpow.pop %v2386
    %v2388 = vmul.f32 %v2346, 1.442695
    %v2389 = vpow.pop %v2388
    %v2390 = vmul.f32 %v2347, 1.442695
    %v2391 = vpow.pop %v2390
    %v2392 = vmul.f32 %v2348, 1.442695
    %v2393 = vpow.pop %v2392
    %v2394 = vmul.f32 %v2349, 1.442695
    %v2395 = vpow.pop %v2394
    %v2396 = vmul.f32 %v2350, 1.442695
    %v2397 = vpow.pop %v2396
    %v2398 = vmul.f32 %v2351, 1.442695
    %v2399 = vpow.pop %v2398
    %v2400 = vmul.f32 %v2352, 1.442695
    %v2401 = vpow.pop %v2400
    %v2402 = vmul.f32 %v2353, 1.442695
    %v2403 = vpow.pop %v2402
    %v2404 = vmul.f32 %v2354, 1.442695
    %v2405 = vpow.pop %v2404
    %v2406 = vmul.f32 %v2355, 1.442695
    %v2407 = vpow.pop %v2406
    %v2408 = vmul.f32 %v2356, 1.442695
    %v2409 = vpow.pop %v2408
    %v2410 = vmul.f32 %v2357, 1.442695
    %v2411 = vpow.pop %v2410
    %v2412 = vmul.f32 %v2358, 1.442695
    %v2413 = vpow.pop %v2412
    %v2414 = vmul.f32 %v2359, 1.442695
    %v2415 = vpow.pop %v2414
    %v2416 = vmul.f32 %v2360, 1.442695
    %v2417 = vpow.pop %v2416
    %v2418 = vmul.f32 %v2361, 1.442695
    %v2419 = vpow.pop %v2418
    %v2420 = vmul.f32 %v2362, 1.442695
    %v2421 = vpow.pop %v2420
    %v2422 = vmul.f32 %v2363, 1.442695
    %v2423 = vpow.pop %v2422
    %v2424 = vmul.f32 %v2364, 1.442695
    %v2425 = vpow.pop %v2424
    %v2426 = vmul.f32 %v2365, 1.442695
    %v2427 = vpow.pop %v2426
    %v2428 = vmul.f32 %v2366, 1.442695
    %v2429 = vpow.pop %v2428
    %v2430 = vmul.f32 %v2367, 1.442695
    %v2431 = vpow.pop %v2430
    %v2432 = vadd.f32 %v2369, 1.0
    %v2433 = vlog2.pop %v2432
    %v2434 = vmul.f32 %v2433, 0.6931472
    %v2435 = vmul.f32 -0.5, %v2369
    %v2436 = vadd.f32 %v2435, 1.0
    %v2437 = vmul.f32 %v2436, %v2369
    %v2438 = vand.u32 2147483647, %v2369
    %vm2439 = vcmp.lt.f32.partialorder %v2438, 0.0004427343
    %v2440 = vsel %vm2439, %v2437, %v2434
    %v2441 = vadd.f32 %v2371, 1.0
    %v2442 = vlog2.pop %v2441
    %v2443 = vmul.f32 %v2442, 0.6931472
    %v2444 = vmul.f32 -0.5, %v2371
    %v2445 = vadd.f32 %v2444, 1.0
    %v2446 = vmul.f32 %v2445, %v2371
    %v2447 = vand.u32 2147483647, %v2371
    %vm2448 = vcmp.lt.f32.partialorder %v2447, 0.0004427343
    %v2449 = vsel %vm2448, %v2446, %v2443
    %v2450 = vadd.f32 %v2373, 1.0
    %v2451 = vlog2.pop %v2450
    %v2452 = vmul.f32 %v2451, 0.6931472
    %v2453 = vmul.f32 -0.5, %v2373
    %v2454 = vadd.f32 %v2453, 1.0
    %v2455 = vmul.f32 %v2454, %v2373
    %v2456 = vand.u32 2147483647, %v2373
    %vm2457 = vcmp.lt.f32.partialorder %v2456, 0.0004427343
    %v2458 = vsel %vm2457, %v2455, %v2452
    %v2459 = vadd.f32 %v2375, 1.0
    %v2460 = vlog2.pop %v2459
    %v2461 = vmul.f32 %v2460, 0.6931472
    %v2462 = vmul.f32 -0.5, %v2375
    %v2463 = vadd.f32 %v2462, 1.0
    %v2464 = vmul.f32 %v2463, %v2375
    %v2465 = vand.u32 2147483647, %v2375
    %vm2466 = vcmp.lt.f32.partialorder %v2465, 0.0004427343
    %v2467 = vsel %vm2466, %v2464, %v2461
    %v2468 = vadd.f32 %v2377, 1.0
    %v2469 = vlog2.pop %v2468
    %v2470 = vmul.f32 %v2469, 0.6931472
    %v2471 = vmul.f32 -0.5, %v2377
    %v2472 = vadd.f32 %v2471, 1.0
    %v2473 = vmul.f32 %v2472, %v2377
    %v2474 = vand.u32 2147483647, %v2377
    %vm2475 = vcmp.lt.f32.partialorder %v2474, 0.0004427343
    %v2476 = vsel %vm2475, %v2473, %v2470
    %v2477 = vadd.f32 %v2379, 1.0
    %v2478 = vlog2.pop %v2477
    %v2479 = vmul.f32 %v2478, 0.6931472
    %v2480 = vmul.f32 -0.5, %v2379
    %v2481 = vadd.f32 %v2480, 1.0
    %v2482 = vmul.f32 %v2481, %v2379
    %v2483 = vand.u32 2147483647, %v2379
    %vm2484 = vcmp.lt.f32.partialorder %v2483, 0.0004427343
    %v2485 = vsel %vm2484, %v2482, %v2479
    %v2486 = vadd.f32 %v2381, 1.0
    %v2487 = vlog2.pop %v2486
    %v2488 = vmul.f32 %v2487, 0.6931472
    %v2489 = vmul.f32 -0.5, %v2381
    %v2490 = vadd.f32 %v2489, 1.0
    %v2491 = vmul.f32 %v2490, %v2381
    %v2492 = vand.u32 2147483647, %v2381
    %vm2493 = vcmp.lt.f32.partialorder %v2492, 0.0004427343
    %v2494 = vsel %vm2493, %v2491, %v2488
    %v2495 = vadd.f32 %v2383, 1.0
    %v2496 = vlog2.pop %v2495
    %v2497 = vmul.f32 %v2496, 0.6931472
    %v2498 = vmul.f32 -0.5, %v2383
    %v2499 = vadd.f32 %v2498, 1.0
    %v2500 = vmul.f32 %v2499, %v2383
    %v2501 = vand.u32 2147483647, %v2383
    %vm2502 = vcmp.lt.f32.partialorder %v2501, 0.0004427343
    %v2503 = vsel %vm2502, %v2500, %v2497
    %v2504 = vadd.f32 %v2385, 1.0
    %v2505 = vlog2.pop %v2504
    %v2506 = vmul.f32 %v2505, 0.6931472
    %v2507 = vmul.f32 -0.5, %v2385
    %v2508 = vadd.f32 %v2507, 1.0
    %v2509 = vmul.f32 %v2508, %v2385
    %v2510 = vand.u32 2147483647, %v2385
    %vm2511 = vcmp.lt.f32.partialorder %v2510, 0.0004427343
    %v2512 = vsel %vm2511, %v2509, %v2506
    %v2513 = vadd.f32 %v2387, 1.0
    %v2514 = vlog2.pop %v2513
    %v2515 = vmul.f32 %v2514, 0.6931472
    %v2516 = vmul.f32 -0.5, %v2387
    %v2517 = vadd.f32 %v2516, 1.0
    %v2518 = vmul.f32 %v2517, %v2387
    %v2519 = vand.u32 2147483647, %v2387
    %vm2520 = vcmp.lt.f32.partialorder %v2519, 0.0004427343
    %v2521 = vsel %vm2520, %v2518, %v2515
    %v2522 = vadd.f32 %v2389, 1.0
    %v2523 = vlog2.pop %v2522
    %v2524 = vmul.f32 %v2523, 0.6931472
    %v2525 = vmul.f32 -0.5, %v2389
    %v2526 = vadd.f32 %v2525, 1.0
    %v2527 = vmul.f32 %v2526, %v2389
    %v2528 = vand.u32 2147483647, %v2389
    %vm2529 = vcmp.lt.f32.partialorder %v2528, 0.0004427343
    %v2530 = vsel %vm2529, %v2527, %v2524
    %v2531 = vadd.f32 %v2391, 1.0
    %v2532 = vlog2.pop %v2531
    %v2533 = vmul.f32 %v2532, 0.6931472
    %v2534 = vmul.f32 -0.5, %v2391
    %v2535 = vadd.f32 %v2534, 1.0
    %v2536 = vmul.f32 %v2535, %v2391
    %v2537 = vand.u32 2147483647, %v2391
    %vm2538 = vcmp.lt.f32.partialorder %v2537, 0.0004427343
    %v2539 = vsel %vm2538, %v2536, %v2533
    %v2540 = vadd.f32 %v2393, 1.0
    %v2541 = vlog2.pop %v2540
    %v2542 = vmul.f32 %v2541, 0.6931472
    %v2543 = vmul.f32 -0.5, %v2393
    %v2544 = vadd.f32 %v2543, 1.0
    %v2545 = vmul.f32 %v2544, %v2393
    %v2546 = vand.u32 2147483647, %v2393
    %vm2547 = vcmp.lt.f32.partialorder %v2546, 0.0004427343
    %v2548 = vsel %vm2547, %v2545, %v2542
    %v2549 = vadd.f32 %v2395, 1.0
    %v2550 = vlog2.pop %v2549
    %v2551 = vmul.f32 %v2550, 0.6931472
    %v2552 = vmul.f32 -0.5, %v2395
    %v2553 = vadd.f32 %v2552, 1.0
    %v2554 = vmul.f32 %v2553, %v2395
    %v2555 = vand.u32 2147483647, %v2395
    %vm2556 = vcmp.lt.f32.partialorder %v2555, 0.0004427343
    %v2557 = vsel %vm2556, %v2554, %v2551
    %v2558 = vadd.f32 %v2397, 1.0
    %v2559 = vlog2.pop %v2558
    %v2560 = vmul.f32 %v2559, 0.6931472
    %v2561 = vmul.f32 -0.5, %v2397
    %v2562 = vadd.f32 %v2561, 1.0
    %v2563 = vmul.f32 %v2562, %v2397
    %v2564 = vand.u32 2147483647, %v2397
    %vm2565 = vcmp.lt.f32.partialorder %v2564, 0.0004427343
    %v2566 = vsel %vm2565, %v2563, %v2560
    %v2567 = vadd.f32 %v2399, 1.0
    %v2568 = vlog2.pop %v2567
    %v2569 = vmul.f32 %v2568, 0.6931472
    %v2570 = vmul.f32 -0.5, %v2399
    %v2571 = vadd.f32 %v2570, 1.0
    %v2572 = vmul.f32 %v2571, %v2399
    %v2573 = vand.u32 2147483647, %v2399
    %vm2574 = vcmp.lt.f32.partialorder %v2573, 0.0004427343
    %v2575 = vsel %vm2574, %v2572, %v2569
    %v2576 = vadd.f32 %v2401, 1.0
    %v2577 = vlog2.pop %v2576
    %v2578 = vmul.f32 %v2577, 0.6931472
    %v2579 = vmul.f32 -0.5, %v2401
    %v2580 = vadd.f32 %v2579, 1.0
    %v2581 = vmul.f32 %v2580, %v2401
    %v2582 = vand.u32 2147483647, %v2401
    %vm2583 = vcmp.lt.f32.partialorder %v2582, 0.0004427343
    %v2584 = vsel %vm2583, %v2581, %v2578
    %v2585 = vadd.f32 %v2403, 1.0
    %v2586 = vlog2.pop %v2585
    %v2587 = vmul.f32 %v2586, 0.6931472
    %v2588 = vmul.f32 -0.5, %v2403
    %v2589 = vadd.f32 %v2588, 1.0
    %v2590 = vmul.f32 %v2589, %v2403
    %v2591 = vand.u32 2147483647, %v2403
    %vm2592 = vcmp.lt.f32.partialorder %v2591, 0.0004427343
    %v2593 = vsel %vm2592, %v2590, %v2587
    %v2594 = vadd.f32 %v2405, 1.0
    %v2595 = vlog2.pop %v2594
    %v2596 = vmul.f32 %v2595, 0.6931472
    %v2597 = vmul.f32 -0.5, %v2405
    %v2598 = vadd.f32 %v2597, 1.0
    %v2599 = vmul.f32 %v2598, %v2405
    %v2600 = vand.u32 2147483647, %v2405
    %vm2601 = vcmp.lt.f32.partialorder %v2600, 0.0004427343
    %v2602 = vsel %vm2601, %v2599, %v2596
    %v2603 = vadd.f32 %v2407, 1.0
    %v2604 = vlog2.pop %v2603
    %v2605 = vmul.f32 %v2604, 0.6931472
    %v2606 = vmul.f32 -0.5, %v2407
    %v2607 = vadd.f32 %v2606, 1.0
    %v2608 = vmul.f32 %v2607, %v2407
    %v2609 = vand.u32 2147483647, %v2407
    %vm2610 = vcmp.lt.f32.partialorder %v2609, 0.0004427343
    %v2611 = vsel %vm2610, %v2608, %v2605
    %v2612 = vadd.f32 %v2409, 1.0
    %v2613 = vlog2.pop %v2612
    %v2614 = vmul.f32 %v2613, 0.6931472
    %v2615 = vmul.f32 -0.5, %v2409
    %v2616 = vadd.f32 %v2615, 1.0
    %v2617 = vmul.f32 %v2616, %v2409
    %v2618 = vand.u32 2147483647, %v2409
    %vm2619 = vcmp.lt.f32.partialorder %v2618, 0.0004427343
    %v2620 = vsel %vm2619, %v2617, %v2614
    %v2621 = vadd.f32 %v2411, 1.0
    %v2622 = vlog2.pop %v2621
    %v2623 = vmul.f32 %v2622, 0.6931472
    %v2624 = vmul.f32 -0.5, %v2411
    %v2625 = vadd.f32 %v2624, 1.0
    %v2626 = vmul.f32 %v2625, %v2411
    %v2627 = vand.u32 2147483647, %v2411
    %vm2628 = vcmp.lt.f32.partialorder %v2627, 0.0004427343
    %v2629 = vsel %vm2628, %v2626, %v2623
    %v2630 = vadd.f32 %v2413, 1.0
    %v2631 = vlog2.pop %v2630
    %v2632 = vmul.f32 %v2631, 0.6931472
    %v2633 = vmul.f32 -0.5, %v2413
    %v2634 = vadd.f32 %v2633, 1.0
    %v2635 = vmul.f32 %v2634, %v2413
    %v2636 = vand.u32 2147483647, %v2413
    %vm2637 = vcmp.lt.f32.partialorder %v2636, 0.0004427343
    %v2638 = vsel %vm2637, %v2635, %v2632
    %v2639 = vadd.f32 %v2415, 1.0
    %v2640 = vlog2.pop %v2639
    %v2641 = vmul.f32 %v2640, 0.6931472
    %v2642 = vmul.f32 -0.5, %v2415
    %v2643 = vadd.f32 %v2642, 1.0
    %v2644 = vmul.f32 %v2643, %v2415
    %v2645 = vand.u32 2147483647, %v2415
    %vm2646 = vcmp.lt.f32.partialorder %v2645, 0.0004427343
    %v2647 = vsel %vm2646, %v2644, %v2641
    %v2648 = vadd.f32 %v2417, 1.0
    %v2649 = vlog2.pop %v2648
    %v2650 = vmul.f32 %v2649, 0.6931472
    %v2651 = vmul.f32 -0.5, %v2417
    %v2652 = vadd.f32 %v2651, 1.0
    %v2653 = vmul.f32 %v2652, %v2417
    %v2654 = vand.u32 2147483647, %v2417
    %vm2655 = vcmp.lt.f32.partialorder %v2654, 0.0004427343
    %v2656 = vsel %vm2655, %v2653, %v2650
    %v2657 = vadd.f32 %v2419, 1.0
    %v2658 = vlog2.pop %v2657
    %v2659 = vmul.f32 %v2658, 0.6931472
    %v2660 = vmul.f32 -0.5, %v2419
    %v2661 = vadd.f32 %v2660, 1.0
    %v2662 = vmul.f32 %v2661, %v2419
    %v2663 = vand.u32 2147483647, %v2419
    %vm2664 = vcmp.lt.f32.partialorder %v2663, 0.0004427343
    %v2665 = vsel %vm2664, %v2662, %v2659
    %v2666 = vadd.f32 %v2421, 1.0
    %v2667 = vlog2.pop %v2666
    %v2668 = vmul.f32 %v2667, 0.6931472
    %v2669 = vmul.f32 -0.5, %v2421
    %v2670 = vadd.f32 %v2669, 1.0
    %v2671 = vmul.f32 %v2670, %v2421
    %v2672 = vand.u32 2147483647, %v2421
    %vm2673 = vcmp.lt.f32.partialorder %v2672, 0.0004427343
    %v2674 = vsel %vm2673, %v2671, %v2668
    %v2675 = vadd.f32 %v2423, 1.0
    %v2676 = vlog2.pop %v2675
    %v2677 = vmul.f32 %v2676, 0.6931472
    %v2678 = vmul.f32 -0.5, %v2423
    %v2679 = vadd.f32 %v2678, 1.0
    %v2680 = vmul.f32 %v2679, %v2423
    %v2681 = vand.u32 2147483647, %v2423
    %vm2682 = vcmp.lt.f32.partialorder %v2681, 0.0004427343
    %v2683 = vsel %vm2682, %v2680, %v2677
    %v2684 = vadd.f32 %v2425, 1.0
    %v2685 = vlog2.pop %v2684
    %v2686 = vmul.f32 %v2685, 0.6931472
    %v2687 = vmul.f32 -0.5, %v2425
    %v2688 = vadd.f32 %v2687, 1.0
    %v2689 = vmul.f32 %v2688, %v2425
    %v2690 = vand.u32 2147483647, %v2425
    %vm2691 = vcmp.lt.f32.partialorder %v2690, 0.0004427343
    %v2692 = vsel %vm2691, %v2689, %v2686
    %v2693 = vadd.f32 %v2427, 1.0
    %v2694 = vlog2.pop %v2693
    %v2695 = vmul.f32 %v2694, 0.6931472
    %v2696 = vmul.f32 -0.5, %v2427
    %v2697 = vadd.f32 %v2696, 1.0
    %v2698 = vmul.f32 %v2697, %v2427
    %v2699 = vand.u32 2147483647, %v2427
    %vm2700 = vcmp.lt.f32.partialorder %v2699, 0.0004427343
    %v2701 = vsel %vm2700, %v2698, %v2695
    %v2702 = vadd.f32 %v2429, 1.0
    %v2703 = vlog2.pop %v2702
    %v2704 = vmul.f32 %v2703, 0.6931472
    %v2705 = vmul.f32 -0.5, %v2429
    %v2706 = vadd.f32 %v2705, 1.0
    %v2707 = vmul.f32 %v2706, %v2429
    %v2708 = vand.u32 2147483647, %v2429
    %vm2709 = vcmp.lt.f32.partialorder %v2708, 0.0004427343
    %v2710 = vsel %vm2709, %v2707, %v2704
    %v2711 = vadd.f32 %v2431, 1.0
    %v2712 = vlog2.pop %v2711
    %v2713 = vmul.f32 %v2712, 0.6931472
    %v2714 = vmul.f32 -0.5, %v2431
    %v2715 = vadd.f32 %v2714, 1.0
    %v2716 = vmul.f32 %v2715, %v2431
    %v2717 = vand.u32 2147483647, %v2431
    %vm2718 = vcmp.lt.f32.partialorder %v2717, 0.0004427343
    %v2719 = vsel %vm2718, %v2716, %v2713
    %v2720 = vsel %vm2304, %v2146, %v2440
    %v2721 = vsel %vm2305, %v2151, %v2449
    %v2722 = vsel %vm2306, %v2156, %v2458
    %v2723 = vsel %vm2307, %v2161, %v2467
    %v2724 = vsel %vm2308, %v2166, %v2476
    %v2725 = vsel %vm2309, %v2171, %v2485
    %v2726 = vsel %vm2310, %v2176, %v2494
    %v2727 = vsel %vm2311, %v2181, %v2503
    %v2728 = vsel %vm2312, %v2186, %v2512
    %v2729 = vsel %vm2313, %v2191, %v2521
    %v2730 = vsel %vm2314, %v2196, %v2530
    %v2731 = vsel %vm2315, %v2201, %v2539
    %v2732 = vsel %vm2316, %v2206, %v2548
    %v2733 = vsel %vm2317, %v2211, %v2557
    %v2734 = vsel %vm2318, %v2216, %v2566
    %v2735 = vsel %vm2319, %v2221, %v2575
    %v2736 = vsel %vm2320, %v2226, %v2584
    %v2737 = vsel %vm2321, %v2231, %v2593
    %v2738 = vsel %vm2322, %v2236, %v2602
    %v2739 = vsel %vm2323, %v2241, %v2611
    %v2740 = vsel %vm2324, %v2246, %v2620
    %v2741 = vsel %vm2325, %v2251, %v2629
    %v2742 = vsel %vm2326, %v2256, %v2638
    %v2743 = vsel %vm2327, %v2261, %v2647
    %v2744 = vsel %vm2328, %v2266, %v2656
    %v2745 = vsel %vm2329, %v2271, %v2665
    %v2746 = vsel %vm2330, %v2276, %v2674
    %v2747 = vsel %vm2331, %v2281, %v2683
    %v2748 = vsel %vm2332, %v2286, %v2692
    %v2749 = vsel %vm2333, %v2291, %v2701
    %v2750 = vsel %vm2334, %v2296, %v2710
    %v2751 = vsel %vm2335, %v2301, %v2719
    %v2752 = vadd.f32 %v2720, 0.001
    %v2753 = vadd.f32 %v2721, 0.001
    %v2754 = vadd.f32 %v2722, 0.001
    %v2755 = vadd.f32 %v2723, 0.001
    %v2756 = vadd.f32 %v2724, 0.001
    %v2757 = vadd.f32 %v2725, 0.001
    %v2758 = vadd.f32 %v2726, 0.001
    %v2759 = vadd.f32 %v2727, 0.001
    %v2760 = vadd.f32 %v2728, 0.001
    %v2761 = vadd.f32 %v2729, 0.001
    %v2762 = vadd.f32 %v2730, 0.001
    %v2763 = vadd.f32 %v2731, 0.001
    %v2764 = vadd.f32 %v2732, 0.001
    %v2765 = vadd.f32 %v2733, 0.001
    %v2766 = vadd.f32 %v2734, 0.001
    %v2767 = vadd.f32 %v2735, 0.001
    %v2768 = vadd.f32 %v2736, 0.001
    %v2769 = vadd.f32 %v2737, 0.001
    %v2770 = vadd.f32 %v2738, 0.001
    %v2771 = vadd.f32 %v2739, 0.001
    %v2772 = vadd.f32 %v2740, 0.001
    %v2773 = vadd.f32 %v2741, 0.001
    %v2774 = vadd.f32 %v2742, 0.001
    %v2775 = vadd.f32 %v2743, 0.001
    %v2776 = vadd.f32 %v2744, 0.001
    %v2777 = vadd.f32 %v2745, 0.001
    %v2778 = vadd.f32 %v2746, 0.001
    %v2779 = vadd.f32 %v2747, 0.001
    %v2780 = vadd.f32 %v2748, 0.001
    %v2781 = vadd.f32 %v2749, 0.001
    %v2782 = vadd.f32 %v2750, 0.001
    %v2783 = vadd.f32 %v2751, 0.001
    %vm2784 = vcmp.lt.s32.totalorder %v55, 5
    %vm2785 = vcmp.ge.s32.totalorder %v55, 5
    %vm2786 = vcmp.lt.s32.totalorder %v55, 10
    %vm2787 = vmand %vm2785, %vm2786
    %vm2788 = vcmp.eq.s32.totalorder %v55, 10
    %v2789 = vsel %vm2784, %v2752, 0.0
    %v2790 = vsel %vm2784, %v2753, 0.0
    %v2791 = vsel %vm2784, %v2754, 0.0
    %v2792 = vsel %vm2784, %v2755, 0.0
    %v2793 = vsel %vm2784, %v2756, 0.0
    %v2794 = vsel %vm2784, %v2757, 0.0
    %v2795 = vsel %vm2784, %v2758, 0.0
    %v2796 = vsel %vm2784, %v2759, 0.0
    %v2797 = vsel %vm2784, %v2760, 0.0
    %v2798 = vsel %vm2784, %v2761, 0.0
    %v2799 = vsel %vm2784, %v2762, 0.0
    %v2800 = vsel %vm2784, %v2763, 0.0
    %v2801 = vsel %vm2784, %v2764, 0.0
    %v2802 = vsel %vm2784, %v2765, 0.0
    %v2803 = vsel %vm2784, %v2766, 0.0
    %v2804 = vsel %vm2784, %v2767, 0.0
    %v2805 = vsel %vm2784, %v2768, 0.0
    %v2806 = vsel %vm2784, %v2769, 0.0
    %v2807 = vsel %vm2784, %v2770, 0.0
    %v2808 = vsel %vm2784, %v2771, 0.0
    %v2809 = vsel %vm2784, %v2772, 0.0
    %v2810 = vsel %vm2784, %v2773, 0.0
    %v2811 = vsel %vm2784, %v2774, 0.0
    %v2812 = vsel %vm2784, %v2775, 0.0
    %v2813 = vsel %vm2784, %v2776, 0.0
    %v2814 = vsel %vm2784, %v2777, 0.0
    %v2815 = vsel %vm2784, %v2778, 0.0
    %v2816 = vsel %vm2784, %v2779, 0.0
    %v2817 = vsel %vm2784, %v2780, 0.0
    %v2818 = vsel %vm2784, %v2781, 0.0
    %v2819 = vsel %vm2784, %v2782, 0.0
    %v2820 = vsel %vm2784, %v2783, 0.0
    %2821 = vadd.xlane.f32.xlu0 %v2789
    %v2822 = vpop.xlane.xlu0 %2821
    %2823 = vadd.xlane.f32.xlu0 %v2790
    %v2824 = vpop.xlane.xlu0 %2823
    %2825 = vadd.xlane.f32.xlu0 %v2791
    %v2826 = vpop.xlane.xlu0 %2825
    %2827 = vadd.xlane.f32.xlu0 %v2792
    %v2828 = vpop.xlane.xlu0 %2827
    %2829 = vadd.xlane.f32.xlu0 %v2793
    %v2830 = vpop.xlane.xlu0 %2829
    %2831 = vadd.xlane.f32.xlu0 %v2794
    %v2832 = vpop.xlane.xlu0 %2831
    %2833 = vadd.xlane.f32.xlu0 %v2795
    %v2834 = vpop.xlane.xlu0 %2833
    %2835 = vadd.xlane.f32.xlu0 %v2796
    %v2836 = vpop.xlane.xlu0 %2835
    %2837 = vadd.xlane.f32.xlu0 %v2797
    %v2838 = vpop.xlane.xlu0 %2837
    %2839 = vadd.xlane.f32.xlu0 %v2798
    %v2840 = vpop.xlane.xlu0 %2839
    %2841 = vadd.xlane.f32.xlu0 %v2799
    %v2842 = vpop.xlane.xlu0 %2841
    %2843 = vadd.xlane.f32.xlu0 %v2800
    %v2844 = vpop.xlane.xlu0 %2843
    %2845 = vadd.xlane.f32.xlu0 %v2801
    %v2846 = vpop.xlane.xlu0 %2845
    %2847 = vadd.xlane.f32.xlu0 %v2802
    %v2848 = vpop.xlane.xlu0 %2847
    %2849 = vadd.xlane.f32.xlu0 %v2803
    %v2850 = vpop.xlane.xlu0 %2849
    %2851 = vadd.xlane.f32.xlu0 %v2804
    %v2852 = vpop.xlane.xlu0 %2851
    %2853 = vadd.xlane.f32.xlu0 %v2805
    %v2854 = vpop.xlane.xlu0 %2853
    %2855 = vadd.xlane.f32.xlu0 %v2806
    %v2856 = vpop.xlane.xlu0 %2855
    %2857 = vadd.xlane.f32.xlu0 %v2807
    %v2858 = vpop.xlane.xlu0 %2857
    %2859 = vadd.xlane.f32.xlu0 %v2808
    %v2860 = vpop.xlane.xlu0 %2859
    %2861 = vadd.xlane.f32.xlu0 %v2809
    %v2862 = vpop.xlane.xlu0 %2861
    %2863 = vadd.xlane.f32.xlu0 %v2810
    %v2864 = vpop.xlane.xlu0 %2863
    %2865 = vadd.xlane.f32.xlu0 %v2811
    %v2866 = vpop.xlane.xlu0 %2865
    %2867 = vadd.xlane.f32.xlu0 %v2812
    %v2868 = vpop.xlane.xlu0 %2867
    %2869 = vadd.xlane.f32.xlu0 %v2813
    %v2870 = vpop.xlane.xlu0 %2869
    %2871 = vadd.xlane.f32.xlu0 %v2814
    %v2872 = vpop.xlane.xlu0 %2871
    %2873 = vadd.xlane.f32.xlu0 %v2815
    %v2874 = vpop.xlane.xlu0 %2873
    %2875 = vadd.xlane.f32.xlu0 %v2816
    %v2876 = vpop.xlane.xlu0 %2875
    %2877 = vadd.xlane.f32.xlu0 %v2817
    %v2878 = vpop.xlane.xlu0 %2877
    %2879 = vadd.xlane.f32.xlu0 %v2818
    %v2880 = vpop.xlane.xlu0 %2879
    %2881 = vadd.xlane.f32.xlu0 %v2819
    %v2882 = vpop.xlane.xlu0 %2881
    %2883 = vadd.xlane.f32.xlu0 %v2820
    %v2884 = vpop.xlane.xlu0 %2883
    %v2885 = vrcp.pop %v2822
    %v2886 = vrcp.pop %v2824
    %v2887 = vrcp.pop %v2826
    %v2888 = vrcp.pop %v2828
    %v2889 = vrcp.pop %v2830
    %v2890 = vrcp.pop %v2832
    %v2891 = vrcp.pop %v2834
    %v2892 = vrcp.pop %v2836
    %v2893 = vrcp.pop %v2838
    %v2894 = vrcp.pop %v2840
    %v2895 = vrcp.pop %v2842
    %v2896 = vrcp.pop %v2844
    %v2897 = vrcp.pop %v2846
    %v2898 = vrcp.pop %v2848
    %v2899 = vrcp.pop %v2850
    %v2900 = vrcp.pop %v2852
    %v2901 = vrcp.pop %v2854
    %v2902 = vrcp.pop %v2856
    %v2903 = vrcp.pop %v2858
    %v2904 = vrcp.pop %v2860
    %v2905 = vrcp.pop %v2862
    %v2906 = vrcp.pop %v2864
    %v2907 = vrcp.pop %v2866
    %v2908 = vrcp.pop %v2868
    %v2909 = vrcp.pop %v2870
    %v2910 = vrcp.pop %v2872
    %v2911 = vrcp.pop %v2874
    %v2912 = vrcp.pop %v2876
    %v2913 = vrcp.pop %v2878
    %v2914 = vrcp.pop %v2880
    %v2915 = vrcp.pop %v2882
    %v2916 = vrcp.pop %v2884
    %v2917 = vmul.f32 %v2822, %v2885
    %v2918 = vmul.f32 %v2824, %v2886
    %v2919 = vmul.f32 %v2826, %v2887
    %v2920 = vmul.f32 %v2828, %v2888
    %v2921 = vmul.f32 %v2830, %v2889
    %v2922 = vmul.f32 %v2832, %v2890
    %v2923 = vmul.f32 %v2834, %v2891
    %v2924 = vmul.f32 %v2836, %v2892
    %v2925 = vmul.f32 %v2838, %v2893
    %v2926 = vmul.f32 %v2840, %v2894
    %v2927 = vmul.f32 %v2842, %v2895
    %v2928 = vmul.f32 %v2844, %v2896
    %v2929 = vmul.f32 %v2846, %v2897
    %v2930 = vmul.f32 %v2848, %v2898
    %v2931 = vmul.f32 %v2850, %v2899
    %v2932 = vmul.f32 %v2852, %v2900
    %v2933 = vmul.f32 %v2854, %v2901
    %v2934 = vmul.f32 %v2856, %v2902
    %v2935 = vmul.f32 %v2858, %v2903
    %v2936 = vmul.f32 %v2860, %v2904
    %v2937 = vmul.f32 %v2862, %v2905
    %v2938 = vmul.f32 %v2864, %v2906
    %v2939 = vmul.f32 %v2866, %v2907
    %v2940 = vmul.f32 %v2868, %v2908
    %v2941 = vmul.f32 %v2870, %v2909
    %v2942 = vmul.f32 %v2872, %v2910
    %v2943 = vmul.f32 %v2874, %v2911
    %v2944 = vmul.f32 %v2876, %v2912
    %v2945 = vmul.f32 %v2878, %v2913
    %v2946 = vmul.f32 %v2880, %v2914
    %v2947 = vmul.f32 %v2882, %v2915
    %v2948 = vmul.f32 %v2884, %v2916
    %v2949 = vsub.f32 2.0, %v2917
    %v2950 = vsub.f32 2.0, %v2918
    %v2951 = vsub.f32 2.0, %v2919
    %v2952 = vsub.f32 2.0, %v2920
    %v2953 = vsub.f32 2.0, %v2921
    %v2954 = vsub.f32 2.0, %v2922
    %v2955 = vsub.f32 2.0, %v2923
    %v2956 = vsub.f32 2.0, %v2924
    %v2957 = vsub.f32 2.0, %v2925
    %v2958 = vsub.f32 2.0, %v2926
    %v2959 = vsub.f32 2.0, %v2927
    %v2960 = vsub.f32 2.0, %v2928
    %v2961 = vsub.f32 2.0, %v2929
    %v2962 = vsub.f32 2.0, %v2930
    %v2963 = vsub.f32 2.0, %v2931
    %v2964 = vsub.f32 2.0, %v2932
    %v2965 = vsub.f32 2.0, %v2933
    %v2966 = vsub.f32 2.0, %v2934
    %v2967 = vsub.f32 2.0, %v2935
    %v2968 = vsub.f32 2.0, %v2936
    %v2969 = vsub.f32 2.0, %v2937
    %v2970 = vsub.f32 2.0, %v2938
    %v2971 = vsub.f32 2.0, %v2939
    %v2972 = vsub.f32 2.0, %v2940
    %v2973 = vsub.f32 2.0, %v2941
    %v2974 = vsub.f32 2.0, %v2942
    %v2975 = vsub.f32 2.0, %v2943
    %v2976 = vsub.f32 2.0, %v2944
    %v2977 = vsub.f32 2.0, %v2945
    %v2978 = vsub.f32 2.0, %v2946
    %v2979 = vsub.f32 2.0, %v2947
    %v2980 = vsub.f32 2.0, %v2948
    %v2981 = vmul.f32 %v2885, %v2949
    %v2982 = vmul.f32 %v2886, %v2950
    %v2983 = vmul.f32 %v2887, %v2951
    %v2984 = vmul.f32 %v2888, %v2952
    %v2985 = vmul.f32 %v2889, %v2953
    %v2986 = vmul.f32 %v2890, %v2954
    %v2987 = vmul.f32 %v2891, %v2955
    %v2988 = vmul.f32 %v2892, %v2956
    %v2989 = vmul.f32 %v2893, %v2957
    %v2990 = vmul.f32 %v2894, %v2958
    %v2991 = vmul.f32 %v2895, %v2959
    %v2992 = vmul.f32 %v2896, %v2960
    %v2993 = vmul.f32 %v2897, %v2961
    %v2994 = vmul.f32 %v2898, %v2962
    %v2995 = vmul.f32 %v2899, %v2963
    %v2996 = vmul.f32 %v2900, %v2964
    %v2997 = vmul.f32 %v2901, %v2965
    %v2998 = vmul.f32 %v2902, %v2966
    %v2999 = vmul.f32 %v2903, %v2967
    %v3000 = vmul.f32 %v2904, %v2968
    %v3001 = vmul.f32 %v2905, %v2969
    %v3002 = vmul.f32 %v2906, %v2970
    %v3003 = vmul.f32 %v2907, %v2971
    %v3004 = vmul.f32 %v2908, %v2972
    %v3005 = vmul.f32 %v2909, %v2973
    %v3006 = vmul.f32 %v2910, %v2974
    %v3007 = vmul.f32 %v2911, %v2975
    %v3008 = vmul.f32 %v2912, %v2976
    %v3009 = vmul.f32 %v2913, %v2977
    %v3010 = vmul.f32 %v2914, %v2978
    %v3011 = vmul.f32 %v2915, %v2979
    %v3012 = vmul.f32 %v2916, %v2980
    %v3013 = vsel %vm2787, %v2752, 0.0
    %v3014 = vsel %vm2787, %v2753, 0.0
    %v3015 = vsel %vm2787, %v2754, 0.0
    %v3016 = vsel %vm2787, %v2755, 0.0
    %v3017 = vsel %vm2787, %v2756, 0.0
    %v3018 = vsel %vm2787, %v2757, 0.0
    %v3019 = vsel %vm2787, %v2758, 0.0
    %v3020 = vsel %vm2787, %v2759, 0.0
    %v3021 = vsel %vm2787, %v2760, 0.0
    %v3022 = vsel %vm2787, %v2761, 0.0
    %v3023 = vsel %vm2787, %v2762, 0.0
    %v3024 = vsel %vm2787, %v2763, 0.0
    %v3025 = vsel %vm2787, %v2764, 0.0
    %v3026 = vsel %vm2787, %v2765, 0.0
    %v3027 = vsel %vm2787, %v2766, 0.0
    %v3028 = vsel %vm2787, %v2767, 0.0
    %v3029 = vsel %vm2787, %v2768, 0.0
    %v3030 = vsel %vm2787, %v2769, 0.0
    %v3031 = vsel %vm2787, %v2770, 0.0
    %v3032 = vsel %vm2787, %v2771, 0.0
    %v3033 = vsel %vm2787, %v2772, 0.0
    %v3034 = vsel %vm2787, %v2773, 0.0
    %v3035 = vsel %vm2787, %v2774, 0.0
    %v3036 = vsel %vm2787, %v2775, 0.0
    %v3037 = vsel %vm2787, %v2776, 0.0
    %v3038 = vsel %vm2787, %v2777, 0.0
    %v3039 = vsel %vm2787, %v2778, 0.0
    %v3040 = vsel %vm2787, %v2779, 0.0
    %v3041 = vsel %vm2787, %v2780, 0.0
    %v3042 = vsel %vm2787, %v2781, 0.0
    %v3043 = vsel %vm2787, %v2782, 0.0
    %v3044 = vsel %vm2787, %v2783, 0.0
    %v3045 = vmul.f32 %v3013, %v2981
    %v3046 = vmul.f32 %v3014, %v2982
    %v3047 = vmul.f32 %v3015, %v2983
    %v3048 = vmul.f32 %v3016, %v2984
    %v3049 = vmul.f32 %v3017, %v2985
    %v3050 = vmul.f32 %v3018, %v2986
    %v3051 = vmul.f32 %v3019, %v2987
    %v3052 = vmul.f32 %v3020, %v2988
    %v3053 = vmul.f32 %v3021, %v2989
    %v3054 = vmul.f32 %v3022, %v2990
    %v3055 = vmul.f32 %v3023, %v2991
    %v3056 = vmul.f32 %v3024, %v2992
    %v3057 = vmul.f32 %v3025, %v2993
    %v3058 = vmul.f32 %v3026, %v2994
    %v3059 = vmul.f32 %v3027, %v2995
    %v3060 = vmul.f32 %v3028, %v2996
    %v3061 = vmul.f32 %v3029, %v2997
    %v3062 = vmul.f32 %v3030, %v2998
    %v3063 = vmul.f32 %v3031, %v2999
    %v3064 = vmul.f32 %v3032, %v3000
    %v3065 = vmul.f32 %v3033, %v3001
    %v3066 = vmul.f32 %v3034, %v3002
    %v3067 = vmul.f32 %v3035, %v3003
    %v3068 = vmul.f32 %v3036, %v3004
    %v3069 = vmul.f32 %v3037, %v3005
    %v3070 = vmul.f32 %v3038, %v3006
    %v3071 = vmul.f32 %v3039, %v3007
    %v3072 = vmul.f32 %v3040, %v3008
    %v3073 = vmul.f32 %v3041, %v3009
    %v3074 = vmul.f32 %v3042, %v3010
    %v3075 = vmul.f32 %v3043, %v3011
    %v3076 = vmul.f32 %v3044, %v3012
    %v3077 = vsel %vm2788, %v2146, 0.0
    %v3078 = vsel %vm2788, %v2151, 0.0
    %v3079 = vsel %vm2788, %v2156, 0.0
    %v3080 = vsel %vm2788, %v2161, 0.0
    %v3081 = vsel %vm2788, %v2166, 0.0
    %v3082 = vsel %vm2788, %v2171, 0.0
    %v3083 = vsel %vm2788, %v2176, 0.0
    %v3084 = vsel %vm2788, %v2181, 0.0
    %v3085 = vsel %vm2788, %v2186, 0.0
    %v3086 = vsel %vm2788, %v2191, 0.0
    %v3087 = vsel %vm2788, %v2196, 0.0
    %v3088 = vsel %vm2788, %v2201, 0.0
    %v3089 = vsel %vm2788, %v2206, 0.0
    %v3090 = vsel %vm2788, %v2211, 0.0
    %v3091 = vsel %vm2788, %v2216, 0.0
    %v3092 = vsel %vm2788, %v2221, 0.0
    %v3093 = vsel %vm2788, %v2226, 0.0
    %v3094 = vsel %vm2788, %v2231, 0.0
    %v3095 = vsel %vm2788, %v2236, 0.0
    %v3096 = vsel %vm2788, %v2241, 0.0
    %v3097 = vsel %vm2788, %v2246, 0.0
    %v3098 = vsel %vm2788, %v2251, 0.0
    %v3099 = vsel %vm2788, %v2256, 0.0
    %v3100 = vsel %vm2788, %v2261, 0.0
    %v3101 = vsel %vm2788, %v2266, 0.0
    %v3102 = vsel %vm2788, %v2271, 0.0
    %v3103 = vsel %vm2788, %v2276, 0.0
    %v3104 = vsel %vm2788, %v2281, 0.0
    %v3105 = vsel %vm2788, %v2286, 0.0
    %v3106 = vsel %vm2788, %v2291, 0.0
    %v3107 = vsel %vm2788, %v2296, 0.0
    %v3108 = vsel %vm2788, %v2301, 0.0
    %v3109 = vadd.f32 %v2789, %v3045
    %v3110 = vadd.f32 %v2790, %v3046
    %v3111 = vadd.f32 %v2791, %v3047
    %v3112 = vadd.f32 %v2792, %v3048
    %v3113 = vadd.f32 %v2793, %v3049
    %v3114 = vadd.f32 %v2794, %v3050
    %v3115 = vadd.f32 %v2795, %v3051
    %v3116 = vadd.f32 %v2796, %v3052
    %v3117 = vadd.f32 %v2797, %v3053
    %v3118 = vadd.f32 %v2798, %v3054
    %v3119 = vadd.f32 %v2799, %v3055
    %v3120 = vadd.f32 %v2800, %v3056
    %v3121 = vadd.f32 %v2801, %v3057
    %v3122 = vadd.f32 %v2802, %v3058
    %v3123 = vadd.f32 %v2803, %v3059
    %v3124 = vadd.f32 %v2804, %v3060
    %v3125 = vadd.f32 %v2805, %v3061
    %v3126 = vadd.f32 %v2806, %v3062
    %v3127 = vadd.f32 %v2807, %v3063
    %v3128 = vadd.f32 %v2808, %v3064
    %v3129 = vadd.f32 %v2809, %v3065
    %v3130 = vadd.f32 %v2810, %v3066
    %v3131 = vadd.f32 %v2811, %v3067
    %v3132 = vadd.f32 %v2812, %v3068
    %v3133 = vadd.f32 %v2813, %v3069
    %v3134 = vadd.f32 %v2814, %v3070
    %v3135 = vadd.f32 %v2815, %v3071
    %v3136 = vadd.f32 %v2816, %v3072
    %v3137 = vadd.f32 %v2817, %v3073
    %v3138 = vadd.f32 %v2818, %v3074
    %v3139 = vadd.f32 %v2819, %v3075
    %v3140 = vadd.f32 %v2820, %v3076
    %v3141 = vadd.f32 %v3109, %v3077
    %v3142 = vadd.f32 %v3110, %v3078
    %v3143 = vadd.f32 %v3111, %v3079
    %v3144 = vadd.f32 %v3112, %v3080
    %v3145 = vadd.f32 %v3113, %v3081
    %v3146 = vadd.f32 %v3114, %v3082
    %v3147 = vadd.f32 %v3115, %v3083
    %v3148 = vadd.f32 %v3116, %v3084
    %v3149 = vadd.f32 %v3117, %v3085
    %v3150 = vadd.f32 %v3118, %v3086
    %v3151 = vadd.f32 %v3119, %v3087
    %v3152 = vadd.f32 %v3120, %v3088
    %v3153 = vadd.f32 %v3121, %v3089
    %v3154 = vadd.f32 %v3122, %v3090
    %v3155 = vadd.f32 %v3123, %v3091
    %v3156 = vadd.f32 %v3124, %v3092
    %v3157 = vadd.f32 %v3125, %v3093
    %v3158 = vadd.f32 %v3126, %v3094
    %v3159 = vadd.f32 %v3127, %v3095
    %v3160 = vadd.f32 %v3128, %v3096
    %v3161 = vadd.f32 %v3129, %v3097
    %v3162 = vadd.f32 %v3130, %v3098
    %v3163 = vadd.f32 %v3131, %v3099
    %v3164 = vadd.f32 %v3132, %v3100
    %v3165 = vadd.f32 %v3133, %v3101
    %v3166 = vadd.f32 %v3134, %v3102
    %v3167 = vadd.f32 %v3135, %v3103
    %v3168 = vadd.f32 %v3136, %v3104
    %v3169 = vadd.f32 %v3137, %v3105
    %v3170 = vadd.f32 %v3138, %v3106
    %v3171 = vadd.f32 %v3139, %v3107
    %v3172 = vadd.f32 %v3140, %v3108
    %3173 = vst [vmem:[#allocation2] sm:$0xff] %v3141
    %3174 = vst [vmem:[#allocation2 + $0x8] sm:$0xff] %v3142
    %3175 = vst [vmem:[#allocation2 + $0x10] sm:$0xff] %v3143
    %3176 = vst [vmem:[#allocation2 + $0x18] sm:$0xff] %v3144
    %3177 = vst [vmem:[#allocation2 + $0x20] sm:$0xff] %v3145
    %3178 = vst [vmem:[#allocation2 + $0x28] sm:$0xff] %v3146
    %3179 = vst [vmem:[#allocation2 + $0x30] sm:$0xff] %v3147
    %3180 = vst [vmem:[#allocation2 + $0x38] sm:$0xff] %v3148
    %3181 = vst [vmem:[#allocation2 + $0x40] sm:$0xff] %v3149
    %3182 = vst [vmem:[#allocation2 + $0x48] sm:$0xff] %v3150
    %3183 = vst [vmem:[#allocation2 + $0x50] sm:$0xff] %v3151
    %3184 = vst [vmem:[#allocation2 + $0x58] sm:$0xff] %v3152
    %3185 = vst [vmem:[#allocation2 + $0x60] sm:$0xff] %v3153
    %3186 = vst [vmem:[#allocation2 + $0x68] sm:$0xff] %v3154
    %3187 = vst [vmem:[#allocation2 + $0x70] sm:$0xff] %v3155
    %3188 = vst [vmem:[#allocation2 + $0x78] sm:$0xff] %v3156
    %3189 = vst [vmem:[#allocation2 + $0x80] sm:$0xff] %v3157
    %3190 = vst [vmem:[#allocation2 + $0x88] sm:$0xff] %v3158
    %3191 = vst [vmem:[#allocation2 + $0x90] sm:$0xff] %v3159
    %3192 = vst [vmem:[#allocation2 + $0x98] sm:$0xff] %v3160
    %3193 = vst [vmem:[#allocation2 + $0xa0] sm:$0xff] %v3161
    %3194 = vst [vmem:[#allocation2 + $0xa8] sm:$0xff] %v3162
    %3195 = vst [vmem:[#allocation2 + $0xb0] sm:$0xff] %v3163
    %3196 = vst [vmem:[#allocation2 + $0xb8] sm:$0xff] %v3164
    %3197 = vst [vmem:[#allocation2 + $0xc0] sm:$0xff] %v3165
    %3198 = vst [vmem:[#allocation2 + $0xc8] sm:$0xff] %v3166
    %3199 = vst [vmem:[#allocation2 + $0xd0] sm:$0xff] %v3167
    %3200 = vst [vmem:[#allocation2 + $0xd8] sm:$0xff] %v3168
    %3201 = vst [vmem:[#allocation2 + $0xe0] sm:$0xff] %v3169
    %3202 = vst [vmem:[#allocation2 + $0xe8] sm:$0xff] %v3170
    %3203 = vst [vmem:[#allocation2 + $0xf0] sm:$0xff] %v3171
    %3204 = vst [vmem:[#allocation2 + $0xf8] sm:$0xff] %v3172
    // Predicated region
    $region22: #{tpu_custom_call.1} parent=1 // pred_check
      _
    $region23: #{tpu_custom_call.1} parent=1 // pred_check_branch
      %3206 = sbr.rel (0) target = $region25
    $region24: #{tpu_custom_call.1} parent=1 // pred_region
      %s3208 = ssub.s32 4096, 4096
      %3209 = vsyncadd [#allocation3], %s3208
      %s3210 = sshll.u32 [#allocation2], 4
      %s3211 = int_to_ptr.vmem [resolvable:$true] %s3210
      %3216 = dma.vmem_to_hbm [thread:$0]  %s3211, 4096, %s5, [#allocation3], 128, 128, 8
    $region25: #{tpu_custom_call.1} parent=1 // pred_fallthru
      _
    // Predicated region
    $region26: #{tpu_custom_call.1} parent=1 // pred_check
      _
    $region27: #{tpu_custom_call.1} parent=1 // pred_check_branch
      %3218 = sbr.rel (0) target = $region29
    $region28: #{tpu_custom_call.1} parent=1 // pred_region
      %3219 = dma.done [#allocation3], 4096
    $region29: #{tpu_custom_call.1} parent=1 // pred_fallthru
      _
    %3220 = vsyncpa [#allocation3], 1

</llo_original>
